<compile_context>
chip_gen: v7x
topology: tpu7x:2x2x1
jax: 0.10.0
libtpu: 0.0.40
codegen_flags: <defaults>
</compile_context>

<pallas_src>
import functools

import jax
import jax.numpy as jnp
from jax.experimental import pallas as pl
from jax.experimental.pallas import tpu as pltpu


def _round_up(x, m):
    return (x + m - 1) // m * m


# ----------------------------------------------------------------------------
# Kernel: one (batch, depth-tile) step.
# ----------------------------------------------------------------------------
def _conv_kernel(x_main_ref, x_halo_ref, w_ref, b_ref, o_ref, col_ref, *,
                 k, td, wp, m_pad, cin):
    """Refs:
      x_main_ref: (1, TD,   Cin, HWp_pad)  padded depths [t*TD, t*TD+TD)
      x_halo_ref: (1, k-1,  Cin, HWp_pad)  padded depths [t*TD+TD, t*TD+TD+k-1)
      w_ref     : (Cout, k^3*Cin)          taps flattened (kd, kh, kw, cin)-major
      b_ref     : (Cout, 1)                f32 bias
      o_ref     : (1, TD, Cout, m_pad)     f32 output, lane-padded (multiple of 128)
      col_ref   : ((TD+k-1)*k*k*Cin, m_pad) im2col scratch in compute dtype
    """
    kk = k * k
    dwin = td + k - 1
    kkk_cin = k * kk * cin

    # Phase 1: im2col.  The k*k (kh, kw) lane-shifted views of every padded
    # depth slice in the window are copied into VMEM once (shifts ride the
    # otherwise-idle XLU/load slots) and reused by up to TD output depths.
    for wd in range(dwin):
        for kh in range(k):
            for kw in range(k):
                off = kh * wp + kw                       # static lane offset
                if wd < td:
                    chunk = x_main_ref[0, wd, :, off:off + m_pad]
                else:
                    chunk = x_halo_ref[0, wd - td, :, off:off + m_pad]
                row0 = (wd * kk + kh * k + kw) * cin
                col_ref[row0:row0 + cin, :] = chunk

    # Phase 2: one K = k^3*Cin MXU matmul per output depth.  The RHS is a
    # contiguous sublane slab of the scratch (3 consecutive depth row-blocks),
    # so there is no reshape and no traced running accumulator.
    w = w_ref[...]
    b = b_ref[...]
    for dd in range(td):
        rhs = col_ref[dd * kk * cin: dd * kk * cin + kkk_cin, :]
        y = jax.lax.dot_general(
            w, rhs,
            dimension_numbers=(((1,), (0,)), ((), ())),
            preferred_element_type=jnp.float32)
        o_ref[0, dd] = (y + b).astype(o_ref.dtype)


# ----------------------------------------------------------------------------
# reflect_conv3d forward (ReflectionPad3d(pad) -> Conv3d(k, stride=1, pad=0))
# ----------------------------------------------------------------------------
def reflect_conv3d_forward(x, weight, bias, *, kernel_size=3, stride=1, pad=1,
                           compute_dtype=None, depth_tile=None):
    """x: (N, Cin, D, H, W); weight: (Cout, Cin, k, k, k); bias: (Cout,)."""
    if stride != 1:
        raise NotImplementedError("stride != 1")   # TODO(synk): strided conv
    N, Cin, D, H, W = x.shape
    Cout = weight.shape[0]
    k = kernel_size
    assert weight.shape == (Cout, Cin, k, k, k)
    assert k >= 2                                   # TODO(synk): k == 1 path
    if compute_dtype is None:
        compute_dtype = x.dtype                     # module-exact numerics

    Dp, Hp, Wp = D + 2 * pad, H + 2 * pad, W + 2 * pad
    Do, Ho, Wo = Dp - k + 1, Hp - k + 1, Wp - k + 1

    # --- lane geometry ------------------------------------------------------
    m_row = Ho * Wp                                 # valid output flat span / depth
    lane_mult = 512 if m_row >= 2048 else 128
    m_pad = _round_up(m_row, lane_mult)             # lane-dense output width
    off_max = (k - 1) * Wp + (k - 1)                # largest static tap offset
    # Lane padding guarantees every shifted (Cin, m_pad) view stays in bounds;
    # valid output columns never read the zero padding (only garbage columns
    # that the final [..., :Wo] slice drops).
    hwp_pad = _round_up(off_max + m_pad, 128)
    itemsize = jnp.dtype(compute_dtype).itemsize

    # --- generation-aware VMEM budget ----------------------------------------
    try:
        vmem_cap = int(pltpu.get_tpu_info().vmem_capacity_bytes)
    except Exception:
        vmem_cap = 64 * 1024 * 1024                 # v7x-safe fallback
    vmem_budget = vmem_cap * 3 // 4                 # headroom for compiler scratch

    # --- depth-tile selection -------------------------------------------------
    def vmem_est(td):
        dwin_ = td + k - 1
        return (2 * td * Cin * hwp_pad * itemsize          # main input (dbl buf)
                + 2 * (k - 1) * Cin * hwp_pad * itemsize   # halo (dbl buf)
                + 2 * td * Cout * m_pad * 4                # output block (dbl buf)
                + dwin_ * k * k * Cin * m_pad * itemsize   # im2col scratch
                + 2 * Cout * (k ** 3) * Cin * itemsize     # weights
                + 2 * Cout * 4 + (1 << 20))                # bias + slack

    td_cap = _round_up(Do, k - 1)
    if depth_tile is not None:
        TD = depth_tile
        assert TD % (k - 1) == 0 and TD >= k - 1
    else:
        TD = k - 1
        for m in (4, 3, 2, 1):                      # TD candidates 8,6,4,2 for k=3
            cand = max(min((k - 1) * m, td_cap), k - 1)
            if vmem_est(cand) <= vmem_budget:
                TD = cand
                break
        # TODO(synk): if even TD=k-1 does not fit (huge Cin*H*W), tile m_row too.

    DT = -(-Do // TD)                               # number of depth tiles
    Dpad = DT * TD + (k - 1)                        # padded-depth extent needed
    halo_step = TD // (k - 1)
    dwin = TD + k - 1

    # --- data layout -----------------------------------------------------------
    # Reflection padding (matches torch.nn.ReflectionPad3d).
    xp = jnp.pad(x, ((0, 0), (0, 0), (pad, pad), (pad, pad), (pad, pad)),
                 mode="reflect")
    # TODO(synk): this depth-major relayout is one extra HBM read+write of the
    # padded input; fold it into the kernel (pl.ANY + strided DMA) if it shows
    # up on v5e profiles.
    xt = jnp.transpose(xp, (0, 2, 1, 3, 4)).reshape(N, Dp, Cin, Hp * Wp)
    xt = xt.astype(compute_dtype)
    xt = jnp.pad(xt, ((0, 0), (0, Dpad - Dp), (0, 0), (0, hwp_pad - Hp * Wp)))

    # Weights: (Cout, Cin, kd, kh, kw) -> (Cout, kd, kh, kw, Cin) -> (Cout, k^3*Cin)
    w2 = jnp.transpose(weight, (0, 2, 3, 4, 1)).reshape(Cout, (k ** 3) * Cin)
    w2 = w2.astype(compute_dtype)
    b2 = bias.reshape(Cout, 1).astype(jnp.float32)

    kernel = functools.partial(_conv_kernel, k=k, td=TD, wp=Wp, m_pad=m_pad,
                               cin=Cin)

    in_specs = [
        # Main depth window: TD padded slices starting at t*TD.
        pl.BlockSpec((1, TD, Cin, hwp_pad), lambda n, t: (n, t, 0, 0)),
        # Halo: the k-1 slices right after the main window (same HBM array).
        pl.BlockSpec((1, k - 1, Cin, hwp_pad),
                     lambda n, t: (n, (t + 1) * halo_step, 0, 0)),
        pl.BlockSpec((Cout, (k ** 3) * Cin), lambda n, t: (0, 0)),
        pl.BlockSpec((Cout, 1), lambda n, t: (0, 0)),
    ]
    out_spec = pl.BlockSpec((1, TD, Cout, m_pad), lambda n, t: (n, t, 0, 0))

    flops = 2 * N * DT * TD * Cout * (k ** 3) * Cin * m_pad
    bytes_accessed = (N * DT * dwin * Cin * hwp_pad * itemsize   # ~1.25x input read
                      + N * DT * TD * Cout * m_pad * 4           # output written once
                      + Cout * (k ** 3) * Cin * itemsize + Cout * 4)
    cost = pl.CostEstimate(flops=flops, transcendentals=0,
                           bytes_accessed=bytes_accessed)

    out = pl.pallas_call(
        kernel,
        out_shape=jax.ShapeDtypeStruct((N, DT * TD, Cout, m_pad), jnp.float32),
        grid=(N, DT),
        in_specs=in_specs,
        out_specs=out_spec,
        scratch_shapes=[pltpu.VMEM((dwin * k * k * Cin, m_pad), compute_dtype)],
        compiler_params=pltpu.CompilerParams(
            dimension_semantics=("parallel", "parallel"),
            vmem_limit_bytes=int(vmem_budget)),
        cost_estimate=cost,
    )(xt, xt, w2, b2)

    # (N, DT*TD, Cout, m_pad) -> drop garbage depths / lanes / W columns -> NCDHW.
    out = out[:, :Do, :, :m_row].reshape(N, Do, Cout, Ho, Wp)[..., :Wo]
    return jnp.transpose(out, (0, 2, 1, 3, 4))


# ----------------------------------------------------------------------------
# Reference (pure JAX) for verification
# ----------------------------------------------------------------------------
def _reference(x, weight, bias, *, pad=1):
    xp = jnp.pad(x, ((0, 0), (0, 0), (pad, pad), (pad, pad), (pad, pad)),
                 mode="reflect")
    out = jax.lax.conv_general_dilated(
        xp, weight,
        window_strides=(1, 1, 1),
        padding="VALID",
        dimension_numbers=("NCDHW", "OIDHW", "NCDHW"))
    return out + bias.reshape(1, -1, 1, 1, 1)


if __name__ == "__main__":
    key = jax.random.PRNGKey(0)
    kx, kw_, kb = jax.random.split(key, 3)

    # Small, consistent shapes: batch=2, in_channels=4, out_channels=8, D=H=W=8.
    N, Cin, Cout, D, H, W = 2, 4, 8, 8, 8, 8
    k, pad = 3, 1

    x = jax.random.normal(kx, (N, Cin, D, H, W), dtype=jnp.float32)

    # Deterministic PyTorch-style init: U(-bound, bound), bound = 1/sqrt(fan_in).
    fan_in = Cin * k * k * k
    bound = fan_in ** -0.5
    weight = jax.random.uniform(kw_, (Cout, Cin, k, k, k), jnp.float32,
                                -bound, bound)
    bias = jax.random.uniform(kb, (Cout,), jnp.float32, -bound, bound)

    ref = _reference(x, weight, bias, pad=pad)

    # f32 path — module-exact numerics.
    fwd_f32 = jax.jit(functools.partial(reflect_conv3d_forward,
                                        kernel_size=k, pad=pad))
    out_f32 = fwd_f32(x, weight, bias)
    jax.block_until_ready(out_f32)
    assert out_f32.shape == (N, Cout, D, H, W), out_f32.shape
    err_f32 = float(jnp.max(jnp.abs(out_f32 - ref)))
    assert err_f32 < 1e-3, f"f32 path max abs err {err_f32}"

    # bf16 compute path — halves dominant HBM read stream, f32 accumulation.
    fwd_bf16 = jax.jit(functools.partial(reflect_conv3d_forward, kernel_size=k,
                                         pad=pad, compute_dtype=jnp.bfloat16))
    out_bf16 = fwd_bf16(x, weight, bias)
    jax.block_until_ready(out_bf16)
    err_bf16 = float(jnp.max(jnp.abs(out_bf16 - ref)))
    assert err_bf16 < 3e-2, f"bf16 path max abs err {err_bf16}"

    print("KERNEL_OK")
</pallas_src>

<mosaic_0001>
module attributes {stable_mosaic.version = 11 : i64} {
  func.func @_conv_kernel(%arg0: i32, %arg1: i32, %arg2: memref<1x8x4x256xf32, #tpu.memory_space<vmem>>, %arg3: memref<1x2x4x256xf32, #tpu.memory_space<vmem>>, %arg4: memref<8x108xf32, #tpu.memory_space<vmem>>, %arg5: memref<8x1xf32, #tpu.memory_space<vmem>>, %arg6: memref<1x8x8x128xf32, #tpu.memory_space<vmem>>, %arg7: memref<360x128xf32, #tpu.memory_space<vmem>>) attributes {dimension_semantics = [#tpu.dimension_semantics<parallel>, #tpu.dimension_semantics<parallel>], iteration_bounds = array<i64: 2, 1>, scalar_prefetch = 0 : i64, scratch_operands = 1 : i64, tpu.core_type = #tpu.core_type<tc>, window_params = [{transform_indices = @transform_0, window_bounds = array<i64: 1, 8, 4, 256>}, {transform_indices = @transform_1, window_bounds = array<i64: 1, 2, 4, 256>}, {pipeline_mode = #tpu.pipeline_mode<synchronous>, transform_indices = @transform_2, window_bounds = array<i64: 8, 108>}, {pipeline_mode = #tpu.pipeline_mode<synchronous>, transform_indices = @transform_3, window_bounds = array<i64: 8, 1>}, {transform_indices = @transform_4, window_bounds = array<i64: 1, 8, 8, 128>}]} {
    %c0 = arith.constant 0 : index
    %c0_0 = arith.constant 0 : index
    %c0_1 = arith.constant 0 : index
    %c0_2 = arith.constant 0 : index
    %0 = vector.load %arg2[%c0, %c0_0, %c0_1, %c0_2] : memref<1x8x4x256xf32, #tpu.memory_space<vmem>>, vector<1x1x4x128xf32>
    %1 = vector.shape_cast %0 : vector<1x1x4x128xf32> to vector<4x128xf32>
    %c0_3 = arith.constant 0 : index
    %c0_4 = arith.constant 0 : index
    %2 = vector.load %arg7[%c0_3, %c0_4] : memref<360x128xf32, #tpu.memory_space<vmem>>, vector<4x128xf32>
    tpu.vector_store %arg7[%c0_3, %c0_4], %1 {strides = array<i32>} : memref<360x128xf32, #tpu.memory_space<vmem>>, vector<4x128xf32>,
    %c0_5 = arith.constant 0 : index
    %c0_6 = arith.constant 0 : index
    %c0_7 = arith.constant 0 : index
    %c1 = arith.constant 1 : index
    %3 = vector.load %arg2[%c0_5, %c0_6, %c0_7, %c1] : memref<1x8x4x256xf32, #tpu.memory_space<vmem>>, vector<1x1x4x128xf32>
    %4 = vector.shape_cast %3 : vector<1x1x4x128xf32> to vector<4x128xf32>
    %c4 = arith.constant 4 : index
    %c0_8 = arith.constant 0 : index
    %5 = vector.load %arg7[%c4, %c0_8] : memref<360x128xf32, #tpu.memory_space<vmem>>, vector<4x128xf32>
    tpu.vector_store %arg7[%c4, %c0_8], %4 {strides = array<i32>} : memref<360x128xf32, #tpu.memory_space<vmem>>, vector<4x128xf32>,
    %c0_9 = arith.constant 0 : index
    %c0_10 = arith.constant 0 : index
    %c0_11 = arith.constant 0 : index
    %c2 = arith.constant 2 : index
    %6 = vector.load %arg2[%c0_9, %c0_10, %c0_11, %c2] : memref<1x8x4x256xf32, #tpu.memory_space<vmem>>, vector<1x1x4x128xf32>
    %7 = vector.shape_cast %6 : vector<1x1x4x128xf32> to vector<4x128xf32>
    %c8 = arith.constant 8 : index
    %c0_12 = arith.constant 0 : index
    %8 = vector.load %arg7[%c8, %c0_12] : memref<360x128xf32, #tpu.memory_space<vmem>>, vector<4x128xf32>
    tpu.vector_store %arg7[%c8, %c0_12], %7 {strides = array<i32>} : memref<360x128xf32, #tpu.memory_space<vmem>>, vector<4x128xf32>,
    %c0_13 = arith.constant 0 : index
    %c0_14 = arith.constant 0 : index
    %c0_15 = arith.constant 0 : index
    %c10 = arith.constant 10 : index
    %9 = vector.load %arg2[%c0_13, %c0_14, %c0_15, %c10] : memref<1x8x4x256xf32, #tpu.memory_space<vmem>>, vector<1x1x4x128xf32>
    %10 = vector.shape_cast %9 : vector<1x1x4x128xf32> to vector<4x128xf32>
    %c12 = arith.constant 12 : index
    %c0_16 = arith.constant 0 : index
    %11 = vector.load %arg7[%c12, %c0_16] : memref<360x128xf32, #tpu.memory_space<vmem>>, vector<4x128xf32>
    tpu.vector_store %arg7[%c12, %c0_16], %10 {strides = array<i32>} : memref<360x128xf32, #tpu.memory_space<vmem>>, vector<4x128xf32>,
    %c0_17 = arith.constant 0 : index
    %c0_18 = arith.constant 0 : index
    %c0_19 = arith.constant 0 : index
    %c11 = arith.constant 11 : index
    %12 = vector.load %arg2[%c0_17, %c0_18, %c0_19, %c11] : memref<1x8x4x256xf32, #tpu.memory_space<vmem>>, vector<1x1x4x128xf32>
    %13 = vector.shape_cast %12 : vector<1x1x4x128xf32> to vector<4x128xf32>
    %c16 = arith.constant 16 : index
    %c0_20 = arith.constant 0 : index
    %14 = vector.load %arg7[%c16, %c0_20] : memref<360x128xf32, #tpu.memory_space<vmem>>, vector<4x128xf32>
    tpu.vector_store %arg7[%c16, %c0_20], %13 {strides = array<i32>} : memref<360x128xf32, #tpu.memory_space<vmem>>, vector<4x128xf32>,
    %c0_21 = arith.constant 0 : index
    %c0_22 = arith.constant 0 : index
    %c0_23 = arith.constant 0 : index
    %c12_24 = arith.constant 12 : index
    %15 = vector.load %arg2[%c0_21, %c0_22, %c0_23, %c12_24] : memref<1x8x4x256xf32, #tpu.memory_space<vmem>>, vector<1x1x4x128xf32>
    %16 = vector.shape_cast %15 : vector<1x1x4x128xf32> to vector<4x128xf32>
    %c20 = arith.constant 20 : index
    %c0_25 = arith.constant 0 : index
    %17 = vector.load %arg7[%c20, %c0_25] : memref<360x128xf32, #tpu.memory_space<vmem>>, vector<4x128xf32>
    tpu.vector_store %arg7[%c20, %c0_25], %16 {strides = array<i32>} : memref<360x128xf32, #tpu.memory_space<vmem>>, vector<4x128xf32>,
    %c0_26 = arith.constant 0 : index
    %c0_27 = arith.constant 0 : index
    %c0_28 = arith.constant 0 : index
    %c20_29 = arith.constant 20 : index
    %18 = vector.load %arg2[%c0_26, %c0_27, %c0_28, %c20_29] : memref<1x8x4x256xf32, #tpu.memory_space<vmem>>, vector<1x1x4x128xf32>
    %19 = vector.shape_cast %18 : vector<1x1x4x128xf32> to vector<4x128xf32>
    %c24 = arith.constant 24 : index
    %c0_30 = arith.constant 0 : index
    %20 = vector.load %arg7[%c24, %c0_30] : memref<360x128xf32, #tpu.memory_space<vmem>>, vector<4x128xf32>
    tpu.vector_store %arg7[%c24, %c0_30], %19 {strides = array<i32>} : memref<360x128xf32, #tpu.memory_space<vmem>>, vector<4x128xf32>,
    %c0_31 = arith.constant 0 : index
    %c0_32 = arith.constant 0 : index
    %c0_33 = arith.constant 0 : index
    %c21 = arith.constant 21 : index
    %21 = vector.load %arg2[%c0_31, %c0_32, %c0_33, %c21] : memref<1x8x4x256xf32, #tpu.memory_space<vmem>>, vector<1x1x4x128xf32>
    %22 = vector.shape_cast %21 : vector<1x1x4x128xf32> to vector<4x128xf32>
    %c28 = arith.constant 28 : index
    %c0_34 = arith.constant 0 : index
    %23 = vector.load %arg7[%c28, %c0_34] : memref<360x128xf32, #tpu.memory_space<vmem>>, vector<4x128xf32>
    tpu.vector_store %arg7[%c28, %c0_34], %22 {strides = array<i32>} : memref<360x128xf32, #tpu.memory_space<vmem>>, vector<4x128xf32>,
    %c0_35 = arith.constant 0 : index
    %c0_36 = arith.constant 0 : index
    %c0_37 = arith.constant 0 : index
    %c22 = arith.constant 22 : index
    %24 = vector.load %arg2[%c0_35, %c0_36, %c0_37, %c22] : memref<1x8x4x256xf32, #tpu.memory_space<vmem>>, vector<1x1x4x128xf32>
    %25 = vector.shape_cast %24 : vector<1x1x4x128xf32> to vector<4x128xf32>
    %c32 = arith.constant 32 : index
    %c0_38 = arith.constant 0 : index
    %26 = vector.load %arg7[%c32, %c0_38] : memref<360x128xf32, #tpu.memory_space<vmem>>, vector<4x128xf32>
    tpu.vector_store %arg7[%c32, %c0_38], %25 {strides = array<i32>} : memref<360x128xf32, #tpu.memory_space<vmem>>, vector<4x128xf32>,
    %c0_39 = arith.constant 0 : index
    %c1_40 = arith.constant 1 : index
    %c0_41 = arith.constant 0 : index
    %c0_42 = arith.constant 0 : index
    %27 = vector.load %arg2[%c0_39, %c1_40, %c0_41, %c0_42] : memref<1x8x4x256xf32, #tpu.memory_space<vmem>>, vector<1x1x4x128xf32>
    %28 = vector.shape_cast %27 : vector<1x1x4x128xf32> to vector<4x128xf32>
    %c36 = arith.constant 36 : index
    %c0_43 = arith.constant 0 : index
    %29 = vector.load %arg7[%c36, %c0_43] : memref<360x128xf32, #tpu.memory_space<vmem>>, vector<4x128xf32>
    tpu.vector_store %arg7[%c36, %c0_43], %28 {strides = array<i32>} : memref<360x128xf32, #tpu.memory_space<vmem>>, vector<4x128xf32>,
    %c0_44 = arith.constant 0 : index
    %c1_45 = arith.constant 1 : index
    %c0_46 = arith.constant 0 : index
    %c1_47 = arith.constant 1 : index
    %30 = vector.load %arg2[%c0_44, %c1_45, %c0_46, %c1_47] : memref<1x8x4x256xf32, #tpu.memory_space<vmem>>, vector<1x1x4x128xf32>
    %31 = vector.shape_cast %30 : vector<1x1x4x128xf32> to vector<4x128xf32>
    %c40 = arith.constant 40 : index
    %c0_48 = arith.constant 0 : index
    %32 = vector.load %arg7[%c40, %c0_48] : memref<360x128xf32, #tpu.memory_space<vmem>>, vector<4x128xf32>
    tpu.vector_store %arg7[%c40, %c0_48], %31 {strides = array<i32>} : memref<360x128xf32, #tpu.memory_space<vmem>>, vector<4x128xf32>,
    %c0_49 = arith.constant 0 : index
    %c1_50 = arith.constant 1 : index
    %c0_51 = arith.constant 0 : index
    %c2_52 = arith.constant 2 : index
    %33 = vector.load %arg2[%c0_49, %c1_50, %c0_51, %c2_52] : memref<1x8x4x256xf32, #tpu.memory_space<vmem>>, vector<1x1x4x128xf32>
    %34 = vector.shape_cast %33 : vector<1x1x4x128xf32> to vector<4x128xf32>
    %c44 = arith.constant 44 : index
    %c0_53 = arith.constant 0 : index
    %35 = vector.load %arg7[%c44, %c0_53] : memref<360x128xf32, #tpu.memory_space<vmem>>, vector<4x128xf32>
    tpu.vector_store %arg7[%c44, %c0_53], %34 {strides = array<i32>} : memref<360x128xf32, #tpu.memory_space<vmem>>, vector<4x128xf32>,
    %c0_54 = arith.constant 0 : index
    %c1_55 = arith.constant 1 : index
    %c0_56 = arith.constant 0 : index
    %c10_57 = arith.constant 10 : index
    %36 = vector.load %arg2[%c0_54, %c1_55, %c0_56, %c10_57] : memref<1x8x4x256xf32, #tpu.memory_space<vmem>>, vector<1x1x4x128xf32>
    %37 = vector.shape_cast %36 : vector<1x1x4x128xf32> to vector<4x128xf32>
    %c48 = arith.constant 48 : index
    %c0_58 = arith.constant 0 : index
    %38 = vector.load %arg7[%c48, %c0_58] : memref<360x128xf32, #tpu.memory_space<vmem>>, vector<4x128xf32>
    tpu.vector_store %arg7[%c48, %c0_58], %37 {strides = array<i32>} : memref<360x128xf32, #tpu.memory_space<vmem>>, vector<4x128xf32>,
    %c0_59 = arith.constant 0 : index
    %c1_60 = arith.constant 1 : index
    %c0_61 = arith.constant 0 : index
    %c11_62 = arith.constant 11 : index
    %39 = vector.load %arg2[%c0_59, %c1_60, %c0_61, %c11_62] : memref<1x8x4x256xf32, #tpu.memory_space<vmem>>, vector<1x1x4x128xf32>
    %40 = vector.shape_cast %39 : vector<1x1x4x128xf32> to vector<4x128xf32>
    %c52 = arith.constant 52 : index
    %c0_63 = arith.constant 0 : index
    %41 = vector.load %arg7[%c52, %c0_63] : memref<360x128xf32, #tpu.memory_space<vmem>>, vector<4x128xf32>
    tpu.vector_store %arg7[%c52, %c0_63], %40 {strides = array<i32>} : memref<360x128xf32, #tpu.memory_space<vmem>>, vector<4x128xf32>,
    %c0_64 = arith.constant 0 : index
    %c1_65 = arith.constant 1 : index
    %c0_66 = arith.constant 0 : index
    %c12_67 = arith.constant 12 : index
    %42 = vector.load %arg2[%c0_64, %c1_65, %c0_66, %c12_67] : memref<1x8x4x256xf32, #tpu.memory_space<vmem>>, vector<1x1x4x128xf32>
    %43 = vector.shape_cast %42 : vector<1x1x4x128xf32> to vector<4x128xf32>
    %c56 = arith.constant 56 : index
    %c0_68 = arith.constant 0 : index
    %44 = vector.load %arg7[%c56, %c0_68] : memref<360x128xf32, #tpu.memory_space<vmem>>, vector<4x128xf32>
    tpu.vector_store %arg7[%c56, %c0_68], %43 {strides = array<i32>} : memref<360x128xf32, #tpu.memory_space<vmem>>, vector<4x128xf32>,
    %c0_69 = arith.constant 0 : index
    %c1_70 = arith.constant 1 : index
    %c0_71 = arith.constant 0 : index
    %c20_72 = arith.constant 20 : index
    %45 = vector.load %arg2[%c0_69, %c1_70, %c0_71, %c20_72] : memref<1x8x4x256xf32, #tpu.memory_space<vmem>>, vector<1x1x4x128xf32>
    %46 = vector.shape_cast %45 : vector<1x1x4x128xf32> to vector<4x128xf32>
    %c60 = arith.constant 60 : index
    %c0_73 = arith.constant 0 : index
    %47 = vector.load %arg7[%c60, %c0_73] : memref<360x128xf32, #tpu.memory_space<vmem>>, vector<4x128xf32>
    tpu.vector_store %arg7[%c60, %c0_73], %46 {strides = array<i32>} : memref<360x128xf32, #tpu.memory_space<vmem>>, vector<4x128xf32>,
    %c0_74 = arith.constant 0 : index
    %c1_75 = arith.constant 1 : index
    %c0_76 = arith.constant 0 : index
    %c21_77 = arith.constant 21 : index
    %48 = vector.load %arg2[%c0_74, %c1_75, %c0_76, %c21_77] : memref<1x8x4x256xf32, #tpu.memory_space<vmem>>, vector<1x1x4x128xf32>
    %49 = vector.shape_cast %48 : vector<1x1x4x128xf32> to vector<4x128xf32>
    %c64 = arith.constant 64 : index
    %c0_78 = arith.constant 0 : index
    %50 = vector.load %arg7[%c64, %c0_78] : memref<360x128xf32, #tpu.memory_space<vmem>>, vector<4x128xf32>
    tpu.vector_store %arg7[%c64, %c0_78], %49 {strides = array<i32>} : memref<360x128xf32, #tpu.memory_space<vmem>>, vector<4x128xf32>,
    %c0_79 = arith.constant 0 : index
    %c1_80 = arith.constant 1 : index
    %c0_81 = arith.constant 0 : index
    %c22_82 = arith.constant 22 : index
    %51 = vector.load %arg2[%c0_79, %c1_80, %c0_81, %c22_82] : memref<1x8x4x256xf32, #tpu.memory_space<vmem>>, vector<1x1x4x128xf32>
    %52 = vector.shape_cast %51 : vector<1x1x4x128xf32> to vector<4x128xf32>
    %c68 = arith.constant 68 : index
    %c0_83 = arith.constant 0 : index
    %53 = vector.load %arg7[%c68, %c0_83] : memref<360x128xf32, #tpu.memory_space<vmem>>, vector<4x128xf32>
    tpu.vector_store %arg7[%c68, %c0_83], %52 {strides = array<i32>} : memref<360x128xf32, #tpu.memory_space<vmem>>, vector<4x128xf32>,
    %c0_84 = arith.constant 0 : index
    %c2_85 = arith.constant 2 : index
    %c0_86 = arith.constant 0 : index
    %c0_87 = arith.constant 0 : index
    %54 = vector.load %arg2[%c0_84, %c2_85, %c0_86, %c0_87] : memref<1x8x4x256xf32, #tpu.memory_space<vmem>>, vector<1x1x4x128xf32>
    %55 = vector.shape_cast %54 : vector<1x1x4x128xf32> to vector<4x128xf32>
    %c72 = arith.constant 72 : index
    %c0_88 = arith.constant 0 : index
    %56 = vector.load %arg7[%c72, %c0_88] : memref<360x128xf32, #tpu.memory_space<vmem>>, vector<4x128xf32>
    tpu.vector_store %arg7[%c72, %c0_88], %55 {strides = array<i32>} : memref<360x128xf32, #tpu.memory_space<vmem>>, vector<4x128xf32>,
    %c0_89 = arith.constant 0 : index
    %c2_90 = arith.constant 2 : index
    %c0_91 = arith.constant 0 : index
    %c1_92 = arith.constant 1 : index
    %57 = vector.load %arg2[%c0_89, %c2_90, %c0_91, %c1_92] : memref<1x8x4x256xf32, #tpu.memory_space<vmem>>, vector<1x1x4x128xf32>
    %58 = vector.shape_cast %57 : vector<1x1x4x128xf32> to vector<4x128xf32>
    %c76 = arith.constant 76 : index
    %c0_93 = arith.constant 0 : index
    %59 = vector.load %arg7[%c76, %c0_93] : memref<360x128xf32, #tpu.memory_space<vmem>>, vector<4x128xf32>
    tpu.vector_store %arg7[%c76, %c0_93], %58 {strides = array<i32>} : memref<360x128xf32, #tpu.memory_space<vmem>>, vector<4x128xf32>,
    %c0_94 = arith.constant 0 : index
    %c2_95 = arith.constant 2 : index
    %c0_96 = arith.constant 0 : index
    %c2_97 = arith.constant 2 : index
    %60 = vector.load %arg2[%c0_94, %c2_95, %c0_96, %c2_97] : memref<1x8x4x256xf32, #tpu.memory_space<vmem>>, vector<1x1x4x128xf32>
    %61 = vector.shape_cast %60 : vector<1x1x4x128xf32> to vector<4x128xf32>
    %c80 = arith.constant 80 : index
    %c0_98 = arith.constant 0 : index
    %62 = vector.load %arg7[%c80, %c0_98] : memref<360x128xf32, #tpu.memory_space<vmem>>, vector<4x128xf32>
    tpu.vector_store %arg7[%c80, %c0_98], %61 {strides = array<i32>} : memref<360x128xf32, #tpu.memory_space<vmem>>, vector<4x128xf32>,
    %c0_99 = arith.constant 0 : index
    %c2_100 = arith.constant 2 : index
    %c0_101 = arith.constant 0 : index
    %c10_102 = arith.constant 10 : index
    %63 = vector.load %arg2[%c0_99, %c2_100, %c0_101, %c10_102] : memref<1x8x4x256xf32, #tpu.memory_space<vmem>>, vector<1x1x4x128xf32>
    %64 = vector.shape_cast %63 : vector<1x1x4x128xf32> to vector<4x128xf32>
    %c84 = arith.constant 84 : index
    %c0_103 = arith.constant 0 : index
    %65 = vector.load %arg7[%c84, %c0_103] : memref<360x128xf32, #tpu.memory_space<vmem>>, vector<4x128xf32>
    tpu.vector_store %arg7[%c84, %c0_103], %64 {strides = array<i32>} : memref<360x128xf32, #tpu.memory_space<vmem>>, vector<4x128xf32>,
    %c0_104 = arith.constant 0 : index
    %c2_105 = arith.constant 2 : index
    %c0_106 = arith.constant 0 : index
    %c11_107 = arith.constant 11 : index
    %66 = vector.load %arg2[%c0_104, %c2_105, %c0_106, %c11_107] : memref<1x8x4x256xf32, #tpu.memory_space<vmem>>, vector<1x1x4x128xf32>
    %67 = vector.shape_cast %66 : vector<1x1x4x128xf32> to vector<4x128xf32>
    %c88 = arith.constant 88 : index
    %c0_108 = arith.constant 0 : index
    %68 = vector.load %arg7[%c88, %c0_108] : memref<360x128xf32, #tpu.memory_space<vmem>>, vector<4x128xf32>
    tpu.vector_store %arg7[%c88, %c0_108], %67 {strides = array<i32>} : memref<360x128xf32, #tpu.memory_space<vmem>>, vector<4x128xf32>,
    %c0_109 = arith.constant 0 : index
    %c2_110 = arith.constant 2 : index
    %c0_111 = arith.constant 0 : index
    %c12_112 = arith.constant 12 : index
    %69 = vector.load %arg2[%c0_109, %c2_110, %c0_111, %c12_112] : memref<1x8x4x256xf32, #tpu.memory_space<vmem>>, vector<1x1x4x128xf32>
    %70 = vector.shape_cast %69 : vector<1x1x4x128xf32> to vector<4x128xf32>
    %c92 = arith.constant 92 : index
    %c0_113 = arith.constant 0 : index
    %71 = vector.load %arg7[%c92, %c0_113] : memref<360x128xf32, #tpu.memory_space<vmem>>, vector<4x128xf32>
    tpu.vector_store %arg7[%c92, %c0_113], %70 {strides = array<i32>} : memref<360x128xf32, #tpu.memory_space<vmem>>, vector<4x128xf32>,
    %c0_114 = arith.constant 0 : index
    %c2_115 = arith.constant 2 : index
    %c0_116 = arith.constant 0 : index
    %c20_117 = arith.constant 20 : index
    %72 = vector.load %arg2[%c0_114, %c2_115, %c0_116, %c20_117] : memref<1x8x4x256xf32, #tpu.memory_space<vmem>>, vector<1x1x4x128xf32>
    %73 = vector.shape_cast %72 : vector<1x1x4x128xf32> to vector<4x128xf32>
    %c96 = arith.constant 96 : index
    %c0_118 = arith.constant 0 : index
    %74 = vector.load %arg7[%c96, %c0_118] : memref<360x128xf32, #tpu.memory_space<vmem>>, vector<4x128xf32>
    tpu.vector_store %arg7[%c96, %c0_118], %73 {strides = array<i32>} : memref<360x128xf32, #tpu.memory_space<vmem>>, vector<4x128xf32>,
    %c0_119 = arith.constant 0 : index
    %c2_120 = arith.constant 2 : index
    %c0_121 = arith.constant 0 : index
    %c21_122 = arith.constant 21 : index
    %75 = vector.load %arg2[%c0_119, %c2_120, %c0_121, %c21_122] : memref<1x8x4x256xf32, #tpu.memory_space<vmem>>, vector<1x1x4x128xf32>
    %76 = vector.shape_cast %75 : vector<1x1x4x128xf32> to vector<4x128xf32>
    %c100 = arith.constant 100 : index
    %c0_123 = arith.constant 0 : index
    %77 = vector.load %arg7[%c100, %c0_123] : memref<360x128xf32, #tpu.memory_space<vmem>>, vector<4x128xf32>
    tpu.vector_store %arg7[%c100, %c0_123], %76 {strides = array<i32>} : memref<360x128xf32, #tpu.memory_space<vmem>>, vector<4x128xf32>,
    %c0_124 = arith.constant 0 : index
    %c2_125 = arith.constant 2 : index
    %c0_126 = arith.constant 0 : index
    %c22_127 = arith.constant 22 : index
    %78 = vector.load %arg2[%c0_124, %c2_125, %c0_126, %c22_127] : memref<1x8x4x256xf32, #tpu.memory_space<vmem>>, vector<1x1x4x128xf32>
    %79 = vector.shape_cast %78 : vector<1x1x4x128xf32> to vector<4x128xf32>
    %c104 = arith.constant 104 : index
    %c0_128 = arith.constant 0 : index
    %80 = vector.load %arg7[%c104, %c0_128] : memref<360x128xf32, #tpu.memory_space<vmem>>, vector<4x128xf32>
    tpu.vector_store %arg7[%c104, %c0_128], %79 {strides = array<i32>} : memref<360x128xf32, #tpu.memory_space<vmem>>, vector<4x128xf32>,
    %c0_129 = arith.constant 0 : index
    %c3 = arith.constant 3 : index
    %c0_130 = arith.constant 0 : index
    %c0_131 = arith.constant 0 : index
    %81 = vector.load %arg2[%c0_129, %c3, %c0_130, %c0_131] : memref<1x8x4x256xf32, #tpu.memory_space<vmem>>, vector<1x1x4x128xf32>
    %82 = vector.shape_cast %81 : vector<1x1x4x128xf32> to vector<4x128xf32>
    %c108 = arith.constant 108 : index
    %c0_132 = arith.constant 0 : index
    %83 = vector.load %arg7[%c108, %c0_132] : memref<360x128xf32, #tpu.memory_space<vmem>>, vector<4x128xf32>
    tpu.vector_store %arg7[%c108, %c0_132], %82 {strides = array<i32>} : memref<360x128xf32, #tpu.memory_space<vmem>>, vector<4x128xf32>,
    %c0_133 = arith.constant 0 : index
    %c3_134 = arith.constant 3 : index
    %c0_135 = arith.constant 0 : index
    %c1_136 = arith.constant 1 : index
    %84 = vector.load %arg2[%c0_133, %c3_134, %c0_135, %c1_136] : memref<1x8x4x256xf32, #tpu.memory_space<vmem>>, vector<1x1x4x128xf32>
    %85 = vector.shape_cast %84 : vector<1x1x4x128xf32> to vector<4x128xf32>
    %c112 = arith.constant 112 : index
    %c0_137 = arith.constant 0 : index
    %86 = vector.load %arg7[%c112, %c0_137] : memref<360x128xf32, #tpu.memory_space<vmem>>, vector<4x128xf32>
    tpu.vector_store %arg7[%c112, %c0_137], %85 {strides = array<i32>} : memref<360x128xf32, #tpu.memory_space<vmem>>, vector<4x128xf32>,
    %c0_138 = arith.constant 0 : index
    %c3_139 = arith.constant 3 : index
    %c0_140 = arith.constant 0 : index
    %c2_141 = arith.constant 2 : index
    %87 = vector.load %arg2[%c0_138, %c3_139, %c0_140, %c2_141] : memref<1x8x4x256xf32, #tpu.memory_space<vmem>>, vector<1x1x4x128xf32>
    %88 = vector.shape_cast %87 : vector<1x1x4x128xf32> to vector<4x128xf32>
    %c116 = arith.constant 116 : index
    %c0_142 = arith.constant 0 : index
    %89 = vector.load %arg7[%c116, %c0_142] : memref<360x128xf32, #tpu.memory_space<vmem>>, vector<4x128xf32>
    tpu.vector_store %arg7[%c116, %c0_142], %88 {strides = array<i32>} : memref<360x128xf32, #tpu.memory_space<vmem>>, vector<4x128xf32>,
    %c0_143 = arith.constant 0 : index
    %c3_144 = arith.constant 3 : index
    %c0_145 = arith.constant 0 : index
    %c10_146 = arith.constant 10 : index
    %90 = vector.load %arg2[%c0_143, %c3_144, %c0_145, %c10_146] : memref<1x8x4x256xf32, #tpu.memory_space<vmem>>, vector<1x1x4x128xf32>
    %91 = vector.shape_cast %90 : vector<1x1x4x128xf32> to vector<4x128xf32>
    %c120 = arith.constant 120 : index
    %c0_147 = arith.constant 0 : index
    %92 = vector.load %arg7[%c120, %c0_147] : memref<360x128xf32, #tpu.memory_space<vmem>>, vector<4x128xf32>
    tpu.vector_store %arg7[%c120, %c0_147], %91 {strides = array<i32>} : memref<360x128xf32, #tpu.memory_space<vmem>>, vector<4x128xf32>,
    %c0_148 = arith.constant 0 : index
    %c3_149 = arith.constant 3 : index
    %c0_150 = arith.constant 0 : index
    %c11_151 = arith.constant 11 : index
    %93 = vector.load %arg2[%c0_148, %c3_149, %c0_150, %c11_151] : memref<1x8x4x256xf32, #tpu.memory_space<vmem>>, vector<1x1x4x128xf32>
    %94 = vector.shape_cast %93 : vector<1x1x4x128xf32> to vector<4x128xf32>
    %c124 = arith.constant 124 : index
    %c0_152 = arith.constant 0 : index
    %95 = vector.load %arg7[%c124, %c0_152] : memref<360x128xf32, #tpu.memory_space<vmem>>, vector<4x128xf32>
    tpu.vector_store %arg7[%c124, %c0_152], %94 {strides = array<i32>} : memref<360x128xf32, #tpu.memory_space<vmem>>, vector<4x128xf32>,
    %c0_153 = arith.constant 0 : index
    %c3_154 = arith.constant 3 : index
    %c0_155 = arith.constant 0 : index
    %c12_156 = arith.constant 12 : index
    %96 = vector.load %arg2[%c0_153, %c3_154, %c0_155, %c12_156] : memref<1x8x4x256xf32, #tpu.memory_space<vmem>>, vector<1x1x4x128xf32>
    %97 = vector.shape_cast %96 : vector<1x1x4x128xf32> to vector<4x128xf32>
    %c128 = arith.constant 128 : index
    %c0_157 = arith.constant 0 : index
    %98 = vector.load %arg7[%c128, %c0_157] : memref<360x128xf32, #tpu.memory_space<vmem>>, vector<4x128xf32>
    tpu.vector_store %arg7[%c128, %c0_157], %97 {strides = array<i32>} : memref<360x128xf32, #tpu.memory_space<vmem>>, vector<4x128xf32>,
    %c0_158 = arith.constant 0 : index
    %c3_159 = arith.constant 3 : index
    %c0_160 = arith.constant 0 : index
    %c20_161 = arith.constant 20 : index
    %99 = vector.load %arg2[%c0_158, %c3_159, %c0_160, %c20_161] : memref<1x8x4x256xf32, #tpu.memory_space<vmem>>, vector<1x1x4x128xf32>
    %100 = vector.shape_cast %99 : vector<1x1x4x128xf32> to vector<4x128xf32>
    %c132 = arith.constant 132 : index
    %c0_162 = arith.constant 0 : index
    %101 = vector.load %arg7[%c132, %c0_162] : memref<360x128xf32, #tpu.memory_space<vmem>>, vector<4x128xf32>
    tpu.vector_store %arg7[%c132, %c0_162], %100 {strides = array<i32>} : memref<360x128xf32, #tpu.memory_space<vmem>>, vector<4x128xf32>,
    %c0_163 = arith.constant 0 : index
    %c3_164 = arith.constant 3 : index
    %c0_165 = arith.constant 0 : index
    %c21_166 = arith.constant 21 : index
    %102 = vector.load %arg2[%c0_163, %c3_164, %c0_165, %c21_166] : memref<1x8x4x256xf32, #tpu.memory_space<vmem>>, vector<1x1x4x128xf32>
    %103 = vector.shape_cast %102 : vector<1x1x4x128xf32> to vector<4x128xf32>
    %c136 = arith.constant 136 : index
    %c0_167 = arith.constant 0 : index
    %104 = vector.load %arg7[%c136, %c0_167] : memref<360x128xf32, #tpu.memory_space<vmem>>, vector<4x128xf32>
    tpu.vector_store %arg7[%c136, %c0_167], %103 {strides = array<i32>} : memref<360x128xf32, #tpu.memory_space<vmem>>, vector<4x128xf32>,
    %c0_168 = arith.constant 0 : index
    %c3_169 = arith.constant 3 : index
    %c0_170 = arith.constant 0 : index
    %c22_171 = arith.constant 22 : index
    %105 = vector.load %arg2[%c0_168, %c3_169, %c0_170, %c22_171] : memref<1x8x4x256xf32, #tpu.memory_space<vmem>>, vector<1x1x4x128xf32>
    %106 = vector.shape_cast %105 : vector<1x1x4x128xf32> to vector<4x128xf32>
    %c140 = arith.constant 140 : index
    %c0_172 = arith.constant 0 : index
    %107 = vector.load %arg7[%c140, %c0_172] : memref<360x128xf32, #tpu.memory_space<vmem>>, vector<4x128xf32>
    tpu.vector_store %arg7[%c140, %c0_172], %106 {strides = array<i32>} : memref<360x128xf32, #tpu.memory_space<vmem>>, vector<4x128xf32>,
    %c0_173 = arith.constant 0 : index
    %c4_174 = arith.constant 4 : index
    %c0_175 = arith.constant 0 : index
    %c0_176 = arith.constant 0 : index
    %108 = vector.load %arg2[%c0_173, %c4_174, %c0_175, %c0_176] : memref<1x8x4x256xf32, #tpu.memory_space<vmem>>, vector<1x1x4x128xf32>
    %109 = vector.shape_cast %108 : vector<1x1x4x128xf32> to vector<4x128xf32>
    %c144 = arith.constant 144 : index
    %c0_177 = arith.constant 0 : index
    %110 = vector.load %arg7[%c144, %c0_177] : memref<360x128xf32, #tpu.memory_space<vmem>>, vector<4x128xf32>
    tpu.vector_store %arg7[%c144, %c0_177], %109 {strides = array<i32>} : memref<360x128xf32, #tpu.memory_space<vmem>>, vector<4x128xf32>,
    %c0_178 = arith.constant 0 : index
    %c4_179 = arith.constant 4 : index
    %c0_180 = arith.constant 0 : index
    %c1_181 = arith.constant 1 : index
    %111 = vector.load %arg2[%c0_178, %c4_179, %c0_180, %c1_181] : memref<1x8x4x256xf32, #tpu.memory_space<vmem>>, vector<1x1x4x128xf32>
    %112 = vector.shape_cast %111 : vector<1x1x4x128xf32> to vector<4x128xf32>
    %c148 = arith.constant 148 : index
    %c0_182 = arith.constant 0 : index
    %113 = vector.load %arg7[%c148, %c0_182] : memref<360x128xf32, #tpu.memory_space<vmem>>, vector<4x128xf32>
    tpu.vector_store %arg7[%c148, %c0_182], %112 {strides = array<i32>} : memref<360x128xf32, #tpu.memory_space<vmem>>, vector<4x128xf32>,
    %c0_183 = arith.constant 0 : index
    %c4_184 = arith.constant 4 : index
    %c0_185 = arith.constant 0 : index
    %c2_186 = arith.constant 2 : index
    %114 = vector.load %arg2[%c0_183, %c4_184, %c0_185, %c2_186] : memref<1x8x4x256xf32, #tpu.memory_space<vmem>>, vector<1x1x4x128xf32>
    %115 = vector.shape_cast %114 : vector<1x1x4x128xf32> to vector<4x128xf32>
    %c152 = arith.constant 152 : index
    %c0_187 = arith.constant 0 : index
    %116 = vector.load %arg7[%c152, %c0_187] : memref<360x128xf32, #tpu.memory_space<vmem>>, vector<4x128xf32>
    tpu.vector_store %arg7[%c152, %c0_187], %115 {strides = array<i32>} : memref<360x128xf32, #tpu.memory_space<vmem>>, vector<4x128xf32>,
    %c0_188 = arith.constant 0 : index
    %c4_189 = arith.constant 4 : index
    %c0_190 = arith.constant 0 : index
    %c10_191 = arith.constant 10 : index
    %117 = vector.load %arg2[%c0_188, %c4_189, %c0_190, %c10_191] : memref<1x8x4x256xf32, #tpu.memory_space<vmem>>, vector<1x1x4x128xf32>
    %118 = vector.shape_cast %117 : vector<1x1x4x128xf32> to vector<4x128xf32>
    %c156 = arith.constant 156 : index
    %c0_192 = arith.constant 0 : index
    %119 = vector.load %arg7[%c156, %c0_192] : memref<360x128xf32, #tpu.memory_space<vmem>>, vector<4x128xf32>
    tpu.vector_store %arg7[%c156, %c0_192], %118 {strides = array<i32>} : memref<360x128xf32, #tpu.memory_space<vmem>>, vector<4x128xf32>,
    %c0_193 = arith.constant 0 : index
    %c4_194 = arith.constant 4 : index
    %c0_195 = arith.constant 0 : index
    %c11_196 = arith.constant 11 : index
    %120 = vector.load %arg2[%c0_193, %c4_194, %c0_195, %c11_196] : memref<1x8x4x256xf32, #tpu.memory_space<vmem>>, vector<1x1x4x128xf32>
    %121 = vector.shape_cast %120 : vector<1x1x4x128xf32> to vector<4x128xf32>
    %c160 = arith.constant 160 : index
    %c0_197 = arith.constant 0 : index
    %122 = vector.load %arg7[%c160, %c0_197] : memref<360x128xf32, #tpu.memory_space<vmem>>, vector<4x128xf32>
    tpu.vector_store %arg7[%c160, %c0_197], %121 {strides = array<i32>} : memref<360x128xf32, #tpu.memory_space<vmem>>, vector<4x128xf32>,
    %c0_198 = arith.constant 0 : index
    %c4_199 = arith.constant 4 : index
    %c0_200 = arith.constant 0 : index
    %c12_201 = arith.constant 12 : index
    %123 = vector.load %arg2[%c0_198, %c4_199, %c0_200, %c12_201] : memref<1x8x4x256xf32, #tpu.memory_space<vmem>>, vector<1x1x4x128xf32>
    %124 = vector.shape_cast %123 : vector<1x1x4x128xf32> to vector<4x128xf32>
    %c164 = arith.constant 164 : index
    %c0_202 = arith.constant 0 : index
    %125 = vector.load %arg7[%c164, %c0_202] : memref<360x128xf32, #tpu.memory_space<vmem>>, vector<4x128xf32>
    tpu.vector_store %arg7[%c164, %c0_202], %124 {strides = array<i32>} : memref<360x128xf32, #tpu.memory_space<vmem>>, vector<4x128xf32>,
    %c0_203 = arith.constant 0 : index
    %c4_204 = arith.constant 4 : index
    %c0_205 = arith.constant 0 : index
    %c20_206 = arith.constant 20 : index
    %126 = vector.load %arg2[%c0_203, %c4_204, %c0_205, %c20_206] : memref<1x8x4x256xf32, #tpu.memory_space<vmem>>, vector<1x1x4x128xf32>
    %127 = vector.shape_cast %126 : vector<1x1x4x128xf32> to vector<4x128xf32>
    %c168 = arith.constant 168 : index
    %c0_207 = arith.constant 0 : index
    %128 = vector.load %arg7[%c168, %c0_207] : memref<360x128xf32, #tpu.memory_space<vmem>>, vector<4x128xf32>
    tpu.vector_store %arg7[%c168, %c0_207], %127 {strides = array<i32>} : memref<360x128xf32, #tpu.memory_space<vmem>>, vector<4x128xf32>,
    %c0_208 = arith.constant 0 : index
    %c4_209 = arith.constant 4 : index
    %c0_210 = arith.constant 0 : index
    %c21_211 = arith.constant 21 : index
    %129 = vector.load %arg2[%c0_208, %c4_209, %c0_210, %c21_211] : memref<1x8x4x256xf32, #tpu.memory_space<vmem>>, vector<1x1x4x128xf32>
    %130 = vector.shape_cast %129 : vector<1x1x4x128xf32> to vector<4x128xf32>
    %c172 = arith.constant 172 : index
    %c0_212 = arith.constant 0 : index
    %131 = vector.load %arg7[%c172, %c0_212] : memref<360x128xf32, #tpu.memory_space<vmem>>, vector<4x128xf32>
    tpu.vector_store %arg7[%c172, %c0_212], %130 {strides = array<i32>} : memref<360x128xf32, #tpu.memory_space<vmem>>, vector<4x128xf32>,
    %c0_213 = arith.constant 0 : index
    %c4_214 = arith.constant 4 : index
    %c0_215 = arith.constant 0 : index
    %c22_216 = arith.constant 22 : index
    %132 = vector.load %arg2[%c0_213, %c4_214, %c0_215, %c22_216] : memref<1x8x4x256xf32, #tpu.memory_space<vmem>>, vector<1x1x4x128xf32>
    %133 = vector.shape_cast %132 : vector<1x1x4x128xf32> to vector<4x128xf32>
    %c176 = arith.constant 176 : index
    %c0_217 = arith.constant 0 : index
    %134 = vector.load %arg7[%c176, %c0_217] : memref<360x128xf32, #tpu.memory_space<vmem>>, vector<4x128xf32>
    tpu.vector_store %arg7[%c176, %c0_217], %133 {strides = array<i32>} : memref<360x128xf32, #tpu.memory_space<vmem>>, vector<4x128xf32>,
    %c0_218 = arith.constant 0 : index
    %c5 = arith.constant 5 : index
    %c0_219 = arith.constant 0 : index
    %c0_220 = arith.constant 0 : index
    %135 = vector.load %arg2[%c0_218, %c5, %c0_219, %c0_220] : memref<1x8x4x256xf32, #tpu.memory_space<vmem>>, vector<1x1x4x128xf32>
    %136 = vector.shape_cast %135 : vector<1x1x4x128xf32> to vector<4x128xf32>
    %c180 = arith.constant 180 : index
    %c0_221 = arith.constant 0 : index
    %137 = vector.load %arg7[%c180, %c0_221] : memref<360x128xf32, #tpu.memory_space<vmem>>, vector<4x128xf32>
    tpu.vector_store %arg7[%c180, %c0_221], %136 {strides = array<i32>} : memref<360x128xf32, #tpu.memory_space<vmem>>, vector<4x128xf32>,
    %c0_222 = arith.constant 0 : index
    %c5_223 = arith.constant 5 : index
    %c0_224 = arith.constant 0 : index
    %c1_225 = arith.constant 1 : index
    %138 = vector.load %arg2[%c0_222, %c5_223, %c0_224, %c1_225] : memref<1x8x4x256xf32, #tpu.memory_space<vmem>>, vector<1x1x4x128xf32>
    %139 = vector.shape_cast %138 : vector<1x1x4x128xf32> to vector<4x128xf32>
    %c184 = arith.constant 184 : index
    %c0_226 = arith.constant 0 : index
    %140 = vector.load %arg7[%c184, %c0_226] : memref<360x128xf32, #tpu.memory_space<vmem>>, vector<4x128xf32>
    tpu.vector_store %arg7[%c184, %c0_226], %139 {strides = array<i32>} : memref<360x128xf32, #tpu.memory_space<vmem>>, vector<4x128xf32>,
    %c0_227 = arith.constant 0 : index
    %c5_228 = arith.constant 5 : index
    %c0_229 = arith.constant 0 : index
    %c2_230 = arith.constant 2 : index
    %141 = vector.load %arg2[%c0_227, %c5_228, %c0_229, %c2_230] : memref<1x8x4x256xf32, #tpu.memory_space<vmem>>, vector<1x1x4x128xf32>
    %142 = vector.shape_cast %141 : vector<1x1x4x128xf32> to vector<4x128xf32>
    %c188 = arith.constant 188 : index
    %c0_231 = arith.constant 0 : index
    %143 = vector.load %arg7[%c188, %c0_231] : memref<360x128xf32, #tpu.memory_space<vmem>>, vector<4x128xf32>
    tpu.vector_store %arg7[%c188, %c0_231], %142 {strides = array<i32>} : memref<360x128xf32, #tpu.memory_space<vmem>>, vector<4x128xf32>,
    %c0_232 = arith.constant 0 : index
    %c5_233 = arith.constant 5 : index
    %c0_234 = arith.constant 0 : index
    %c10_235 = arith.constant 10 : index
    %144 = vector.load %arg2[%c0_232, %c5_233, %c0_234, %c10_235] : memref<1x8x4x256xf32, #tpu.memory_space<vmem>>, vector<1x1x4x128xf32>
    %145 = vector.shape_cast %144 : vector<1x1x4x128xf32> to vector<4x128xf32>
    %c192 = arith.constant 192 : index
    %c0_236 = arith.constant 0 : index
    %146 = vector.load %arg7[%c192, %c0_236] : memref<360x128xf32, #tpu.memory_space<vmem>>, vector<4x128xf32>
    tpu.vector_store %arg7[%c192, %c0_236], %145 {strides = array<i32>} : memref<360x128xf32, #tpu.memory_space<vmem>>, vector<4x128xf32>,
    %c0_237 = arith.constant 0 : index
    %c5_238 = arith.constant 5 : index
    %c0_239 = arith.constant 0 : index
    %c11_240 = arith.constant 11 : index
    %147 = vector.load %arg2[%c0_237, %c5_238, %c0_239, %c11_240] : memref<1x8x4x256xf32, #tpu.memory_space<vmem>>, vector<1x1x4x128xf32>
    %148 = vector.shape_cast %147 : vector<1x1x4x128xf32> to vector<4x128xf32>
    %c196 = arith.constant 196 : index
    %c0_241 = arith.constant 0 : index
    %149 = vector.load %arg7[%c196, %c0_241] : memref<360x128xf32, #tpu.memory_space<vmem>>, vector<4x128xf32>
    tpu.vector_store %arg7[%c196, %c0_241], %148 {strides = array<i32>} : memref<360x128xf32, #tpu.memory_space<vmem>>, vector<4x128xf32>,
    %c0_242 = arith.constant 0 : index
    %c5_243 = arith.constant 5 : index
    %c0_244 = arith.constant 0 : index
    %c12_245 = arith.constant 12 : index
    %150 = vector.load %arg2[%c0_242, %c5_243, %c0_244, %c12_245] : memref<1x8x4x256xf32, #tpu.memory_space<vmem>>, vector<1x1x4x128xf32>
    %151 = vector.shape_cast %150 : vector<1x1x4x128xf32> to vector<4x128xf32>
    %c200 = arith.constant 200 : index
    %c0_246 = arith.constant 0 : index
    %152 = vector.load %arg7[%c200, %c0_246] : memref<360x128xf32, #tpu.memory_space<vmem>>, vector<4x128xf32>
    tpu.vector_store %arg7[%c200, %c0_246], %151 {strides = array<i32>} : memref<360x128xf32, #tpu.memory_space<vmem>>, vector<4x128xf32>,
    %c0_247 = arith.constant 0 : index
    %c5_248 = arith.constant 5 : index
    %c0_249 = arith.constant 0 : index
    %c20_250 = arith.constant 20 : index
    %153 = vector.load %arg2[%c0_247, %c5_248, %c0_249, %c20_250] : memref<1x8x4x256xf32, #tpu.memory_space<vmem>>, vector<1x1x4x128xf32>
    %154 = vector.shape_cast %153 : vector<1x1x4x128xf32> to vector<4x128xf32>
    %c204 = arith.constant 204 : index
    %c0_251 = arith.constant 0 : index
    %155 = vector.load %arg7[%c204, %c0_251] : memref<360x128xf32, #tpu.memory_space<vmem>>, vector<4x128xf32>
    tpu.vector_store %arg7[%c204, %c0_251], %154 {strides = array<i32>} : memref<360x128xf32, #tpu.memory_space<vmem>>, vector<4x128xf32>,
    %c0_252 = arith.constant 0 : index
    %c5_253 = arith.constant 5 : index
    %c0_254 = arith.constant 0 : index
    %c21_255 = arith.constant 21 : index
    %156 = vector.load %arg2[%c0_252, %c5_253, %c0_254, %c21_255] : memref<1x8x4x256xf32, #tpu.memory_space<vmem>>, vector<1x1x4x128xf32>
    %157 = vector.shape_cast %156 : vector<1x1x4x128xf32> to vector<4x128xf32>
    %c208 = arith.constant 208 : index
    %c0_256 = arith.constant 0 : index
    %158 = vector.load %arg7[%c208, %c0_256] : memref<360x128xf32, #tpu.memory_space<vmem>>, vector<4x128xf32>
    tpu.vector_store %arg7[%c208, %c0_256], %157 {strides = array<i32>} : memref<360x128xf32, #tpu.memory_space<vmem>>, vector<4x128xf32>,
    %c0_257 = arith.constant 0 : index
    %c5_258 = arith.constant 5 : index
    %c0_259 = arith.constant 0 : index
    %c22_260 = arith.constant 22 : index
    %159 = vector.load %arg2[%c0_257, %c5_258, %c0_259, %c22_260] : memref<1x8x4x256xf32, #tpu.memory_space<vmem>>, vector<1x1x4x128xf32>
    %160 = vector.shape_cast %159 : vector<1x1x4x128xf32> to vector<4x128xf32>
    %c212 = arith.constant 212 : index
    %c0_261 = arith.constant 0 : index
    %161 = vector.load %arg7[%c212, %c0_261] : memref<360x128xf32, #tpu.memory_space<vmem>>, vector<4x128xf32>
    tpu.vector_store %arg7[%c212, %c0_261], %160 {strides = array<i32>} : memref<360x128xf32, #tpu.memory_space<vmem>>, vector<4x128xf32>,
    %c0_262 = arith.constant 0 : index
    %c6 = arith.constant 6 : index
    %c0_263 = arith.constant 0 : index
    %c0_264 = arith.constant 0 : index
    %162 = vector.load %arg2[%c0_262, %c6, %c0_263, %c0_264] : memref<1x8x4x256xf32, #tpu.memory_space<vmem>>, vector<1x1x4x128xf32>
    %163 = vector.shape_cast %162 : vector<1x1x4x128xf32> to vector<4x128xf32>
    %c216 = arith.constant 216 : index
    %c0_265 = arith.constant 0 : index
    %164 = vector.load %arg7[%c216, %c0_265] : memref<360x128xf32, #tpu.memory_space<vmem>>, vector<4x128xf32>
    tpu.vector_store %arg7[%c216, %c0_265], %163 {strides = array<i32>} : memref<360x128xf32, #tpu.memory_space<vmem>>, vector<4x128xf32>,
    %c0_266 = arith.constant 0 : index
    %c6_267 = arith.constant 6 : index
    %c0_268 = arith.constant 0 : index
    %c1_269 = arith.constant 1 : index
    %165 = vector.load %arg2[%c0_266, %c6_267, %c0_268, %c1_269] : memref<1x8x4x256xf32, #tpu.memory_space<vmem>>, vector<1x1x4x128xf32>
    %166 = vector.shape_cast %165 : vector<1x1x4x128xf32> to vector<4x128xf32>
    %c220 = arith.constant 220 : index
    %c0_270 = arith.constant 0 : index
    %167 = vector.load %arg7[%c220, %c0_270] : memref<360x128xf32, #tpu.memory_space<vmem>>, vector<4x128xf32>
    tpu.vector_store %arg7[%c220, %c0_270], %166 {strides = array<i32>} : memref<360x128xf32, #tpu.memory_space<vmem>>, vector<4x128xf32>,
    %c0_271 = arith.constant 0 : index
    %c6_272 = arith.constant 6 : index
    %c0_273 = arith.constant 0 : index
    %c2_274 = arith.constant 2 : index
    %168 = vector.load %arg2[%c0_271, %c6_272, %c0_273, %c2_274] : memref<1x8x4x256xf32, #tpu.memory_space<vmem>>, vector<1x1x4x128xf32>
    %169 = vector.shape_cast %168 : vector<1x1x4x128xf32> to vector<4x128xf32>
    %c224 = arith.constant 224 : index
    %c0_275 = arith.constant 0 : index
    %170 = vector.load %arg7[%c224, %c0_275] : memref<360x128xf32, #tpu.memory_space<vmem>>, vector<4x128xf32>
    tpu.vector_store %arg7[%c224, %c0_275], %169 {strides = array<i32>} : memref<360x128xf32, #tpu.memory_space<vmem>>, vector<4x128xf32>,
    %c0_276 = arith.constant 0 : index
    %c6_277 = arith.constant 6 : index
    %c0_278 = arith.constant 0 : index
    %c10_279 = arith.constant 10 : index
    %171 = vector.load %arg2[%c0_276, %c6_277, %c0_278, %c10_279] : memref<1x8x4x256xf32, #tpu.memory_space<vmem>>, vector<1x1x4x128xf32>
    %172 = vector.shape_cast %171 : vector<1x1x4x128xf32> to vector<4x128xf32>
    %c228 = arith.constant 228 : index
    %c0_280 = arith.constant 0 : index
    %173 = vector.load %arg7[%c228, %c0_280] : memref<360x128xf32, #tpu.memory_space<vmem>>, vector<4x128xf32>
    tpu.vector_store %arg7[%c228, %c0_280], %172 {strides = array<i32>} : memref<360x128xf32, #tpu.memory_space<vmem>>, vector<4x128xf32>,
    %c0_281 = arith.constant 0 : index
    %c6_282 = arith.constant 6 : index
    %c0_283 = arith.constant 0 : index
    %c11_284 = arith.constant 11 : index
    %174 = vector.load %arg2[%c0_281, %c6_282, %c0_283, %c11_284] : memref<1x8x4x256xf32, #tpu.memory_space<vmem>>, vector<1x1x4x128xf32>
    %175 = vector.shape_cast %174 : vector<1x1x4x128xf32> to vector<4x128xf32>
    %c232 = arith.constant 232 : index
    %c0_285 = arith.constant 0 : index
    %176 = vector.load %arg7[%c232, %c0_285] : memref<360x128xf32, #tpu.memory_space<vmem>>, vector<4x128xf32>
    tpu.vector_store %arg7[%c232, %c0_285], %175 {strides = array<i32>} : memref<360x128xf32, #tpu.memory_space<vmem>>, vector<4x128xf32>,
    %c0_286 = arith.constant 0 : index
    %c6_287 = arith.constant 6 : index
    %c0_288 = arith.constant 0 : index
    %c12_289 = arith.constant 12 : index
    %177 = vector.load %arg2[%c0_286, %c6_287, %c0_288, %c12_289] : memref<1x8x4x256xf32, #tpu.memory_space<vmem>>, vector<1x1x4x128xf32>
    %178 = vector.shape_cast %177 : vector<1x1x4x128xf32> to vector<4x128xf32>
    %c236 = arith.constant 236 : index
    %c0_290 = arith.constant 0 : index
    %179 = vector.load %arg7[%c236, %c0_290] : memref<360x128xf32, #tpu.memory_space<vmem>>, vector<4x128xf32>
    tpu.vector_store %arg7[%c236, %c0_290], %178 {strides = array<i32>} : memref<360x128xf32, #tpu.memory_space<vmem>>, vector<4x128xf32>,
    %c0_291 = arith.constant 0 : index
    %c6_292 = arith.constant 6 : index
    %c0_293 = arith.constant 0 : index
    %c20_294 = arith.constant 20 : index
    %180 = vector.load %arg2[%c0_291, %c6_292, %c0_293, %c20_294] : memref<1x8x4x256xf32, #tpu.memory_space<vmem>>, vector<1x1x4x128xf32>
    %181 = vector.shape_cast %180 : vector<1x1x4x128xf32> to vector<4x128xf32>
    %c240 = arith.constant 240 : index
    %c0_295 = arith.constant 0 : index
    %182 = vector.load %arg7[%c240, %c0_295] : memref<360x128xf32, #tpu.memory_space<vmem>>, vector<4x128xf32>
    tpu.vector_store %arg7[%c240, %c0_295], %181 {strides = array<i32>} : memref<360x128xf32, #tpu.memory_space<vmem>>, vector<4x128xf32>,
    %c0_296 = arith.constant 0 : index
    %c6_297 = arith.constant 6 : index
    %c0_298 = arith.constant 0 : index
    %c21_299 = arith.constant 21 : index
    %183 = vector.load %arg2[%c0_296, %c6_297, %c0_298, %c21_299] : memref<1x8x4x256xf32, #tpu.memory_space<vmem>>, vector<1x1x4x128xf32>
    %184 = vector.shape_cast %183 : vector<1x1x4x128xf32> to vector<4x128xf32>
    %c244 = arith.constant 244 : index
    %c0_300 = arith.constant 0 : index
    %185 = vector.load %arg7[%c244, %c0_300] : memref<360x128xf32, #tpu.memory_space<vmem>>, vector<4x128xf32>
    tpu.vector_store %arg7[%c244, %c0_300], %184 {strides = array<i32>} : memref<360x128xf32, #tpu.memory_space<vmem>>, vector<4x128xf32>,
    %c0_301 = arith.constant 0 : index
    %c6_302 = arith.constant 6 : index
    %c0_303 = arith.constant 0 : index
    %c22_304 = arith.constant 22 : index
    %186 = vector.load %arg2[%c0_301, %c6_302, %c0_303, %c22_304] : memref<1x8x4x256xf32, #tpu.memory_space<vmem>>, vector<1x1x4x128xf32>
    %187 = vector.shape_cast %186 : vector<1x1x4x128xf32> to vector<4x128xf32>
    %c248 = arith.constant 248 : index
    %c0_305 = arith.constant 0 : index
    %188 = vector.load %arg7[%c248, %c0_305] : memref<360x128xf32, #tpu.memory_space<vmem>>, vector<4x128xf32>
    tpu.vector_store %arg7[%c248, %c0_305], %187 {strides = array<i32>} : memref<360x128xf32, #tpu.memory_space<vmem>>, vector<4x128xf32>,
    %c0_306 = arith.constant 0 : index
    %c7 = arith.constant 7 : index
    %c0_307 = arith.constant 0 : index
    %c0_308 = arith.constant 0 : index
    %189 = vector.load %arg2[%c0_306, %c7, %c0_307, %c0_308] : memref<1x8x4x256xf32, #tpu.memory_space<vmem>>, vector<1x1x4x128xf32>
    %190 = vector.shape_cast %189 : vector<1x1x4x128xf32> to vector<4x128xf32>
    %c252 = arith.constant 252 : index
    %c0_309 = arith.constant 0 : index
    %191 = vector.load %arg7[%c252, %c0_309] : memref<360x128xf32, #tpu.memory_space<vmem>>, vector<4x128xf32>
    tpu.vector_store %arg7[%c252, %c0_309], %190 {strides = array<i32>} : memref<360x128xf32, #tpu.memory_space<vmem>>, vector<4x128xf32>,
    %c0_310 = arith.constant 0 : index
    %c7_311 = arith.constant 7 : index
    %c0_312 = arith.constant 0 : index
    %c1_313 = arith.constant 1 : index
    %192 = vector.load %arg2[%c0_310, %c7_311, %c0_312, %c1_313] : memref<1x8x4x256xf32, #tpu.memory_space<vmem>>, vector<1x1x4x128xf32>
    %193 = vector.shape_cast %192 : vector<1x1x4x128xf32> to vector<4x128xf32>
    %c256 = arith.constant 256 : index
    %c0_314 = arith.constant 0 : index
    %194 = vector.load %arg7[%c256, %c0_314] : memref<360x128xf32, #tpu.memory_space<vmem>>, vector<4x128xf32>
    tpu.vector_store %arg7[%c256, %c0_314], %193 {strides = array<i32>} : memref<360x128xf32, #tpu.memory_space<vmem>>, vector<4x128xf32>,
    %c0_315 = arith.constant 0 : index
    %c7_316 = arith.constant 7 : index
    %c0_317 = arith.constant 0 : index
    %c2_318 = arith.constant 2 : index
    %195 = vector.load %arg2[%c0_315, %c7_316, %c0_317, %c2_318] : memref<1x8x4x256xf32, #tpu.memory_space<vmem>>, vector<1x1x4x128xf32>
    %196 = vector.shape_cast %195 : vector<1x1x4x128xf32> to vector<4x128xf32>
    %c260 = arith.constant 260 : index
    %c0_319 = arith.constant 0 : index
    %197 = vector.load %arg7[%c260, %c0_319] : memref<360x128xf32, #tpu.memory_space<vmem>>, vector<4x128xf32>
    tpu.vector_store %arg7[%c260, %c0_319], %196 {strides = array<i32>} : memref<360x128xf32, #tpu.memory_space<vmem>>, vector<4x128xf32>,
    %c0_320 = arith.constant 0 : index
    %c7_321 = arith.constant 7 : index
    %c0_322 = arith.constant 0 : index
    %c10_323 = arith.constant 10 : index
    %198 = vector.load %arg2[%c0_320, %c7_321, %c0_322, %c10_323] : memref<1x8x4x256xf32, #tpu.memory_space<vmem>>, vector<1x1x4x128xf32>
    %199 = vector.shape_cast %198 : vector<1x1x4x128xf32> to vector<4x128xf32>
    %c264 = arith.constant 264 : index
    %c0_324 = arith.constant 0 : index
    %200 = vector.load %arg7[%c264, %c0_324] : memref<360x128xf32, #tpu.memory_space<vmem>>, vector<4x128xf32>
    tpu.vector_store %arg7[%c264, %c0_324], %199 {strides = array<i32>} : memref<360x128xf32, #tpu.memory_space<vmem>>, vector<4x128xf32>,
    %c0_325 = arith.constant 0 : index
    %c7_326 = arith.constant 7 : index
    %c0_327 = arith.constant 0 : index
    %c11_328 = arith.constant 11 : index
    %201 = vector.load %arg2[%c0_325, %c7_326, %c0_327, %c11_328] : memref<1x8x4x256xf32, #tpu.memory_space<vmem>>, vector<1x1x4x128xf32>
    %202 = vector.shape_cast %201 : vector<1x1x4x128xf32> to vector<4x128xf32>
    %c268 = arith.constant 268 : index
    %c0_329 = arith.constant 0 : index
    %203 = vector.load %arg7[%c268, %c0_329] : memref<360x128xf32, #tpu.memory_space<vmem>>, vector<4x128xf32>
    tpu.vector_store %arg7[%c268, %c0_329], %202 {strides = array<i32>} : memref<360x128xf32, #tpu.memory_space<vmem>>, vector<4x128xf32>,
    %c0_330 = arith.constant 0 : index
    %c7_331 = arith.constant 7 : index
    %c0_332 = arith.constant 0 : index
    %c12_333 = arith.constant 12 : index
    %204 = vector.load %arg2[%c0_330, %c7_331, %c0_332, %c12_333] : memref<1x8x4x256xf32, #tpu.memory_space<vmem>>, vector<1x1x4x128xf32>
    %205 = vector.shape_cast %204 : vector<1x1x4x128xf32> to vector<4x128xf32>
    %c272 = arith.constant 272 : index
    %c0_334 = arith.constant 0 : index
    %206 = vector.load %arg7[%c272, %c0_334] : memref<360x128xf32, #tpu.memory_space<vmem>>, vector<4x128xf32>
    tpu.vector_store %arg7[%c272, %c0_334], %205 {strides = array<i32>} : memref<360x128xf32, #tpu.memory_space<vmem>>, vector<4x128xf32>,
    %c0_335 = arith.constant 0 : index
    %c7_336 = arith.constant 7 : index
    %c0_337 = arith.constant 0 : index
    %c20_338 = arith.constant 20 : index
    %207 = vector.load %arg2[%c0_335, %c7_336, %c0_337, %c20_338] : memref<1x8x4x256xf32, #tpu.memory_space<vmem>>, vector<1x1x4x128xf32>
    %208 = vector.shape_cast %207 : vector<1x1x4x128xf32> to vector<4x128xf32>
    %c276 = arith.constant 276 : index
    %c0_339 = arith.constant 0 : index
    %209 = vector.load %arg7[%c276, %c0_339] : memref<360x128xf32, #tpu.memory_space<vmem>>, vector<4x128xf32>
    tpu.vector_store %arg7[%c276, %c0_339], %208 {strides = array<i32>} : memref<360x128xf32, #tpu.memory_space<vmem>>, vector<4x128xf32>,
    %c0_340 = arith.constant 0 : index
    %c7_341 = arith.constant 7 : index
    %c0_342 = arith.constant 0 : index
    %c21_343 = arith.constant 21 : index
    %210 = vector.load %arg2[%c0_340, %c7_341, %c0_342, %c21_343] : memref<1x8x4x256xf32, #tpu.memory_space<vmem>>, vector<1x1x4x128xf32>
    %211 = vector.shape_cast %210 : vector<1x1x4x128xf32> to vector<4x128xf32>
    %c280 = arith.constant 280 : index
    %c0_344 = arith.constant 0 : index
    %212 = vector.load %arg7[%c280, %c0_344] : memref<360x128xf32, #tpu.memory_space<vmem>>, vector<4x128xf32>
    tpu.vector_store %arg7[%c280, %c0_344], %211 {strides = array<i32>} : memref<360x128xf32, #tpu.memory_space<vmem>>, vector<4x128xf32>,
    %c0_345 = arith.constant 0 : index
    %c7_346 = arith.constant 7 : index
    %c0_347 = arith.constant 0 : index
    %c22_348 = arith.constant 22 : index
    %213 = vector.load %arg2[%c0_345, %c7_346, %c0_347, %c22_348] : memref<1x8x4x256xf32, #tpu.memory_space<vmem>>, vector<1x1x4x128xf32>
    %214 = vector.shape_cast %213 : vector<1x1x4x128xf32> to vector<4x128xf32>
    %c284 = arith.constant 284 : index
    %c0_349 = arith.constant 0 : index
    %215 = vector.load %arg7[%c284, %c0_349] : memref<360x128xf32, #tpu.memory_space<vmem>>, vector<4x128xf32>
    tpu.vector_store %arg7[%c284, %c0_349], %214 {strides = array<i32>} : memref<360x128xf32, #tpu.memory_space<vmem>>, vector<4x128xf32>,
    %c0_350 = arith.constant 0 : index
    %c0_351 = arith.constant 0 : index
    %c0_352 = arith.constant 0 : index
    %c0_353 = arith.constant 0 : index
    %216 = vector.load %arg3[%c0_350, %c0_351, %c0_352, %c0_353] : memref<1x2x4x256xf32, #tpu.memory_space<vmem>>, vector<1x1x4x128xf32>
    %217 = vector.shape_cast %216 : vector<1x1x4x128xf32> to vector<4x128xf32>
    %c288 = arith.constant 288 : index
    %c0_354 = arith.constant 0 : index
    %218 = vector.load %arg7[%c288, %c0_354] : memref<360x128xf32, #tpu.memory_space<vmem>>, vector<4x128xf32>
    tpu.vector_store %arg7[%c288, %c0_354], %217 {strides = array<i32>} : memref<360x128xf32, #tpu.memory_space<vmem>>, vector<4x128xf32>,
    %c0_355 = arith.constant 0 : index
    %c0_356 = arith.constant 0 : index
    %c0_357 = arith.constant 0 : index
    %c1_358 = arith.constant 1 : index
    %219 = vector.load %arg3[%c0_355, %c0_356, %c0_357, %c1_358] : memref<1x2x4x256xf32, #tpu.memory_space<vmem>>, vector<1x1x4x128xf32>
    %220 = vector.shape_cast %219 : vector<1x1x4x128xf32> to vector<4x128xf32>
    %c292 = arith.constant 292 : index
    %c0_359 = arith.constant 0 : index
    %221 = vector.load %arg7[%c292, %c0_359] : memref<360x128xf32, #tpu.memory_space<vmem>>, vector<4x128xf32>
    tpu.vector_store %arg7[%c292, %c0_359], %220 {strides = array<i32>} : memref<360x128xf32, #tpu.memory_space<vmem>>, vector<4x128xf32>,
    %c0_360 = arith.constant 0 : index
    %c0_361 = arith.constant 0 : index
    %c0_362 = arith.constant 0 : index
    %c2_363 = arith.constant 2 : index
    %222 = vector.load %arg3[%c0_360, %c0_361, %c0_362, %c2_363] : memref<1x2x4x256xf32, #tpu.memory_space<vmem>>, vector<1x1x4x128xf32>
    %223 = vector.shape_cast %222 : vector<1x1x4x128xf32> to vector<4x128xf32>
    %c296 = arith.constant 296 : index
    %c0_364 = arith.constant 0 : index
    %224 = vector.load %arg7[%c296, %c0_364] : memref<360x128xf32, #tpu.memory_space<vmem>>, vector<4x128xf32>
    tpu.vector_store %arg7[%c296, %c0_364], %223 {strides = array<i32>} : memref<360x128xf32, #tpu.memory_space<vmem>>, vector<4x128xf32>,
    %c0_365 = arith.constant 0 : index
    %c0_366 = arith.constant 0 : index
    %c0_367 = arith.constant 0 : index
    %c10_368 = arith.constant 10 : index
    %225 = vector.load %arg3[%c0_365, %c0_366, %c0_367, %c10_368] : memref<1x2x4x256xf32, #tpu.memory_space<vmem>>, vector<1x1x4x128xf32>
    %226 = vector.shape_cast %225 : vector<1x1x4x128xf32> to vector<4x128xf32>
    %c300 = arith.constant 300 : index
    %c0_369 = arith.constant 0 : index
    %227 = vector.load %arg7[%c300, %c0_369] : memref<360x128xf32, #tpu.memory_space<vmem>>, vector<4x128xf32>
    tpu.vector_store %arg7[%c300, %c0_369], %226 {strides = array<i32>} : memref<360x128xf32, #tpu.memory_space<vmem>>, vector<4x128xf32>,
    %c0_370 = arith.constant 0 : index
    %c0_371 = arith.constant 0 : index
    %c0_372 = arith.constant 0 : index
    %c11_373 = arith.constant 11 : index
    %228 = vector.load %arg3[%c0_370, %c0_371, %c0_372, %c11_373] : memref<1x2x4x256xf32, #tpu.memory_space<vmem>>, vector<1x1x4x128xf32>
    %229 = vector.shape_cast %228 : vector<1x1x4x128xf32> to vector<4x128xf32>
    %c304 = arith.constant 304 : index
    %c0_374 = arith.constant 0 : index
    %230 = vector.load %arg7[%c304, %c0_374] : memref<360x128xf32, #tpu.memory_space<vmem>>, vector<4x128xf32>
    tpu.vector_store %arg7[%c304, %c0_374], %229 {strides = array<i32>} : memref<360x128xf32, #tpu.memory_space<vmem>>, vector<4x128xf32>,
    %c0_375 = arith.constant 0 : index
    %c0_376 = arith.constant 0 : index
    %c0_377 = arith.constant 0 : index
    %c12_378 = arith.constant 12 : index
    %231 = vector.load %arg3[%c0_375, %c0_376, %c0_377, %c12_378] : memref<1x2x4x256xf32, #tpu.memory_space<vmem>>, vector<1x1x4x128xf32>
    %232 = vector.shape_cast %231 : vector<1x1x4x128xf32> to vector<4x128xf32>
    %c308 = arith.constant 308 : index
    %c0_379 = arith.constant 0 : index
    %233 = vector.load %arg7[%c308, %c0_379] : memref<360x128xf32, #tpu.memory_space<vmem>>, vector<4x128xf32>
    tpu.vector_store %arg7[%c308, %c0_379], %232 {strides = array<i32>} : memref<360x128xf32, #tpu.memory_space<vmem>>, vector<4x128xf32>,
    %c0_380 = arith.constant 0 : index
    %c0_381 = arith.constant 0 : index
    %c0_382 = arith.constant 0 : index
    %c20_383 = arith.constant 20 : index
    %234 = vector.load %arg3[%c0_380, %c0_381, %c0_382, %c20_383] : memref<1x2x4x256xf32, #tpu.memory_space<vmem>>, vector<1x1x4x128xf32>
    %235 = vector.shape_cast %234 : vector<1x1x4x128xf32> to vector<4x128xf32>
    %c312 = arith.constant 312 : index
    %c0_384 = arith.constant 0 : index
    %236 = vector.load %arg7[%c312, %c0_384] : memref<360x128xf32, #tpu.memory_space<vmem>>, vector<4x128xf32>
    tpu.vector_store %arg7[%c312, %c0_384], %235 {strides = array<i32>} : memref<360x128xf32, #tpu.memory_space<vmem>>, vector<4x128xf32>,
    %c0_385 = arith.constant 0 : index
    %c0_386 = arith.constant 0 : index
    %c0_387 = arith.constant 0 : index
    %c21_388 = arith.constant 21 : index
    %237 = vector.load %arg3[%c0_385, %c0_386, %c0_387, %c21_388] : memref<1x2x4x256xf32, #tpu.memory_space<vmem>>, vector<1x1x4x128xf32>
    %238 = vector.shape_cast %237 : vector<1x1x4x128xf32> to vector<4x128xf32>
    %c316 = arith.constant 316 : index
    %c0_389 = arith.constant 0 : index
    %239 = vector.load %arg7[%c316, %c0_389] : memref<360x128xf32, #tpu.memory_space<vmem>>, vector<4x128xf32>
    tpu.vector_store %arg7[%c316, %c0_389], %238 {strides = array<i32>} : memref<360x128xf32, #tpu.memory_space<vmem>>, vector<4x128xf32>,
    %c0_390 = arith.constant 0 : index
    %c0_391 = arith.constant 0 : index
    %c0_392 = arith.constant 0 : index
    %c22_393 = arith.constant 22 : index
    %240 = vector.load %arg3[%c0_390, %c0_391, %c0_392, %c22_393] : memref<1x2x4x256xf32, #tpu.memory_space<vmem>>, vector<1x1x4x128xf32>
    %241 = vector.shape_cast %240 : vector<1x1x4x128xf32> to vector<4x128xf32>
    %c320 = arith.constant 320 : index
    %c0_394 = arith.constant 0 : index
    %242 = vector.load %arg7[%c320, %c0_394] : memref<360x128xf32, #tpu.memory_space<vmem>>, vector<4x128xf32>
    tpu.vector_store %arg7[%c320, %c0_394], %241 {strides = array<i32>} : memref<360x128xf32, #tpu.memory_space<vmem>>, vector<4x128xf32>,
    %c0_395 = arith.constant 0 : index
    %c1_396 = arith.constant 1 : index
    %c0_397 = arith.constant 0 : index
    %c0_398 = arith.constant 0 : index
    %243 = vector.load %arg3[%c0_395, %c1_396, %c0_397, %c0_398] : memref<1x2x4x256xf32, #tpu.memory_space<vmem>>, vector<1x1x4x128xf32>
    %244 = vector.shape_cast %243 : vector<1x1x4x128xf32> to vector<4x128xf32>
    %c324 = arith.constant 324 : index
    %c0_399 = arith.constant 0 : index
    %245 = vector.load %arg7[%c324, %c0_399] : memref<360x128xf32, #tpu.memory_space<vmem>>, vector<4x128xf32>
    tpu.vector_store %arg7[%c324, %c0_399], %244 {strides = array<i32>} : memref<360x128xf32, #tpu.memory_space<vmem>>, vector<4x128xf32>,
    %c0_400 = arith.constant 0 : index
    %c1_401 = arith.constant 1 : index
    %c0_402 = arith.constant 0 : index
    %c1_403 = arith.constant 1 : index
    %246 = vector.load %arg3[%c0_400, %c1_401, %c0_402, %c1_403] : memref<1x2x4x256xf32, #tpu.memory_space<vmem>>, vector<1x1x4x128xf32>
    %247 = vector.shape_cast %246 : vector<1x1x4x128xf32> to vector<4x128xf32>
    %c328 = arith.constant 328 : index
    %c0_404 = arith.constant 0 : index
    %248 = vector.load %arg7[%c328, %c0_404] : memref<360x128xf32, #tpu.memory_space<vmem>>, vector<4x128xf32>
    tpu.vector_store %arg7[%c328, %c0_404], %247 {strides = array<i32>} : memref<360x128xf32, #tpu.memory_space<vmem>>, vector<4x128xf32>,
    %c0_405 = arith.constant 0 : index
    %c1_406 = arith.constant 1 : index
    %c0_407 = arith.constant 0 : index
    %c2_408 = arith.constant 2 : index
    %249 = vector.load %arg3[%c0_405, %c1_406, %c0_407, %c2_408] : memref<1x2x4x256xf32, #tpu.memory_space<vmem>>, vector<1x1x4x128xf32>
    %250 = vector.shape_cast %249 : vector<1x1x4x128xf32> to vector<4x128xf32>
    %c332 = arith.constant 332 : index
    %c0_409 = arith.constant 0 : index
    %251 = vector.load %arg7[%c332, %c0_409] : memref<360x128xf32, #tpu.memory_space<vmem>>, vector<4x128xf32>
    tpu.vector_store %arg7[%c332, %c0_409], %250 {strides = array<i32>} : memref<360x128xf32, #tpu.memory_space<vmem>>, vector<4x128xf32>,
    %c0_410 = arith.constant 0 : index
    %c1_411 = arith.constant 1 : index
    %c0_412 = arith.constant 0 : index
    %c10_413 = arith.constant 10 : index
    %252 = vector.load %arg3[%c0_410, %c1_411, %c0_412, %c10_413] : memref<1x2x4x256xf32, #tpu.memory_space<vmem>>, vector<1x1x4x128xf32>
    %253 = vector.shape_cast %252 : vector<1x1x4x128xf32> to vector<4x128xf32>
    %c336 = arith.constant 336 : index
    %c0_414 = arith.constant 0 : index
    %254 = vector.load %arg7[%c336, %c0_414] : memref<360x128xf32, #tpu.memory_space<vmem>>, vector<4x128xf32>
    tpu.vector_store %arg7[%c336, %c0_414], %253 {strides = array<i32>} : memref<360x128xf32, #tpu.memory_space<vmem>>, vector<4x128xf32>,
    %c0_415 = arith.constant 0 : index
    %c1_416 = arith.constant 1 : index
    %c0_417 = arith.constant 0 : index
    %c11_418 = arith.constant 11 : index
    %255 = vector.load %arg3[%c0_415, %c1_416, %c0_417, %c11_418] : memref<1x2x4x256xf32, #tpu.memory_space<vmem>>, vector<1x1x4x128xf32>
    %256 = vector.shape_cast %255 : vector<1x1x4x128xf32> to vector<4x128xf32>
    %c340 = arith.constant 340 : index
    %c0_419 = arith.constant 0 : index
    %257 = vector.load %arg7[%c340, %c0_419] : memref<360x128xf32, #tpu.memory_space<vmem>>, vector<4x128xf32>
    tpu.vector_store %arg7[%c340, %c0_419], %256 {strides = array<i32>} : memref<360x128xf32, #tpu.memory_space<vmem>>, vector<4x128xf32>,
    %c0_420 = arith.constant 0 : index
    %c1_421 = arith.constant 1 : index
    %c0_422 = arith.constant 0 : index
    %c12_423 = arith.constant 12 : index
    %258 = vector.load %arg3[%c0_420, %c1_421, %c0_422, %c12_423] : memref<1x2x4x256xf32, #tpu.memory_space<vmem>>, vector<1x1x4x128xf32>
    %259 = vector.shape_cast %258 : vector<1x1x4x128xf32> to vector<4x128xf32>
    %c344 = arith.constant 344 : index
    %c0_424 = arith.constant 0 : index
    %260 = vector.load %arg7[%c344, %c0_424] : memref<360x128xf32, #tpu.memory_space<vmem>>, vector<4x128xf32>
    tpu.vector_store %arg7[%c344, %c0_424], %259 {strides = array<i32>} : memref<360x128xf32, #tpu.memory_space<vmem>>, vector<4x128xf32>,
    %c0_425 = arith.constant 0 : index
    %c1_426 = arith.constant 1 : index
    %c0_427 = arith.constant 0 : index
    %c20_428 = arith.constant 20 : index
    %261 = vector.load %arg3[%c0_425, %c1_426, %c0_427, %c20_428] : memref<1x2x4x256xf32, #tpu.memory_space<vmem>>, vector<1x1x4x128xf32>
    %262 = vector.shape_cast %261 : vector<1x1x4x128xf32> to vector<4x128xf32>
    %c348 = arith.constant 348 : index
    %c0_429 = arith.constant 0 : index
    %263 = vector.load %arg7[%c348, %c0_429] : memref<360x128xf32, #tpu.memory_space<vmem>>, vector<4x128xf32>
    tpu.vector_store %arg7[%c348, %c0_429], %262 {strides = array<i32>} : memref<360x128xf32, #tpu.memory_space<vmem>>, vector<4x128xf32>,
    %c0_430 = arith.constant 0 : index
    %c1_431 = arith.constant 1 : index
    %c0_432 = arith.constant 0 : index
    %c21_433 = arith.constant 21 : index
    %264 = vector.load %arg3[%c0_430, %c1_431, %c0_432, %c21_433] : memref<1x2x4x256xf32, #tpu.memory_space<vmem>>, vector<1x1x4x128xf32>
    %265 = vector.shape_cast %264 : vector<1x1x4x128xf32> to vector<4x128xf32>
    %c352 = arith.constant 352 : index
    %c0_434 = arith.constant 0 : index
    %266 = vector.load %arg7[%c352, %c0_434] : memref<360x128xf32, #tpu.memory_space<vmem>>, vector<4x128xf32>
    tpu.vector_store %arg7[%c352, %c0_434], %265 {strides = array<i32>} : memref<360x128xf32, #tpu.memory_space<vmem>>, vector<4x128xf32>,
    %c0_435 = arith.constant 0 : index
    %c1_436 = arith.constant 1 : index
    %c0_437 = arith.constant 0 : index
    %c22_438 = arith.constant 22 : index
    %267 = vector.load %arg3[%c0_435, %c1_436, %c0_437, %c22_438] : memref<1x2x4x256xf32, #tpu.memory_space<vmem>>, vector<1x1x4x128xf32>
    %268 = vector.shape_cast %267 : vector<1x1x4x128xf32> to vector<4x128xf32>
    %c356 = arith.constant 356 : index
    %c0_439 = arith.constant 0 : index
    %269 = vector.load %arg7[%c356, %c0_439] : memref<360x128xf32, #tpu.memory_space<vmem>>, vector<4x128xf32>
    tpu.vector_store %arg7[%c356, %c0_439], %268 {strides = array<i32>} : memref<360x128xf32, #tpu.memory_space<vmem>>, vector<4x128xf32>,
    %c0_440 = arith.constant 0 : index
    %c0_441 = arith.constant 0 : index
    %270 = vector.load %arg4[%c0_440, %c0_441] : memref<8x108xf32, #tpu.memory_space<vmem>>, vector<8x108xf32>
    %c0_442 = arith.constant 0 : index
    %c0_443 = arith.constant 0 : index
    %271 = vector.load %arg5[%c0_442, %c0_443] : memref<8x1xf32, #tpu.memory_space<vmem>>, vector<8x1xf32>
    %c0_444 = arith.constant 0 : index
    %c0_445 = arith.constant 0 : index
    %272 = vector.load %arg7[%c0_444, %c0_445] : memref<360x128xf32, #tpu.memory_space<vmem>>, vector<108x128xf32>
    %cst = arith.constant dense<0.000000e+00> : vector<8x128xf32>
    %273 = tpu.matmul %270, %272, %cst {dimension_numbers = #tpu.dot_dimension_numbers<[1], [0], [0], [1], [0, 0, 1, 1], [], []>} : vector<8x108xf32>, vector<108x128xf32>, vector<8x128xf32> -> vector<8x128xf32>
    %274 = vector.broadcast %271 : vector<8x1xf32> to vector<8x128xf32>
    %275 = arith.addf %273, %274 : vector<8x128xf32>
    %c0_446 = arith.constant 0 : index
    %c0_447 = arith.constant 0 : index
    %c0_448 = arith.constant 0 : index
    %c0_449 = arith.constant 0 : index
    %276 = vector.load %arg6[%c0_446, %c0_447, %c0_448, %c0_449] : memref<1x8x8x128xf32, #tpu.memory_space<vmem>>, vector<1x1x8x128xf32>
    %277 = vector.shape_cast %276 : vector<1x1x8x128xf32> to vector<8x128xf32>
    %278 = vector.shape_cast %275 : vector<8x128xf32> to vector<1x1x8x128xf32>
    tpu.vector_store %arg6[%c0_446, %c0_447, %c0_448, %c0_449], %278 {strides = array<i32>} : memref<1x8x8x128xf32, #tpu.memory_space<vmem>>, vector<1x1x8x128xf32>,
    %c36_450 = arith.constant 36 : index
    %c0_451 = arith.constant 0 : index
    %279 = vector.load %arg7[%c36_450, %c0_451] : memref<360x128xf32, #tpu.memory_space<vmem>>, vector<108x128xf32>
    %cst_452 = arith.constant dense<0.000000e+00> : vector<8x128xf32>
    %280 = tpu.matmul %270, %279, %cst_452 {dimension_numbers = #tpu.dot_dimension_numbers<[1], [0], [0], [1], [0, 0, 1, 1], [], []>} : vector<8x108xf32>, vector<108x128xf32>, vector<8x128xf32> -> vector<8x128xf32>
    %281 = vector.broadcast %271 : vector<8x1xf32> to vector<8x128xf32>
    %282 = arith.addf %280, %281 : vector<8x128xf32>
    %c0_453 = arith.constant 0 : index
    %c1_454 = arith.constant 1 : index
    %c0_455 = arith.constant 0 : index
    %c0_456 = arith.constant 0 : index
    %283 = vector.load %arg6[%c0_453, %c1_454, %c0_455, %c0_456] : memref<1x8x8x128xf32, #tpu.memory_space<vmem>>, vector<1x1x8x128xf32>
    %284 = vector.shape_cast %283 : vector<1x1x8x128xf32> to vector<8x128xf32>
    %285 = vector.shape_cast %282 : vector<8x128xf32> to vector<1x1x8x128xf32>
    tpu.vector_store %arg6[%c0_453, %c1_454, %c0_455, %c0_456], %285 {strides = array<i32>} : memref<1x8x8x128xf32, #tpu.memory_space<vmem>>, vector<1x1x8x128xf32>,
    %c72_457 = arith.constant 72 : index
    %c0_458 = arith.constant 0 : index
    %286 = vector.load %arg7[%c72_457, %c0_458] : memref<360x128xf32, #tpu.memory_space<vmem>>, vector<108x128xf32>
    %cst_459 = arith.constant dense<0.000000e+00> : vector<8x128xf32>
    %287 = tpu.matmul %270, %286, %cst_459 {dimension_numbers = #tpu.dot_dimension_numbers<[1], [0], [0], [1], [0, 0, 1, 1], [], []>} : vector<8x108xf32>, vector<108x128xf32>, vector<8x128xf32> -> vector<8x128xf32>
    %288 = vector.broadcast %271 : vector<8x1xf32> to vector<8x128xf32>
    %289 = arith.addf %287, %288 : vector<8x128xf32>
    %c0_460 = arith.constant 0 : index
    %c2_461 = arith.constant 2 : index
    %c0_462 = arith.constant 0 : index
    %c0_463 = arith.constant 0 : index
    %290 = vector.load %arg6[%c0_460, %c2_461, %c0_462, %c0_463] : memref<1x8x8x128xf32, #tpu.memory_space<vmem>>, vector<1x1x8x128xf32>
    %291 = vector.shape_cast %290 : vector<1x1x8x128xf32> to vector<8x128xf32>
    %292 = vector.shape_cast %289 : vector<8x128xf32> to vector<1x1x8x128xf32>
    tpu.vector_store %arg6[%c0_460, %c2_461, %c0_462, %c0_463], %292 {strides = array<i32>} : memref<1x8x8x128xf32, #tpu.memory_space<vmem>>, vector<1x1x8x128xf32>,
    %c108_464 = arith.constant 108 : index
    %c0_465 = arith.constant 0 : index
    %293 = vector.load %arg7[%c108_464, %c0_465] : memref<360x128xf32, #tpu.memory_space<vmem>>, vector<108x128xf32>
    %cst_466 = arith.constant dense<0.000000e+00> : vector<8x128xf32>
    %294 = tpu.matmul %270, %293, %cst_466 {dimension_numbers = #tpu.dot_dimension_numbers<[1], [0], [0], [1], [0, 0, 1, 1], [], []>} : vector<8x108xf32>, vector<108x128xf32>, vector<8x128xf32> -> vector<8x128xf32>
    %295 = vector.broadcast %271 : vector<8x1xf32> to vector<8x128xf32>
    %296 = arith.addf %294, %295 : vector<8x128xf32>
    %c0_467 = arith.constant 0 : index
    %c3_468 = arith.constant 3 : index
    %c0_469 = arith.constant 0 : index
    %c0_470 = arith.constant 0 : index
    %297 = vector.load %arg6[%c0_467, %c3_468, %c0_469, %c0_470] : memref<1x8x8x128xf32, #tpu.memory_space<vmem>>, vector<1x1x8x128xf32>
    %298 = vector.shape_cast %297 : vector<1x1x8x128xf32> to vector<8x128xf32>
    %299 = vector.shape_cast %296 : vector<8x128xf32> to vector<1x1x8x128xf32>
    tpu.vector_store %arg6[%c0_467, %c3_468, %c0_469, %c0_470], %299 {strides = array<i32>} : memref<1x8x8x128xf32, #tpu.memory_space<vmem>>, vector<1x1x8x128xf32>,
    %c144_471 = arith.constant 144 : index
    %c0_472 = arith.constant 0 : index
    %300 = vector.load %arg7[%c144_471, %c0_472] : memref<360x128xf32, #tpu.memory_space<vmem>>, vector<108x128xf32>
    %cst_473 = arith.constant dense<0.000000e+00> : vector<8x128xf32>
    %301 = tpu.matmul %270, %300, %cst_473 {dimension_numbers = #tpu.dot_dimension_numbers<[1], [0], [0], [1], [0, 0, 1, 1], [], []>} : vector<8x108xf32>, vector<108x128xf32>, vector<8x128xf32> -> vector<8x128xf32>
    %302 = vector.broadcast %271 : vector<8x1xf32> to vector<8x128xf32>
    %303 = arith.addf %301, %302 : vector<8x128xf32>
    %c0_474 = arith.constant 0 : index
    %c4_475 = arith.constant 4 : index
    %c0_476 = arith.constant 0 : index
    %c0_477 = arith.constant 0 : index
    %304 = vector.load %arg6[%c0_474, %c4_475, %c0_476, %c0_477] : memref<1x8x8x128xf32, #tpu.memory_space<vmem>>, vector<1x1x8x128xf32>
    %305 = vector.shape_cast %304 : vector<1x1x8x128xf32> to vector<8x128xf32>
    %306 = vector.shape_cast %303 : vector<8x128xf32> to vector<1x1x8x128xf32>
    tpu.vector_store %arg6[%c0_474, %c4_475, %c0_476, %c0_477], %306 {strides = array<i32>} : memref<1x8x8x128xf32, #tpu.memory_space<vmem>>, vector<1x1x8x128xf32>,
    %c180_478 = arith.constant 180 : index
    %c0_479 = arith.constant 0 : index
    %307 = vector.load %arg7[%c180_478, %c0_479] : memref<360x128xf32, #tpu.memory_space<vmem>>, vector<108x128xf32>
    %cst_480 = arith.constant dense<0.000000e+00> : vector<8x128xf32>
    %308 = tpu.matmul %270, %307, %cst_480 {dimension_numbers = #tpu.dot_dimension_numbers<[1], [0], [0], [1], [0, 0, 1, 1], [], []>} : vector<8x108xf32>, vector<108x128xf32>, vector<8x128xf32> -> vector<8x128xf32>
    %309 = vector.broadcast %271 : vector<8x1xf32> to vector<8x128xf32>
    %310 = arith.addf %308, %309 : vector<8x128xf32>
    %c0_481 = arith.constant 0 : index
    %c5_482 = arith.constant 5 : index
    %c0_483 = arith.constant 0 : index
    %c0_484 = arith.constant 0 : index
    %311 = vector.load %arg6[%c0_481, %c5_482, %c0_483, %c0_484] : memref<1x8x8x128xf32, #tpu.memory_space<vmem>>, vector<1x1x8x128xf32>
    %312 = vector.shape_cast %311 : vector<1x1x8x128xf32> to vector<8x128xf32>
    %313 = vector.shape_cast %310 : vector<8x128xf32> to vector<1x1x8x128xf32>
    tpu.vector_store %arg6[%c0_481, %c5_482, %c0_483, %c0_484], %313 {strides = array<i32>} : memref<1x8x8x128xf32, #tpu.memory_space<vmem>>, vector<1x1x8x128xf32>,
    %c216_485 = arith.constant 216 : index
    %c0_486 = arith.constant 0 : index
    %314 = vector.load %arg7[%c216_485, %c0_486] : memref<360x128xf32, #tpu.memory_space<vmem>>, vector<108x128xf32>
    %cst_487 = arith.constant dense<0.000000e+00> : vector<8x128xf32>
    %315 = tpu.matmul %270, %314, %cst_487 {dimension_numbers = #tpu.dot_dimension_numbers<[1], [0], [0], [1], [0, 0, 1, 1], [], []>} : vector<8x108xf32>, vector<108x128xf32>, vector<8x128xf32> -> vector<8x128xf32>
    %316 = vector.broadcast %271 : vector<8x1xf32> to vector<8x128xf32>
    %317 = arith.addf %315, %316 : vector<8x128xf32>
    %c0_488 = arith.constant 0 : index
    %c6_489 = arith.constant 6 : index
    %c0_490 = arith.constant 0 : index
    %c0_491 = arith.constant 0 : index
    %318 = vector.load %arg6[%c0_488, %c6_489, %c0_490, %c0_491] : memref<1x8x8x128xf32, #tpu.memory_space<vmem>>, vector<1x1x8x128xf32>
    %319 = vector.shape_cast %318 : vector<1x1x8x128xf32> to vector<8x128xf32>
    %320 = vector.shape_cast %317 : vector<8x128xf32> to vector<1x1x8x128xf32>
    tpu.vector_store %arg6[%c0_488, %c6_489, %c0_490, %c0_491], %320 {strides = array<i32>} : memref<1x8x8x128xf32, #tpu.memory_space<vmem>>, vector<1x1x8x128xf32>,
    %c252_492 = arith.constant 252 : index
    %c0_493 = arith.constant 0 : index
    %321 = vector.load %arg7[%c252_492, %c0_493] : memref<360x128xf32, #tpu.memory_space<vmem>>, vector<108x128xf32>
    %cst_494 = arith.constant dense<0.000000e+00> : vector<8x128xf32>
    %322 = tpu.matmul %270, %321, %cst_494 {dimension_numbers = #tpu.dot_dimension_numbers<[1], [0], [0], [1], [0, 0, 1, 1], [], []>} : vector<8x108xf32>, vector<108x128xf32>, vector<8x128xf32> -> vector<8x128xf32>
    %323 = vector.broadcast %271 : vector<8x1xf32> to vector<8x128xf32>
    %324 = arith.addf %322, %323 : vector<8x128xf32>
    %c0_495 = arith.constant 0 : index
    %c7_496 = arith.constant 7 : index
    %c0_497 = arith.constant 0 : index
    %c0_498 = arith.constant 0 : index
    %325 = vector.load %arg6[%c0_495, %c7_496, %c0_497, %c0_498] : memref<1x8x8x128xf32, #tpu.memory_space<vmem>>, vector<1x1x8x128xf32>
    %326 = vector.shape_cast %325 : vector<1x1x8x128xf32> to vector<8x128xf32>
    %327 = vector.shape_cast %324 : vector<8x128xf32> to vector<1x1x8x128xf32>
    tpu.vector_store %arg6[%c0_495, %c7_496, %c0_497, %c0_498], %327 {strides = array<i32>} : memref<1x8x8x128xf32, #tpu.memory_space<vmem>>, vector<1x1x8x128xf32>,
    return
  }
  func.func @transform_0(%arg0: i32, %arg1: i32) -> (i32, i32, i32, i32) {
    %c0_i32 = arith.constant 0 : i32
    %c0_i32_0 = arith.constant 0 : i32
    %c0_i32_1 = arith.constant 0 : i32
    return %arg0, %arg1, %c0_i32, %c0_i32_0 : i32, i32, i32, i32
  }
  func.func @transform_1(%arg0: i32, %arg1: i32) -> (i32, i32, i32, i32) {
    %c1_i32 = arith.constant 1 : i32
    %0 = arith.addi %arg1, %c1_i32 : i32
    %c4_i32 = arith.constant 4 : i32
    %1 = arith.muli %0, %c4_i32 : i32
    %c0_i32 = arith.constant 0 : i32
    %c0_i32_0 = arith.constant 0 : i32
    %c0_i32_1 = arith.constant 0 : i32
    return %arg0, %1, %c0_i32, %c0_i32_0 : i32, i32, i32, i32
  }
  func.func @transform_2(%arg0: i32, %arg1: i32) -> (i32, i32) {
    %c0_i32 = arith.constant 0 : i32
    %c0_i32_0 = arith.constant 0 : i32
    %c0_i32_1 = arith.constant 0 : i32
    return %c0_i32, %c0_i32_0 : i32, i32
  }
  func.func @transform_3(%arg0: i32, %arg1: i32) -> (i32, i32) {
    %c0_i32 = arith.constant 0 : i32
    %c0_i32_0 = arith.constant 0 : i32
    %c0_i32_1 = arith.constant 0 : i32
    return %c0_i32, %c0_i32_0 : i32, i32
  }
  func.func @transform_4(%arg0: i32, %arg1: i32) -> (i32, i32, i32, i32) {
    %c0_i32 = arith.constant 0 : i32
    %c0_i32_0 = arith.constant 0 : i32
    %c0_i32_1 = arith.constant 0 : i32
    return %arg0, %arg1, %c0_i32, %c0_i32_0 : i32, i32, i32, i32
  }
}

</mosaic_0001>

<llo_original>
// kernel: reflect_conv3d_forward.1
$region0: #{reflect_conv3d_forward.1}
  #allocation0 [shape = 'u32[]', space=smem, size = 0x4, offset = 0x4, fixed_abs, tag = 'smem constant byte address 0x4 - core index']
  #allocation1 [shape = 'u32[144,128]{1,0:T(1,128)}', space=vmem, size = 0x12000, scoped, tag = 'internal scratch']
  #allocation2 [shape = 'f32[360,128]{1,0:T(8,128)}', space=vmem, size = 0x2d000, scoped, tag = 'scratch operand']
  %s0 = inlined_call_operand.vmem [shape: f32[2,10,4,256], index: 0, kind: input, shape index: {}, may-alias: {0,1}]
  %s1 = inlined_call_operand.vmem [shape: f32[2,10,4,256], index: 1, kind: input, shape index: {}, may-alias: {0,1}]
  %s2 = inlined_call_operand.vmem [shape: f32[8,108], index: 2, kind: input, shape index: {}]
  %s3 = inlined_call_operand.vmem [shape: f32[8,1], index: 3, kind: input, shape index: {}]
  %s4 = inlined_call_operand.vmem [shape: f32[2,8,8,128], index: 4, kind: output, shape index: {}]
  %s5 = sld [smem:[#allocation0]]
  $region49: #{reflect_conv3d_forward.1} parent=0
    _
  %s7 = ssub.s32 1, %s5
  %s8 = scalar_select 0, %s7, %s5
  loop: start=0, step=1, limit=4
  $region2: #{reflect_conv3d_forward.1} parent=0 // loop_pre_header
    _
  $region3: #{reflect_conv3d_forward.1} parent=0 // loop_header
    %s10 = sphi 0, %s14
    %p11 = scmp.ge.s32.totalorder %s10, 4
    %s17 = sphi 0, %s29
    %s18 = sphi 0, %s25
    %s19 = sphi 0, %s17
    %s20 = sphi 0, %s18
    %s21 = sphi 0, %s19
    %s22 = sphi 0, %s20
    %s34 = sphi 0, %s36
    %s37 = sphi 0, %s34
    %s38 = sphi 0, %s37
    %s54 = sphi 0, %s38
    %s66 = sphi 0, %s68
    %s69 = sphi 0, %s66
    %s70 = sphi 0, %s69
    %s86 = sphi 0, %s70
    %s90 = sphi 0, %s90
    %s92 = sphi 0, %s90
    %s93 = sphi 0, %s92
    %s107 = sphi 0, %s93
    %s111 = sphi 0, %s111
    %s113 = sphi 0, %s111
    %s114 = sphi 0, %s113
    %s128 = sphi 0, %s114
    %s136 = sphi 0, %s138
    %s139 = sphi 0, %s136
    %s140 = sphi 0, %s139
    %s156 = sphi 0, %s140
  $region4: #{reflect_conv3d_forward.1} parent=0 // loop_header_branch
    %13 = sbr.rel (%p11) target = $region8
  $region5: #{reflect_conv3d_forward.1} parent=0 // loop_body
    %s15 = ssub.s32 %s10, 1
    %s16 = ssub.s32 %s10, 2
    %s23 = sadd.s32 1, %s18
    %p24 = scmp.ge.s32.totalorder %s23, 1
    %s25 = scalar_select %p24, 0, %s23
    %s26 = sadd.s32 1, %s17
    %s27 = scalar_select %p24, %s26, %s17
    %p28 = scmp.ge.s32.totalorder %s27, 2
    %s29 = scalar_select %p28, 0, %s27
    %s30 = ssub.s32 %s17, %s29
    %s31 = ssub.s32 %s18, %s25
    %s32 = sor.u32 %s30, %s31
    %p33 = scmp.eq.s32.totalorder %s32, 0
    %s35 = sadd.s32 %s34, 1
    %s36 = scalar_select %p33, %s34, %s35
    %p39 = pneg %p33
    %p40 = scmp.eq.s32.totalorder %s10, 1
    %p41 = por %p39, %p40
    %p42 = scmp.ne.s32.totalorder %s34, %s37
    %p43 = scmp.eq.s32.totalorder %s10, 0
    %p44 = por %p42, %p43
    %p45 = scmp.ne.s32.totalorder %s34, %s37
    %p46 = scmp.eq.s32.totalorder %s15, 1
    %p47 = por %p45, %p46
    %p48 = scmp.ne.s32.totalorder %s37, %s38
    %p49 = scmp.eq.s32.totalorder %s15, 0
    %p50 = por %p48, %p49
    %p51 = scmp.ne.s32.totalorder %s37, %s38
    %p52 = scmp.eq.s32.totalorder %s16, 1
    %p53 = por %p51, %p52
    %p55 = scmp.ne.s32.totalorder %s38, %s54
    %p56 = scmp.eq.s32.totalorder %s16, 0
    %p57 = por %p55, %p56
    %s58 = sadd.s32 %s18, 1
    %s59 = smul.u32 %s58, 4
    %s60 = sadd.s32 %s25, 1
    %s61 = smul.u32 %s60, 4
    %s62 = ssub.s32 %s17, %s29
    %s63 = ssub.s32 %s59, %s61
    %s64 = sor.u32 %s62, %s63
    %p65 = scmp.eq.s32.totalorder %s64, 0
    %s67 = sadd.s32 %s66, 1
    %s68 = scalar_select %p65, %s66, %s67
    %p71 = pneg %p65
    %p72 = scmp.eq.s32.totalorder %s10, 1
    %p73 = por %p71, %p72
    %p74 = scmp.ne.s32.totalorder %s66, %s69
    %p75 = scmp.eq.s32.totalorder %s10, 0
    %p76 = por %p74, %p75
    %p77 = scmp.ne.s32.totalorder %s66, %s69
    %p78 = scmp.eq.s32.totalorder %s15, 1
    %p79 = por %p77, %p78
    %p80 = scmp.ne.s32.totalorder %s69, %s70
    %p81 = scmp.eq.s32.totalorder %s15, 0
    %p82 = por %p80, %p81
    %p83 = scmp.ne.s32.totalorder %s69, %s70
    %p84 = scmp.eq.s32.totalorder %s16, 1
    %p85 = por %p83, %p84
    %p87 = scmp.ne.s32.totalorder %s70, %s86
    %p88 = scmp.eq.s32.totalorder %s16, 0
    %p89 = por %p87, %p88
    %s91 = sadd.s32 %s90, 1
    %p94 = scmp.eq.s32.totalorder %s10, 1
    %p95 = scmp.ne.s32.totalorder %s90, %s92
    %p96 = scmp.eq.s32.totalorder %s10, 0
    %p97 = por %p95, %p96
    %p98 = scmp.ne.s32.totalorder %s90, %s92
    %p99 = scmp.eq.s32.totalorder %s15, 1
    %p100 = por %p98, %p99
    %p101 = scmp.ne.s32.totalorder %s92, %s93
    %p102 = scmp.eq.s32.totalorder %s15, 0
    %p103 = por %p101, %p102
    %p104 = scmp.ne.s32.totalorder %s92, %s93
    %p105 = scmp.eq.s32.totalorder %s16, 1
    %p106 = por %p104, %p105
    %p108 = scmp.ne.s32.totalorder %s93, %s107
    %p109 = scmp.eq.s32.totalorder %s16, 0
    %p110 = por %p108, %p109
    %s112 = sadd.s32 %s111, 1
    %p115 = scmp.eq.s32.totalorder %s10, 1
    %p116 = scmp.ne.s32.totalorder %s111, %s113
    %p117 = scmp.eq.s32.totalorder %s10, 0
    %p118 = por %p116, %p117
    %p119 = scmp.ne.s32.totalorder %s111, %s113
    %p120 = scmp.eq.s32.totalorder %s15, 1
    %p121 = por %p119, %p120
    %p122 = scmp.ne.s32.totalorder %s113, %s114
    %p123 = scmp.eq.s32.totalorder %s15, 0
    %p124 = por %p122, %p123
    %p125 = scmp.ne.s32.totalorder %s113, %s114
    %p126 = scmp.eq.s32.totalorder %s16, 1
    %p127 = por %p125, %p126
    %p129 = scmp.ne.s32.totalorder %s114, %s128
    %p130 = scmp.eq.s32.totalorder %s16, 0
    %p131 = por %p129, %p130
    %s132 = ssub.s32 %s17, %s29
    %s133 = ssub.s32 %s18, %s25
    %s134 = sor.u32 %s132, %s133
    %p135 = scmp.eq.s32.totalorder %s134, 0
    %s137 = sadd.s32 %s136, 1
    %s138 = scalar_select %p135, %s136, %s137
    %p141 = pneg %p135
    %p142 = scmp.eq.s32.totalorder %s10, 1
    %p143 = por %p141, %p142
    %p144 = scmp.ne.s32.totalorder %s136, %s139
    %p145 = scmp.eq.s32.totalorder %s10, 0
    %p146 = por %p144, %p145
    %p147 = scmp.ne.s32.totalorder %s136, %s139
    %p148 = scmp.eq.s32.totalorder %s15, 1
    %p149 = por %p147, %p148
    %p150 = scmp.ne.s32.totalorder %s139, %s140
    %p151 = scmp.eq.s32.totalorder %s15, 0
    %p152 = por %p150, %p151
    %p153 = scmp.ne.s32.totalorder %s139, %s140
    %p154 = scmp.eq.s32.totalorder %s16, 1
    %p155 = por %p153, %p154
    %p157 = scmp.ne.s32.totalorder %s140, %s156
    %p158 = scmp.eq.s32.totalorder %s16, 0
    %p159 = por %p157, %p158
    %p160 = scmp.le.s32.totalorder 1, %s10
    %p161 = scmp.lt.s32.totalorder %s10, 3
    %p162 = pnand %p160, %p161
    %p163 = pneg %p162
    // Predicated region
    $region9: #{reflect_conv3d_forward.1} parent=5 // pred_check
      _
    $region10: #{reflect_conv3d_forward.1} parent=5 // pred_check_branch
      %165 = sbr.rel (%p162) target = $region12
    $region11: #{reflect_conv3d_forward.1} parent=5 // pred_region
      %s166 = ssub.s32 %s10, 1
      // Predicated region
      $region13: #{reflect_conv3d_forward.1} parent=11 // pred_check
        %p167 = pneg %p103
      $region14: #{reflect_conv3d_forward.1} parent=11 // pred_check_branch
        %169 = sbr.rel (%p167) target = $region16
      $region15: #{reflect_conv3d_forward.1} parent=11 // pred_region
        _
      $region16: #{reflect_conv3d_forward.1} parent=11 // pred_fallthru
        _
      // Predicated region
      $region17: #{reflect_conv3d_forward.1} parent=11 // pred_check
        %p170 = pneg %p124
      $region18: #{reflect_conv3d_forward.1} parent=11 // pred_check_branch
        %172 = sbr.rel (%p170) target = $region20
      $region19: #{reflect_conv3d_forward.1} parent=11 // pred_region
        _
      $region20: #{reflect_conv3d_forward.1} parent=11 // pred_fallthru
        _
    $region12: #{reflect_conv3d_forward.1} parent=5 // pred_fallthru
      _
    %p173 = scmp.lt.s32.totalorder %s10, 2
    // Predicated region
    $region21: #{reflect_conv3d_forward.1} parent=5 // pred_check
      %p174 = pneg %p173
    $region22: #{reflect_conv3d_forward.1} parent=5 // pred_check_branch
      %176 = sbr.rel (%p174) target = $region24
    $region23: #{reflect_conv3d_forward.1} parent=5 // pred_region
      // Predicated region
      $region25: #{reflect_conv3d_forward.1} parent=23 // pred_check
        %p177 = pneg %p44
      $region26: #{reflect_conv3d_forward.1} parent=23 // pred_check_branch
        %179 = sbr.rel (%p177) target = $region28
      $region27: #{reflect_conv3d_forward.1} parent=23 // pred_region
        %s180 = smul.u32 8, %s18
        %s181 = ssub.s32 10, %s180
        %p182 = scmp.lt.s32.totalorder %s181, 8
        %s183 = scalar_select %p182, %s181, 8
        %s184 = smul.u32 64, %s183
        %s185 = smul.u32 %s184, 2
        %p186 = scmp.lt.s32.totalorder %s17, 1
        %s187 = scalar_select %p186, %s17, 1
        %p188 = scmp.lt.s32.totalorder %s180, 9
        %s189 = scalar_select %p188, %s180, 9
        %s190 = smul.addr %s189, 2
        %s191 = smul.addr %s187, 20
        %s192 = sadd.s32 %s190, %s191
        %s193 = smul.addr %s192, 4
        %s194 = scalar_lea.vmem %s0, %s193
        %s195 = smul.u32 8, %s18
        %s196 = ssub.s32 10, %s195
        %p197 = scmp.lt.s32.totalorder %s196, 8
        %s198 = scalar_select %p197, %s196, 8
        %s199 = smul.u32 64, %s198
        %s200 = smul.u32 %s199, 2
      $region28: #{reflect_conv3d_forward.1} parent=23 // pred_fallthru
        _
      // Predicated region
      $region29: #{reflect_conv3d_forward.1} parent=23 // pred_check
        %p201 = pneg %p76
      $region30: #{reflect_conv3d_forward.1} parent=23 // pred_check_branch
        %203 = sbr.rel (%p201) target = $region32
      $region31: #{reflect_conv3d_forward.1} parent=23 // pred_region
        %s204 = sadd.s32 %s18, 1
        %s205 = smul.u32 %s204, 4
        %s206 = smul.u32 2, %s205
        %p207 = scmp.lt.s32.totalorder %s17, 1
        %s208 = scalar_select %p207, %s17, 1
        %p209 = scmp.lt.s32.totalorder %s206, 9
        %s210 = scalar_select %p209, %s206, 9
        %s211 = smul.addr %s210, 2
        %s212 = smul.addr %s208, 20
        %s213 = sadd.s32 %s211, %s212
        %s214 = smul.addr %s213, 4
        %s215 = scalar_lea.vmem %s1, %s214
        %s216 = sadd.s32 %s18, 1
        %s217 = smul.u32 %s216, 4
        %s218 = smul.u32 2, %s217
      $region32: #{reflect_conv3d_forward.1} parent=23 // pred_fallthru
        _
    $region24: #{reflect_conv3d_forward.1} parent=5 // pred_fallthru
      _
    %p219 = scmp.le.s32.totalorder 1, %s10
    %p220 = scmp.lt.s32.totalorder %s10, 3
    %p221 = pnand %p219, %p220
    %p222 = pneg %p221
    // Predicated region
    $region33: #{reflect_conv3d_forward.1} parent=5 // pred_check
      _
    $region34: #{reflect_conv3d_forward.1} parent=5 // pred_check_branch
      %224 = sbr.rel (%p221) target = $region36
    $region35: #{reflect_conv3d_forward.1} parent=5 // pred_region
      %s225 = ssub.s32 %s10, 1
      %s226 = smul.u32 8, %s20
      %s227 = ssub.s32 10, %s226
      %p228 = scmp.lt.s32.totalorder %s227, 8
      %s229 = scalar_select %p228, %s227, 8
      %s230 = smul.u32 64, %s229
      %s231 = smul.u32 %s230, 2
      %p232 = scmp.lt.s32.totalorder %s19, 1
      %s233 = scalar_select %p232, %s19, 1
      %p234 = scmp.lt.s32.totalorder %s226, 9
      %s235 = scalar_select %p234, %s226, 9
      %s236 = smul.addr %s235, 2
      %s237 = smul.addr %s233, 20
      %s238 = sadd.s32 %s236, %s237
      %s239 = smul.addr %s238, 4
      %s240 = scalar_lea.vmem %s0, %s239
      %p241 = pneg %p50
      %p242 = pneg %p47
      %s243 = sadd.s32 %s20, 1
      %s244 = smul.u32 %s243, 4
      %s245 = smul.u32 2, %s244
      %p246 = scmp.lt.s32.totalorder %s19, 1
      %s247 = scalar_select %p246, %s19, 1
      %p248 = scmp.lt.s32.totalorder %s245, 9
      %s249 = scalar_select %p248, %s245, 9
      %s250 = smul.addr %s249, 2
      %s251 = smul.addr %s247, 20
      %s252 = sadd.s32 %s250, %s251
      %s253 = smul.addr %s252, 4
      %s254 = scalar_lea.vmem %s1, %s253
      %p255 = pneg %p82
      %p256 = pneg %p79
      %p257 = pneg %p103
      %p258 = pneg %p100
      %p259 = pneg %p124
      %p260 = pneg %p121
      %p261 = pneg %p152
      %p262 = pneg %p149
      %s263 = smul.u32 8, %s20
      %p264 = scmp.lt.s32.totalorder %s19, 1
      %s265 = scalar_select %p264, %s19, 1
      %p266 = scmp.lt.s32.totalorder %s263, 7
      %s267 = scalar_select %p266, %s263, 7
      %s268 = smul.addr %s265, 8
      %s269 = sadd.s32 %s267, %s268
      %s270 = smul.addr %s269, 8
      %s271 = scalar_lea.vmem %s4, %s270
      %s272 = smul.u32 8, %s20
      %s273 = ssub.s32 10, %s272
      %p274 = scmp.lt.s32.totalorder %s273, 8
      %s275 = scalar_select %p274, %s273, 8
      %s276 = smul.u32 64, %s275
      %s277 = smul.u32 %s276, 2
      %p278 = scmp.lt.s32.totalorder %s19, 1
      %s279 = scalar_select %p278, %s19, 1
      %p280 = scmp.lt.s32.totalorder %s272, 9
      %s281 = scalar_select %p280, %s272, 9
      %s282 = smul.addr %s281, 2
      %s283 = smul.addr %s279, 20
      %s284 = sadd.s32 %s282, %s283
      %s285 = smul.addr %s284, 4
      %s286 = scalar_lea.vmem %s0, %s285
      %s287 = smul.u32 8, %s20
      %s288 = ssub.s32 10, %s287
      %p289 = scmp.lt.s32.totalorder %s288, 8
      %s290 = scalar_select %p289, %s288, 8
      %s291 = smul.u32 64, %s290
      %s292 = smul.u32 %s291, 2
      %s293 = sadd.s32 %s20, 1
      %s294 = smul.u32 %s293, 4
      %s295 = smul.u32 2, %s294
      %p296 = scmp.lt.s32.totalorder %s19, 1
      %s297 = scalar_select %p296, %s19, 1
      %p298 = scmp.lt.s32.totalorder %s295, 9
      %s299 = scalar_select %p298, %s295, 9
      %s300 = smul.addr %s299, 2
      %s301 = smul.addr %s297, 20
      %s302 = sadd.s32 %s300, %s301
      %s303 = smul.addr %s302, 4
      %s304 = scalar_lea.vmem %s1, %s303
      %s305 = sadd.s32 %s20, 1
      %s306 = smul.u32 %s305, 4
      %s307 = smul.u32 2, %s306
      %s308 = smul.u32 8, %s20
      %p309 = scmp.lt.s32.totalorder %s19, 1
      %s310 = scalar_select %p309, %s19, 1
      %p311 = scmp.lt.s32.totalorder %s308, 7
      %s312 = scalar_select %p311, %s308, 7
      %s313 = smul.addr %s310, 8
      %s314 = sadd.s32 %s312, %s313
      %s315 = smul.addr %s314, 8
      %s316 = scalar_lea.vmem %s4, %s315
      %s317 = smul.u32 8, %s20
      %v318 = vld [vmem:[%s286] sm:$0xf]
      %319 = vst [vmem:[#allocation2] sm:$0xf] %v318
      %v320 = vld [vmem:[%s286] sm:$0xff]
      %v322 = vcombine.high %v320, %v320
      %323 = vrot.lane.b32.xlu0 %v320, 127
      %v324 = vpop.permute.xlu0 %323
      %325 = vrot.lane.b32.xlu0 %v322, 127
      %v326 = vpop.permute.xlu0 %325
      %vm327 = vcmask 1039360
      %v328 = vsel %vm327, %v324, %v326
      %330 = vst [vmem:[#allocation2 + $0x4] sm:$0xf] %v328
      %v331 = vld [vmem:[%s286] sm:$0xff]
      %v333 = vcombine.high %v331, %v331
      %334 = vrot.lane.b32.xlu0 %v331, 126
      %v335 = vpop.permute.xlu0 %334
      %336 = vrot.lane.b32.xlu0 %v333, 126
      %v337 = vpop.permute.xlu0 %336
      %vm338 = vcmask 1031168
      %v339 = vsel %vm338, %v335, %v337
      %341 = vst [vmem:[#allocation2 + $0x8] sm:$0xf] %v339
      %v342 = vld [vmem:[%s286] sm:$0xff]
      %v344 = vcombine.high %v342, %v342
      %345 = vrot.lane.b32.xlu0 %v342, 118
      %v346 = vpop.permute.xlu0 %345
      %347 = vrot.lane.b32.xlu0 %v344, 118
      %v348 = vpop.permute.xlu0 %347
      %vm349 = vcmask 965632
      %v350 = vsel %vm349, %v346, %v348
      %352 = vst [vmem:[#allocation2 + $0xc] sm:$0xf] %v350
      %v353 = vld [vmem:[%s286] sm:$0xff]
      %v355 = vcombine.high %v353, %v353
      %356 = vrot.lane.b32.xlu0 %v353, 117
      %v357 = vpop.permute.xlu0 %356
      %358 = vrot.lane.b32.xlu0 %v355, 117
      %v359 = vpop.permute.xlu0 %358
      %vm360 = vcmask 957440
      %v361 = vsel %vm360, %v357, %v359
      %363 = vst [vmem:[#allocation2 + $0x10] sm:$0xf] %v361
      %v364 = vld [vmem:[%s286] sm:$0xff]
      %v366 = vcombine.high %v364, %v364
      %367 = vrot.lane.b32.xlu0 %v364, 116
      %v368 = vpop.permute.xlu0 %367
      %369 = vrot.lane.b32.xlu0 %v366, 116
      %v370 = vpop.permute.xlu0 %369
      %vm371 = vcmask 949248
      %v372 = vsel %vm371, %v368, %v370
      %374 = vst [vmem:[#allocation2 + $0x14] sm:$0xf] %v372
      %v375 = vld [vmem:[%s286] sm:$0xff]
      %v377 = vcombine.high %v375, %v375
      %378 = vrot.lane.b32.xlu0 %v375, 108
      %v379 = vpop.permute.xlu0 %378
      %380 = vrot.lane.b32.xlu0 %v377, 108
      %v381 = vpop.permute.xlu0 %380
      %vm382 = vcmask 883712
      %v383 = vsel %vm382, %v379, %v381
      %385 = vst [vmem:[#allocation2 + $0x18] sm:$0xf] %v383
      %v386 = vld [vmem:[%s286] sm:$0xff]
      %v388 = vcombine.high %v386, %v386
      %389 = vrot.lane.b32.xlu0 %v386, 107
      %v390 = vpop.permute.xlu0 %389
      %391 = vrot.lane.b32.xlu0 %v388, 107
      %v392 = vpop.permute.xlu0 %391
      %vm393 = vcmask 875520
      %v394 = vsel %vm393, %v390, %v392
      %396 = vst [vmem:[#allocation2 + $0x1c] sm:$0xf] %v394
      %v397 = vld [vmem:[%s286] sm:$0xff]
      %v399 = vcombine.high %v397, %v397
      %400 = vrot.lane.b32.xlu0 %v397, 106
      %v401 = vpop.permute.xlu0 %400
      %402 = vrot.lane.b32.xlu0 %v399, 106
      %v403 = vpop.permute.xlu0 %402
      %vm404 = vcmask 867328
      %v405 = vsel %vm404, %v401, %v403
      %407 = vst [vmem:[#allocation2 + $0x20] sm:$0xf] %v405
      %s408 = scalar_lea.vmem %s286, 8
      %v409 = vld [vmem:[%s408] sm:$0xf]
      %410 = vst [vmem:[#allocation2 + $0x24] sm:$0xf] %v409
      %v411 = vld [vmem:[%s408] sm:$0xff]
      %v413 = vcombine.high %v411, %v411
      %414 = vrot.lane.b32.xlu0 %v411, 127
      %v415 = vpop.permute.xlu0 %414
      %416 = vrot.lane.b32.xlu0 %v413, 127
      %v417 = vpop.permute.xlu0 %416
      %v418 = vsel %vm327, %v415, %v417
      %420 = vst [vmem:[#allocation2 + $0x28] sm:$0xf] %v418
      %v421 = vld [vmem:[%s408] sm:$0xff]
      %v423 = vcombine.high %v421, %v421
      %424 = vrot.lane.b32.xlu0 %v421, 126
      %v425 = vpop.permute.xlu0 %424
      %426 = vrot.lane.b32.xlu0 %v423, 126
      %v427 = vpop.permute.xlu0 %426
      %v428 = vsel %vm338, %v425, %v427
      %430 = vst [vmem:[#allocation2 + $0x2c] sm:$0xf] %v428
      %v431 = vld [vmem:[%s408] sm:$0xff]
      %v433 = vcombine.high %v431, %v431
      %434 = vrot.lane.b32.xlu0 %v431, 118
      %v435 = vpop.permute.xlu0 %434
      %436 = vrot.lane.b32.xlu0 %v433, 118
      %v437 = vpop.permute.xlu0 %436
      %v438 = vsel %vm349, %v435, %v437
      %440 = vst [vmem:[#allocation2 + $0x30] sm:$0xf] %v438
      %v441 = vld [vmem:[%s408] sm:$0xff]
      %v443 = vcombine.high %v441, %v441
      %444 = vrot.lane.b32.xlu0 %v441, 117
      %v445 = vpop.permute.xlu0 %444
      %446 = vrot.lane.b32.xlu0 %v443, 117
      %v447 = vpop.permute.xlu0 %446
      %v448 = vsel %vm360, %v445, %v447
      %450 = vst [vmem:[#allocation2 + $0x34] sm:$0xf] %v448
      %v451 = vld [vmem:[%s408] sm:$0xff]
      %v453 = vcombine.high %v451, %v451
      %454 = vrot.lane.b32.xlu0 %v451, 116
      %v455 = vpop.permute.xlu0 %454
      %456 = vrot.lane.b32.xlu0 %v453, 116
      %v457 = vpop.permute.xlu0 %456
      %v458 = vsel %vm371, %v455, %v457
      %460 = vst [vmem:[#allocation2 + $0x38] sm:$0xf] %v458
      %v461 = vld [vmem:[%s408] sm:$0xff]
      %v463 = vcombine.high %v461, %v461
      %464 = vrot.lane.b32.xlu0 %v461, 108
      %v465 = vpop.permute.xlu0 %464
      %466 = vrot.lane.b32.xlu0 %v463, 108
      %v467 = vpop.permute.xlu0 %466
      %v468 = vsel %vm382, %v465, %v467
      %470 = vst [vmem:[#allocation2 + $0x3c] sm:$0xf] %v468
      %v471 = vld [vmem:[%s408] sm:$0xff]
      %v473 = vcombine.high %v471, %v471
      %474 = vrot.lane.b32.xlu0 %v471, 107
      %v475 = vpop.permute.xlu0 %474
      %476 = vrot.lane.b32.xlu0 %v473, 107
      %v477 = vpop.permute.xlu0 %476
      %v478 = vsel %vm393, %v475, %v477
      %480 = vst [vmem:[#allocation2 + $0x40] sm:$0xf] %v478
      %v481 = vld [vmem:[%s408] sm:$0xff]
      %v483 = vcombine.high %v481, %v481
      %484 = vrot.lane.b32.xlu0 %v481, 106
      %v485 = vpop.permute.xlu0 %484
      %486 = vrot.lane.b32.xlu0 %v483, 106
      %v487 = vpop.permute.xlu0 %486
      %v488 = vsel %vm404, %v485, %v487
      %490 = vst [vmem:[#allocation2 + $0x44] sm:$0xf] %v488
      %s491 = scalar_lea.vmem %s286, 16
      %v492 = vld [vmem:[%s491] sm:$0xf]
      %493 = vst [vmem:[#allocation2 + $0x48] sm:$0xf] %v492
      %v494 = vld [vmem:[%s491] sm:$0xff]
      %v496 = vcombine.high %v494, %v494
      %497 = vrot.lane.b32.xlu0 %v494, 127
      %v498 = vpop.permute.xlu0 %497
      %499 = vrot.lane.b32.xlu0 %v496, 127
      %v500 = vpop.permute.xlu0 %499
      %v501 = vsel %vm327, %v498, %v500
      %503 = vst [vmem:[#allocation2 + $0x4c] sm:$0xf] %v501
      %v504 = vld [vmem:[%s491] sm:$0xff]
      %v506 = vcombine.high %v504, %v504
      %507 = vrot.lane.b32.xlu0 %v504, 126
      %v508 = vpop.permute.xlu0 %507
      %509 = vrot.lane.b32.xlu0 %v506, 126
      %v510 = vpop.permute.xlu0 %509
      %v511 = vsel %vm338, %v508, %v510
      %513 = vst [vmem:[#allocation2 + $0x50] sm:$0xf] %v511
      %v514 = vld [vmem:[%s491] sm:$0xff]
      %v516 = vcombine.high %v514, %v514
      %517 = vrot.lane.b32.xlu0 %v514, 118
      %v518 = vpop.permute.xlu0 %517
      %519 = vrot.lane.b32.xlu0 %v516, 118
      %v520 = vpop.permute.xlu0 %519
      %v521 = vsel %vm349, %v518, %v520
      %523 = vst [vmem:[#allocation2 + $0x54] sm:$0xf] %v521
      %v524 = vld [vmem:[%s491] sm:$0xff]
      %v526 = vcombine.high %v524, %v524
      %527 = vrot.lane.b32.xlu0 %v524, 117
      %v528 = vpop.permute.xlu0 %527
      %529 = vrot.lane.b32.xlu0 %v526, 117
      %v530 = vpop.permute.xlu0 %529
      %v531 = vsel %vm360, %v528, %v530
      %533 = vst [vmem:[#allocation2 + $0x58] sm:$0xf] %v531
      %v534 = vld [vmem:[%s491] sm:$0xff]
      %v536 = vcombine.high %v534, %v534
      %537 = vrot.lane.b32.xlu0 %v534, 116
      %v538 = vpop.permute.xlu0 %537
      %539 = vrot.lane.b32.xlu0 %v536, 116
      %v540 = vpop.permute.xlu0 %539
      %v541 = vsel %vm371, %v538, %v540
      %543 = vst [vmem:[#allocation2 + $0x5c] sm:$0xf] %v541
      %v544 = vld [vmem:[%s491] sm:$0xff]
      %v546 = vcombine.high %v544, %v544
      %547 = vrot.lane.b32.xlu0 %v544, 108
      %v548 = vpop.permute.xlu0 %547
      %549 = vrot.lane.b32.xlu0 %v546, 108
      %v550 = vpop.permute.xlu0 %549
      %v551 = vsel %vm382, %v548, %v550
      %553 = vst [vmem:[#allocation2 + $0x60] sm:$0xf] %v551
      %v554 = vld [vmem:[%s491] sm:$0xff]
      %v556 = vcombine.high %v554, %v554
      %557 = vrot.lane.b32.xlu0 %v554, 107
      %v558 = vpop.permute.xlu0 %557
      %559 = vrot.lane.b32.xlu0 %v556, 107
      %v560 = vpop.permute.xlu0 %559
      %v561 = vsel %vm393, %v558, %v560
      %563 = vst [vmem:[#allocation2 + $0x64] sm:$0xf] %v561
      %v564 = vld [vmem:[%s491] sm:$0xff]
      %v566 = vcombine.high %v564, %v564
      %567 = vrot.lane.b32.xlu0 %v564, 106
      %v568 = vpop.permute.xlu0 %567
      %569 = vrot.lane.b32.xlu0 %v566, 106
      %v570 = vpop.permute.xlu0 %569
      %v571 = vsel %vm404, %v568, %v570
      %573 = vst [vmem:[#allocation2 + $0x68] sm:$0xf] %v571
      %s574 = scalar_lea.vmem %s286, 24
      %v575 = vld [vmem:[%s574] sm:$0xf]
      %576 = vst [vmem:[#allocation2 + $0x6c] sm:$0xf] %v575
      %v577 = vld [vmem:[%s574] sm:$0xff]
      %v579 = vcombine.high %v577, %v577
      %580 = vrot.lane.b32.xlu0 %v577, 127
      %v581 = vpop.permute.xlu0 %580
      %582 = vrot.lane.b32.xlu0 %v579, 127
      %v583 = vpop.permute.xlu0 %582
      %v584 = vsel %vm327, %v581, %v583
      %586 = vst [vmem:[#allocation2 + $0x70] sm:$0xf] %v584
      %v587 = vld [vmem:[%s574] sm:$0xff]
      %v589 = vcombine.high %v587, %v587
      %590 = vrot.lane.b32.xlu0 %v587, 126
      %v591 = vpop.permute.xlu0 %590
      %592 = vrot.lane.b32.xlu0 %v589, 126
      %v593 = vpop.permute.xlu0 %592
      %v594 = vsel %vm338, %v591, %v593
      %596 = vst [vmem:[#allocation2 + $0x74] sm:$0xf] %v594
      %v597 = vld [vmem:[%s574] sm:$0xff]
      %v599 = vcombine.high %v597, %v597
      %600 = vrot.lane.b32.xlu0 %v597, 118
      %v601 = vpop.permute.xlu0 %600
      %602 = vrot.lane.b32.xlu0 %v599, 118
      %v603 = vpop.permute.xlu0 %602
      %v604 = vsel %vm349, %v601, %v603
      %606 = vst [vmem:[#allocation2 + $0x78] sm:$0xf] %v604
      %v607 = vld [vmem:[%s574] sm:$0xff]
      %v609 = vcombine.high %v607, %v607
      %610 = vrot.lane.b32.xlu0 %v607, 117
      %v611 = vpop.permute.xlu0 %610
      %612 = vrot.lane.b32.xlu0 %v609, 117
      %v613 = vpop.permute.xlu0 %612
      %v614 = vsel %vm360, %v611, %v613
      %616 = vst [vmem:[#allocation2 + $0x7c] sm:$0xf] %v614
      %v617 = vld [vmem:[%s574] sm:$0xff]
      %v619 = vcombine.high %v617, %v617
      %620 = vrot.lane.b32.xlu0 %v617, 116
      %v621 = vpop.permute.xlu0 %620
      %622 = vrot.lane.b32.xlu0 %v619, 116
      %v623 = vpop.permute.xlu0 %622
      %v624 = vsel %vm371, %v621, %v623
      %626 = vst [vmem:[#allocation2 + $0x80] sm:$0xf] %v624
      %v627 = vld [vmem:[%s574] sm:$0xff]
      %v629 = vcombine.high %v627, %v627
      %630 = vrot.lane.b32.xlu0 %v627, 108
      %v631 = vpop.permute.xlu0 %630
      %632 = vrot.lane.b32.xlu0 %v629, 108
      %v633 = vpop.permute.xlu0 %632
      %v634 = vsel %vm382, %v631, %v633
      %636 = vst [vmem:[#allocation2 + $0x84] sm:$0xf] %v634
      %v637 = vld [vmem:[%s574] sm:$0xff]
      %v639 = vcombine.high %v637, %v637
      %640 = vrot.lane.b32.xlu0 %v637, 107
      %v641 = vpop.permute.xlu0 %640
      %642 = vrot.lane.b32.xlu0 %v639, 107
      %v643 = vpop.permute.xlu0 %642
      %v644 = vsel %vm393, %v641, %v643
      %646 = vst [vmem:[#allocation2 + $0x88] sm:$0xf] %v644
      %v647 = vld [vmem:[%s574] sm:$0xff]
      %v649 = vcombine.high %v647, %v647
      %650 = vrot.lane.b32.xlu0 %v647, 106
      %v651 = vpop.permute.xlu0 %650
      %652 = vrot.lane.b32.xlu0 %v649, 106
      %v653 = vpop.permute.xlu0 %652
      %v654 = vsel %vm404, %v651, %v653
      %656 = vst [vmem:[#allocation2 + $0x8c] sm:$0xf] %v654
      %s657 = scalar_lea.vmem %s286, 32
      %v658 = vld [vmem:[%s657] sm:$0xf]
      %659 = vst [vmem:[#allocation2 + $0x90] sm:$0xf] %v658
      %v660 = vld [vmem:[%s657] sm:$0xff]
      %v662 = vcombine.high %v660, %v660
      %663 = vrot.lane.b32.xlu0 %v660, 127
      %v664 = vpop.permute.xlu0 %663
      %665 = vrot.lane.b32.xlu0 %v662, 127
      %v666 = vpop.permute.xlu0 %665
      %v667 = vsel %vm327, %v664, %v666
      %669 = vst [vmem:[#allocation2 + $0x94] sm:$0xf] %v667
      %v670 = vld [vmem:[%s657] sm:$0xff]
      %v672 = vcombine.high %v670, %v670
      %673 = vrot.lane.b32.xlu0 %v670, 126
      %v674 = vpop.permute.xlu0 %673
      %675 = vrot.lane.b32.xlu0 %v672, 126
      %v676 = vpop.permute.xlu0 %675
      %v677 = vsel %vm338, %v674, %v676
      %679 = vst [vmem:[#allocation2 + $0x98] sm:$0xf] %v677
      %v680 = vld [vmem:[%s657] sm:$0xff]
      %v682 = vcombine.high %v680, %v680
      %683 = vrot.lane.b32.xlu0 %v680, 118
      %v684 = vpop.permute.xlu0 %683
      %685 = vrot.lane.b32.xlu0 %v682, 118
      %v686 = vpop.permute.xlu0 %685
      %v687 = vsel %vm349, %v684, %v686
      %689 = vst [vmem:[#allocation2 + $0x9c] sm:$0xf] %v687
      %v690 = vld [vmem:[%s657] sm:$0xff]
      %v692 = vcombine.high %v690, %v690
      %693 = vrot.lane.b32.xlu0 %v690, 117
      %v694 = vpop.permute.xlu0 %693
      %695 = vrot.lane.b32.xlu0 %v692, 117
      %v696 = vpop.permute.xlu0 %695
      %v697 = vsel %vm360, %v694, %v696
      %699 = vst [vmem:[#allocation2 + $0xa0] sm:$0xf] %v697
      %v700 = vld [vmem:[%s657] sm:$0xff]
      %v702 = vcombine.high %v700, %v700
      %703 = vrot.lane.b32.xlu0 %v700, 116
      %v704 = vpop.permute.xlu0 %703
      %705 = vrot.lane.b32.xlu0 %v702, 116
      %v706 = vpop.permute.xlu0 %705
      %v707 = vsel %vm371, %v704, %v706
      %709 = vst [vmem:[#allocation2 + $0xa4] sm:$0xf] %v707
      %v710 = vld [vmem:[%s657] sm:$0xff]
      %v712 = vcombine.high %v710, %v710
      %713 = vrot.lane.b32.xlu0 %v710, 108
      %v714 = vpop.permute.xlu0 %713
      %715 = vrot.lane.b32.xlu0 %v712, 108
      %v716 = vpop.permute.xlu0 %715
      %v717 = vsel %vm382, %v714, %v716
      %719 = vst [vmem:[#allocation2 + $0xa8] sm:$0xf] %v717
      %v720 = vld [vmem:[%s657] sm:$0xff]
      %v722 = vcombine.high %v720, %v720
      %723 = vrot.lane.b32.xlu0 %v720, 107
      %v724 = vpop.permute.xlu0 %723
      %725 = vrot.lane.b32.xlu0 %v722, 107
      %v726 = vpop.permute.xlu0 %725
      %v727 = vsel %vm393, %v724, %v726
      %729 = vst [vmem:[#allocation2 + $0xac] sm:$0xf] %v727
      %v730 = vld [vmem:[%s657] sm:$0xff]
      %v732 = vcombine.high %v730, %v730
      %733 = vrot.lane.b32.xlu0 %v730, 106
      %v734 = vpop.permute.xlu0 %733
      %735 = vrot.lane.b32.xlu0 %v732, 106
      %v736 = vpop.permute.xlu0 %735
      %v737 = vsel %vm404, %v734, %v736
      %739 = vst [vmem:[#allocation2 + $0xb0] sm:$0xf] %v737
      %s740 = scalar_lea.vmem %s286, 40
      %v741 = vld [vmem:[%s740] sm:$0xf]
      %742 = vst [vmem:[#allocation2 + $0xb4] sm:$0xf] %v741
      %v743 = vld [vmem:[%s740] sm:$0xff]
      %v745 = vcombine.high %v743, %v743
      %746 = vrot.lane.b32.xlu0 %v743, 127
      %v747 = vpop.permute.xlu0 %746
      %748 = vrot.lane.b32.xlu0 %v745, 127
      %v749 = vpop.permute.xlu0 %748
      %v750 = vsel %vm327, %v747, %v749
      %752 = vst [vmem:[#allocation2 + $0xb8] sm:$0xf] %v750
      %v753 = vld [vmem:[%s740] sm:$0xff]
      %v755 = vcombine.high %v753, %v753
      %756 = vrot.lane.b32.xlu0 %v753, 126
      %v757 = vpop.permute.xlu0 %756
      %758 = vrot.lane.b32.xlu0 %v755, 126
      %v759 = vpop.permute.xlu0 %758
      %v760 = vsel %vm338, %v757, %v759
      %762 = vst [vmem:[#allocation2 + $0xbc] sm:$0xf] %v760
      %v763 = vld [vmem:[%s740] sm:$0xff]
      %v765 = vcombine.high %v763, %v763
      %766 = vrot.lane.b32.xlu0 %v763, 118
      %v767 = vpop.permute.xlu0 %766
      %768 = vrot.lane.b32.xlu0 %v765, 118
      %v769 = vpop.permute.xlu0 %768
      %v770 = vsel %vm349, %v767, %v769
      %772 = vst [vmem:[#allocation2 + $0xc0] sm:$0xf] %v770
      %v773 = vld [vmem:[%s740] sm:$0xff]
      %v775 = vcombine.high %v773, %v773
      %776 = vrot.lane.b32.xlu0 %v773, 117
      %v777 = vpop.permute.xlu0 %776
      %778 = vrot.lane.b32.xlu0 %v775, 117
      %v779 = vpop.permute.xlu0 %778
      %v780 = vsel %vm360, %v777, %v779
      %782 = vst [vmem:[#allocation2 + $0xc4] sm:$0xf] %v780
      %v783 = vld [vmem:[%s740] sm:$0xff]
      %v785 = vcombine.high %v783, %v783
      %786 = vrot.lane.b32.xlu0 %v783, 116
      %v787 = vpop.permute.xlu0 %786
      %788 = vrot.lane.b32.xlu0 %v785, 116
      %v789 = vpop.permute.xlu0 %788
      %v790 = vsel %vm371, %v787, %v789
      %792 = vst [vmem:[#allocation2 + $0xc8] sm:$0xf] %v790
      %v793 = vld [vmem:[%s740] sm:$0xff]
      %v795 = vcombine.high %v793, %v793
      %796 = vrot.lane.b32.xlu0 %v793, 108
      %v797 = vpop.permute.xlu0 %796
      %798 = vrot.lane.b32.xlu0 %v795, 108
      %v799 = vpop.permute.xlu0 %798
      %v800 = vsel %vm382, %v797, %v799
      %802 = vst [vmem:[#allocation2 + $0xcc] sm:$0xf] %v800
      %v803 = vld [vmem:[%s740] sm:$0xff]
      %v805 = vcombine.high %v803, %v803
      %806 = vrot.lane.b32.xlu0 %v803, 107
      %v807 = vpop.permute.xlu0 %806
      %808 = vrot.lane.b32.xlu0 %v805, 107
      %v809 = vpop.permute.xlu0 %808
      %v810 = vsel %vm393, %v807, %v809
      %812 = vst [vmem:[#allocation2 + $0xd0] sm:$0xf] %v810
      %v813 = vld [vmem:[%s740] sm:$0xff]
      %v815 = vcombine.high %v813, %v813
      %816 = vrot.lane.b32.xlu0 %v813, 106
      %v817 = vpop.permute.xlu0 %816
      %818 = vrot.lane.b32.xlu0 %v815, 106
      %v819 = vpop.permute.xlu0 %818
      %v820 = vsel %vm404, %v817, %v819
      %822 = vst [vmem:[#allocation2 + $0xd4] sm:$0xf] %v820
      %s823 = scalar_lea.vmem %s286, 48
      %v824 = vld [vmem:[%s823] sm:$0xf]
      %825 = vst [vmem:[#allocation2 + $0xd8] sm:$0xf] %v824
      %v826 = vld [vmem:[%s823] sm:$0xff]
      %v828 = vcombine.high %v826, %v826
      %829 = vrot.lane.b32.xlu0 %v826, 127
      %v830 = vpop.permute.xlu0 %829
      %831 = vrot.lane.b32.xlu0 %v828, 127
      %v832 = vpop.permute.xlu0 %831
      %v833 = vsel %vm327, %v830, %v832
      %835 = vst [vmem:[#allocation2 + $0xdc] sm:$0xf] %v833
      %v836 = vld [vmem:[%s823] sm:$0xff]
      %v838 = vcombine.high %v836, %v836
      %839 = vrot.lane.b32.xlu0 %v836, 126
      %v840 = vpop.permute.xlu0 %839
      %841 = vrot.lane.b32.xlu0 %v838, 126
      %v842 = vpop.permute.xlu0 %841
      %v843 = vsel %vm338, %v840, %v842
      %845 = vst [vmem:[#allocation2 + $0xe0] sm:$0xf] %v843
      %v846 = vld [vmem:[%s823] sm:$0xff]
      %v848 = vcombine.high %v846, %v846
      %849 = vrot.lane.b32.xlu0 %v846, 118
      %v850 = vpop.permute.xlu0 %849
      %851 = vrot.lane.b32.xlu0 %v848, 118
      %v852 = vpop.permute.xlu0 %851
      %v853 = vsel %vm349, %v850, %v852
      %855 = vst [vmem:[#allocation2 + $0xe4] sm:$0xf] %v853
      %v856 = vld [vmem:[%s823] sm:$0xff]
      %v858 = vcombine.high %v856, %v856
      %859 = vrot.lane.b32.xlu0 %v856, 117
      %v860 = vpop.permute.xlu0 %859
      %861 = vrot.lane.b32.xlu0 %v858, 117
      %v862 = vpop.permute.xlu0 %861
      %v863 = vsel %vm360, %v860, %v862
      %865 = vst [vmem:[#allocation2 + $0xe8] sm:$0xf] %v863
      %v866 = vld [vmem:[%s823] sm:$0xff]
      %v868 = vcombine.high %v866, %v866
      %869 = vrot.lane.b32.xlu0 %v866, 116
      %v870 = vpop.permute.xlu0 %869
      %871 = vrot.lane.b32.xlu0 %v868, 116
      %v872 = vpop.permute.xlu0 %871
      %v873 = vsel %vm371, %v870, %v872
      %875 = vst [vmem:[#allocation2 + $0xec] sm:$0xf] %v873
      %v876 = vld [vmem:[%s823] sm:$0xff]
      %v878 = vcombine.high %v876, %v876
      %879 = vrot.lane.b32.xlu0 %v876, 108
      %v880 = vpop.permute.xlu0 %879
      %881 = vrot.lane.b32.xlu0 %v878, 108
      %v882 = vpop.permute.xlu0 %881
      %v883 = vsel %vm382, %v880, %v882
      %885 = vst [vmem:[#allocation2 + $0xf0] sm:$0xf] %v883
      %v886 = vld [vmem:[%s823] sm:$0xff]
      %v888 = vcombine.high %v886, %v886
      %889 = vrot.lane.b32.xlu0 %v886, 107
      %v890 = vpop.permute.xlu0 %889
      %891 = vrot.lane.b32.xlu0 %v888, 107
      %v892 = vpop.permute.xlu0 %891
      %v893 = vsel %vm393, %v890, %v892
      %895 = vst [vmem:[#allocation2 + $0xf4] sm:$0xf] %v893
      %v896 = vld [vmem:[%s823] sm:$0xff]
      %v898 = vcombine.high %v896, %v896
      %899 = vrot.lane.b32.xlu0 %v896, 106
      %v900 = vpop.permute.xlu0 %899
      %901 = vrot.lane.b32.xlu0 %v898, 106
      %v902 = vpop.permute.xlu0 %901
      %v903 = vsel %vm404, %v900, %v902
      %905 = vst [vmem:[#allocation2 + $0xf8] sm:$0xf] %v903
      %s906 = scalar_lea.vmem %s286, 56
      %v907 = vld [vmem:[%s906] sm:$0xf]
      %908 = vst [vmem:[#allocation2 + $0xfc] sm:$0xf] %v907
      %v909 = vld [vmem:[%s906] sm:$0xff]
      %v911 = vcombine.high %v909, %v909
      %912 = vrot.lane.b32.xlu0 %v909, 127
      %v913 = vpop.permute.xlu0 %912
      %914 = vrot.lane.b32.xlu0 %v911, 127
      %v915 = vpop.permute.xlu0 %914
      %v916 = vsel %vm327, %v913, %v915
      %918 = vst [vmem:[#allocation2 + $0x100] sm:$0xf] %v916
      %v919 = vld [vmem:[%s906] sm:$0xff]
      %v921 = vcombine.high %v919, %v919
      %922 = vrot.lane.b32.xlu0 %v919, 126
      %v923 = vpop.permute.xlu0 %922
      %924 = vrot.lane.b32.xlu0 %v921, 126
      %v925 = vpop.permute.xlu0 %924
      %v926 = vsel %vm338, %v923, %v925
      %928 = vst [vmem:[#allocation2 + $0x104] sm:$0xf] %v926
      %v929 = vld [vmem:[%s906] sm:$0xff]
      %v931 = vcombine.high %v929, %v929
      %932 = vrot.lane.b32.xlu0 %v929, 118
      %v933 = vpop.permute.xlu0 %932
      %934 = vrot.lane.b32.xlu0 %v931, 118
      %v935 = vpop.permute.xlu0 %934
      %v936 = vsel %vm349, %v933, %v935
      %938 = vst [vmem:[#allocation2 + $0x108] sm:$0xf] %v936
      %v939 = vld [vmem:[%s906] sm:$0xff]
      %v941 = vcombine.high %v939, %v939
      %942 = vrot.lane.b32.xlu0 %v939, 117
      %v943 = vpop.permute.xlu0 %942
      %944 = vrot.lane.b32.xlu0 %v941, 117
      %v945 = vpop.permute.xlu0 %944
      %v946 = vsel %vm360, %v943, %v945
      %948 = vst [vmem:[#allocation2 + $0x10c] sm:$0xf] %v946
      %v949 = vld [vmem:[%s906] sm:$0xff]
      %v951 = vcombine.high %v949, %v949
      %952 = vrot.lane.b32.xlu0 %v949, 116
      %v953 = vpop.permute.xlu0 %952
      %954 = vrot.lane.b32.xlu0 %v951, 116
      %v955 = vpop.permute.xlu0 %954
      %v956 = vsel %vm371, %v953, %v955
      %958 = vst [vmem:[#allocation2 + $0x110] sm:$0xf] %v956
      %v959 = vld [vmem:[%s906] sm:$0xff]
      %v961 = vcombine.high %v959, %v959
      %962 = vrot.lane.b32.xlu0 %v959, 108
      %v963 = vpop.permute.xlu0 %962
      %964 = vrot.lane.b32.xlu0 %v961, 108
      %v965 = vpop.permute.xlu0 %964
      %v966 = vsel %vm382, %v963, %v965
      %968 = vst [vmem:[#allocation2 + $0x114] sm:$0xf] %v966
      %v969 = vld [vmem:[%s906] sm:$0xff]
      %v971 = vcombine.high %v969, %v969
      %972 = vrot.lane.b32.xlu0 %v969, 107
      %v973 = vpop.permute.xlu0 %972
      %974 = vrot.lane.b32.xlu0 %v971, 107
      %v975 = vpop.permute.xlu0 %974
      %v976 = vsel %vm393, %v973, %v975
      %978 = vst [vmem:[#allocation2 + $0x118] sm:$0xf] %v976
      %v979 = vld [vmem:[%s906] sm:$0xff]
      %v981 = vcombine.high %v979, %v979
      %982 = vrot.lane.b32.xlu0 %v979, 106
      %v983 = vpop.permute.xlu0 %982
      %984 = vrot.lane.b32.xlu0 %v981, 106
      %v985 = vpop.permute.xlu0 %984
      %v986 = vsel %vm404, %v983, %v985
      %988 = vst [vmem:[#allocation2 + $0x11c] sm:$0xf] %v986
      %v989 = vld [vmem:[%s304] sm:$0xf]
      %990 = vst [vmem:[#allocation2 + $0x120] sm:$0xf] %v989
      %v991 = vld [vmem:[%s304] sm:$0xff]
      %v993 = vcombine.high %v991, %v991
      %994 = vrot.lane.b32.xlu0 %v991, 127
      %v995 = vpop.permute.xlu0 %994
      %996 = vrot.lane.b32.xlu0 %v993, 127
      %v997 = vpop.permute.xlu0 %996
      %v998 = vsel %vm327, %v995, %v997
      %1000 = vst [vmem:[#allocation2 + $0x124] sm:$0xf] %v998
      %v1001 = vld [vmem:[%s304] sm:$0xff]
      %v1003 = vcombine.high %v1001, %v1001
      %1004 = vrot.lane.b32.xlu0 %v1001, 126
      %v1005 = vpop.permute.xlu0 %1004
      %1006 = vrot.lane.b32.xlu0 %v1003, 126
      %v1007 = vpop.permute.xlu0 %1006
      %v1008 = vsel %vm338, %v1005, %v1007
      %1010 = vst [vmem:[#allocation2 + $0x128] sm:$0xf] %v1008
      %v1011 = vld [vmem:[%s304] sm:$0xff]
      %v1013 = vcombine.high %v1011, %v1011
      %1014 = vrot.lane.b32.xlu0 %v1011, 118
      %v1015 = vpop.permute.xlu0 %1014
      %1016 = vrot.lane.b32.xlu0 %v1013, 118
      %v1017 = vpop.permute.xlu0 %1016
      %v1018 = vsel %vm349, %v1015, %v1017
      %1020 = vst [vmem:[#allocation2 + $0x12c] sm:$0xf] %v1018
      %v1021 = vld [vmem:[%s304] sm:$0xff]
      %v1023 = vcombine.high %v1021, %v1021
      %1024 = vrot.lane.b32.xlu0 %v1021, 117
      %v1025 = vpop.permute.xlu0 %1024
      %1026 = vrot.lane.b32.xlu0 %v1023, 117
      %v1027 = vpop.permute.xlu0 %1026
      %v1028 = vsel %vm360, %v1025, %v1027
      %1030 = vst [vmem:[#allocation2 + $0x130] sm:$0xf] %v1028
      %v1031 = vld [vmem:[%s304] sm:$0xff]
      %v1033 = vcombine.high %v1031, %v1031
      %1034 = vrot.lane.b32.xlu0 %v1031, 116
      %v1035 = vpop.permute.xlu0 %1034
      %1036 = vrot.lane.b32.xlu0 %v1033, 116
      %v1037 = vpop.permute.xlu0 %1036
      %v1038 = vsel %vm371, %v1035, %v1037
      %1040 = vst [vmem:[#allocation2 + $0x134] sm:$0xf] %v1038
      %v1041 = vld [vmem:[%s304] sm:$0xff]
      %v1043 = vcombine.high %v1041, %v1041
      %1044 = vrot.lane.b32.xlu0 %v1041, 108
      %v1045 = vpop.permute.xlu0 %1044
      %1046 = vrot.lane.b32.xlu0 %v1043, 108
      %v1047 = vpop.permute.xlu0 %1046
      %v1048 = vsel %vm382, %v1045, %v1047
      %1050 = vst [vmem:[#allocation2 + $0x138] sm:$0xf] %v1048
      %v1051 = vld [vmem:[%s304] sm:$0xff]
      %v1053 = vcombine.high %v1051, %v1051
      %1054 = vrot.lane.b32.xlu0 %v1051, 107
      %v1055 = vpop.permute.xlu0 %1054
      %1056 = vrot.lane.b32.xlu0 %v1053, 107
      %v1057 = vpop.permute.xlu0 %1056
      %v1058 = vsel %vm393, %v1055, %v1057
      %1060 = vst [vmem:[#allocation2 + $0x13c] sm:$0xf] %v1058
      %v1061 = vld [vmem:[%s304] sm:$0xff]
      %v1063 = vcombine.high %v1061, %v1061
      %1064 = vrot.lane.b32.xlu0 %v1061, 106
      %v1065 = vpop.permute.xlu0 %1064
      %1066 = vrot.lane.b32.xlu0 %v1063, 106
      %v1067 = vpop.permute.xlu0 %1066
      %v1068 = vsel %vm404, %v1065, %v1067
      %1070 = vst [vmem:[#allocation2 + $0x140] sm:$0xf] %v1068
      %s1071 = scalar_lea.vmem %s304, 8
      %v1072 = vld [vmem:[%s1071] sm:$0xf]
      %1073 = vst [vmem:[#allocation2 + $0x144] sm:$0xf] %v1072
      %v1074 = vld [vmem:[%s1071] sm:$0xff]
      %v1076 = vcombine.high %v1074, %v1074
      %1077 = vrot.lane.b32.xlu0 %v1074, 127
      %v1078 = vpop.permute.xlu0 %1077
      %1079 = vrot.lane.b32.xlu0 %v1076, 127
      %v1080 = vpop.permute.xlu0 %1079
      %v1081 = vsel %vm327, %v1078, %v1080
      %1083 = vst [vmem:[#allocation2 + $0x148] sm:$0xf] %v1081
      %v1084 = vld [vmem:[%s1071] sm:$0xff]
      %v1086 = vcombine.high %v1084, %v1084
      %1087 = vrot.lane.b32.xlu0 %v1084, 126
      %v1088 = vpop.permute.xlu0 %1087
      %1089 = vrot.lane.b32.xlu0 %v1086, 126
      %v1090 = vpop.permute.xlu0 %1089
      %v1091 = vsel %vm338, %v1088, %v1090
      %1093 = vst [vmem:[#allocation2 + $0x14c] sm:$0xf] %v1091
      %v1094 = vld [vmem:[%s1071] sm:$0xff]
      %v1096 = vcombine.high %v1094, %v1094
      %1097 = vrot.lane.b32.xlu0 %v1094, 118
      %v1098 = vpop.permute.xlu0 %1097
      %1099 = vrot.lane.b32.xlu0 %v1096, 118
      %v1100 = vpop.permute.xlu0 %1099
      %v1101 = vsel %vm349, %v1098, %v1100
      %1103 = vst [vmem:[#allocation2 + $0x150] sm:$0xf] %v1101
      %v1104 = vld [vmem:[%s1071] sm:$0xff]
      %v1106 = vcombine.high %v1104, %v1104
      %1107 = vrot.lane.b32.xlu0 %v1104, 117
      %v1108 = vpop.permute.xlu0 %1107
      %1109 = vrot.lane.b32.xlu0 %v1106, 117
      %v1110 = vpop.permute.xlu0 %1109
      %v1111 = vsel %vm360, %v1108, %v1110
      %1113 = vst [vmem:[#allocation2 + $0x154] sm:$0xf] %v1111
      %v1114 = vld [vmem:[%s1071] sm:$0xff]
      %v1116 = vcombine.high %v1114, %v1114
      %1117 = vrot.lane.b32.xlu0 %v1114, 116
      %v1118 = vpop.permute.xlu0 %1117
      %1119 = vrot.lane.b32.xlu0 %v1116, 116
      %v1120 = vpop.permute.xlu0 %1119
      %v1121 = vsel %vm371, %v1118, %v1120
      %1123 = vst [vmem:[#allocation2 + $0x158] sm:$0xf] %v1121
      %v1124 = vld [vmem:[%s1071] sm:$0xff]
      %v1126 = vcombine.high %v1124, %v1124
      %1127 = vrot.lane.b32.xlu0 %v1124, 108
      %v1128 = vpop.permute.xlu0 %1127
      %1129 = vrot.lane.b32.xlu0 %v1126, 108
      %v1130 = vpop.permute.xlu0 %1129
      %v1131 = vsel %vm382, %v1128, %v1130
      %1133 = vst [vmem:[#allocation2 + $0x15c] sm:$0xf] %v1131
      %v1134 = vld [vmem:[%s1071] sm:$0xff]
      %v1136 = vcombine.high %v1134, %v1134
      %1137 = vrot.lane.b32.xlu0 %v1134, 107
      %v1138 = vpop.permute.xlu0 %1137
      %1139 = vrot.lane.b32.xlu0 %v1136, 107
      %v1140 = vpop.permute.xlu0 %1139
      %v1141 = vsel %vm393, %v1138, %v1140
      %1143 = vst [vmem:[#allocation2 + $0x160] sm:$0xf] %v1141
      %v1144 = vld [vmem:[%s1071] sm:$0xff]
      %v1146 = vcombine.high %v1144, %v1144
      %1147 = vrot.lane.b32.xlu0 %v1144, 106
      %v1148 = vpop.permute.xlu0 %1147
      %1149 = vrot.lane.b32.xlu0 %v1146, 106
      %v1150 = vpop.permute.xlu0 %1149
      %v1151 = vsel %vm404, %v1148, %v1150
      %1153 = vst [vmem:[#allocation2 + $0x164] sm:$0xf] %v1151
      %v1154 = vld [vmem:[%s2] sm:$0xff]
      %v1155 = vld [vmem:[%s3] sm:$0xff]
      %v1156 = vld [vmem:[#allocation2] sm:$0xff]
      %v1157 = vld [vmem:[#allocation2 + $0x8] sm:$0xff]
      %v1158 = vld [vmem:[#allocation2 + $0x10] sm:$0xff]
      %v1159 = vld [vmem:[#allocation2 + $0x18] sm:$0xff]
      %v1160 = vld [vmem:[#allocation2 + $0x20] sm:$0xff]
      %v1161 = vld [vmem:[#allocation2 + $0x28] sm:$0xff]
      %v1162 = vld [vmem:[#allocation2 + $0x30] sm:$0xff]
      %v1163 = vld [vmem:[#allocation2 + $0x38] sm:$0xff]
      %v1164 = vld [vmem:[#allocation2 + $0x40] sm:$0xff]
      %v1165 = vld [vmem:[#allocation2 + $0x48] sm:$0xff]
      %v1166 = vld [vmem:[#allocation2 + $0x50] sm:$0xff]
      %v1167 = vld [vmem:[#allocation2 + $0x58] sm:$0xff]
      %v1168 = vld [vmem:[#allocation2 + $0x60] sm:$0xff]
      %v1169 = vld [vmem:[#allocation2 + $0x68] sm:$0xf]
      %1171 = vset.pattern.permute.xlu0 0
      %1172 = vperm.xlu0 %1171, %v1155
      %v1173 = vpop.permute.xlu0 %1172
      %v1176 = vsel %vm382, %v1154, 0
      %vm1178 = vcmask 1043456
      %v1180 = vsel %vm1178, %v1169, 0
      %1182 = vmatprep.subr.mxu0 0.0
      %1183 = vmatpush1.msra.mxu0 %v1156
      %1184 = vmatprep.subr.mxu0 0.0
      %1185 = vmatpush1.msra.mxu0 %v1157
      %1186 = vmatprep.subr.mxu0 0.0
      %1187 = vmatpush1.msra.mxu0 %v1158
      %1188 = vmatprep.subr.mxu0 0.0
      %1189 = vmatpush1.msra.mxu0 %v1159
      %1190 = vmatprep.subr.mxu0 0.0
      %1191 = vmatpush1.msra.mxu0 %v1160
      %1192 = vmatprep.subr.mxu0 0.0
      %1193 = vmatpush1.msra.mxu0 %v1161
      %1194 = vmatprep.subr.mxu0 0.0
      %1195 = vmatpush1.msra.mxu0 %v1162
      %1196 = vmatprep.subr.mxu0 0.0
      %1197 = vmatpush1.msra.mxu0 %v1163
      %1198 = vmatprep.subr.mxu0 0.0
      %1199 = vmatpush1.msra.mxu0 %v1164
      %1200 = vmatprep.subr.mxu0 0.0
      %1201 = vmatpush1.msra.mxu0 %v1165
      %1202 = vmatprep.subr.mxu0 0.0
      %1203 = vmatpush1.msra.mxu0 %v1166
      %1204 = vmatprep.subr.mxu0 0.0
      %1205 = vmatpush1.msra.mxu0 %v1167
      %1206 = vmatprep.subr.mxu0 0.0
      %1207 = vmatpush1.msra.mxu0 %v1168
      %1208 = vmatprep.subr.mxu0 0.0
      %1209 = vmatpush1.msra.mxu0 %v1180
      %1210 = vmatprep.subr.mxu0 0.0
      %1211 = vmatpush1.msra.mxu0 0.0
      %1212 = vmatprep.subr.mxu0 0.0
      %1213 = vmatpush1.msra.mxu0 0.0
      %1214 = vmatprep.subr.mxu0 0.0
      %1215 = vmatpush1.msra.mxu0 0.0
      %1216 = vmatprep.subr.mxu0 0.0
      %1217 = vmatpush1.msra.mxu0 0.0
      %1218 = vmatprep.subr.mxu0 0.0
      %1219 = vmatpush1.msra.mxu0 0.0
      %1220 = vmatprep.subr.mxu0 0.0
      %1221 = vmatpush1.msra.mxu0 0.0
      %1222 = vmatprep.subr.mxu0 0.0
      %1223 = vmatpush1.msra.mxu0 0.0
      %1224 = vmatprep.subr.mxu0 0.0
      %1225 = vmatpush1.msra.mxu0 0.0
      %1226 = vmatprep.subr.mxu0 0.0
      %1227 = vmatpush1.msra.mxu0 0.0
      %1228 = vmatprep.subr.mxu0 0.0
      %1229 = vmatpush1.msra.mxu0 0.0
      %1230 = vmatprep.subr.mxu0 0.0
      %1231 = vmatpush1.msra.mxu0 0.0
      %1232 = vmatprep.subr.mxu0 0.0
      %1233 = vmatpush1.msra.mxu0 0.0
      %1234 = vmatprep.subr.mxu0 0.0
      %1235 = vmatpush1.msra.mxu0 0.0
      %1236 = vmatprep.subr.mxu0 0.0
      %1237 = vmatpush1.msra.mxu0 0.0
      %1238 = vmatprep.subr.mxu0 0.0
      %1239 = vmatpush1.msra.mxu0 0.0
      %1240 = vmatprep.subr.mxu0 0.0
      %1241 = vmatpush1.msra.mxu0 0.0
      %1242 = vmatprep.subr.mxu0 0.0
      %1243 = vmatpush1.msra.mxu0 0.0
      %1244 = vmatprep.subr.mxu0 0.0
      %1245 = vmatpush1.msra.mxu0 0.0
      %1246 = vmatprep.mubr.f32.mxu0 0.0
      %1247 = vmatmul.mubr.f32.gmra.mrb[0].mxu0 %v1176
      %v1248 = vpop.f32.mrb[0].mxu0
      %v1249 = vadd.f32 %v1173, %v1248
      %v1250 = vpop.f32.mrb[0].mxu0
      %1251 = vdwg.mxu0
      %1252 = vst [vmem:[%s316] sm:$0xff] %v1249
      %v1253 = vld [vmem:[#allocation2 + $0x24] sm:$0xff]
      %v1254 = vld [vmem:[#allocation2 + $0x2c] sm:$0xff]
      %v1255 = vld [vmem:[#allocation2 + $0x34] sm:$0xff]
      %v1256 = vld [vmem:[#allocation2 + $0x3c] sm:$0xff]
      %v1257 = vld [vmem:[#allocation2 + $0x44] sm:$0xff]
      %v1258 = vld [vmem:[#allocation2 + $0x4c] sm:$0xff]
      %v1259 = vld [vmem:[#allocation2 + $0x54] sm:$0xff]
      %v1260 = vld [vmem:[#allocation2 + $0x5c] sm:$0xff]
      %v1261 = vld [vmem:[#allocation2 + $0x64] sm:$0xff]
      %v1262 = vld [vmem:[#allocation2 + $0x6c] sm:$0xff]
      %v1263 = vld [vmem:[#allocation2 + $0x74] sm:$0xff]
      %v1264 = vld [vmem:[#allocation2 + $0x7c] sm:$0xff]
      %v1265 = vld [vmem:[#allocation2 + $0x84] sm:$0xff]
      %v1266 = vld [vmem:[#allocation2 + $0x8c] sm:$0xf]
      %v1268 = vsel %vm1178, %v1266, 0
      %1270 = vmatprep.subr.mxu0 0.0
      %1271 = vmatpush1.msra.mxu0 %v1253
      %1272 = vmatprep.subr.mxu0 0.0
      %1273 = vmatpush1.msra.mxu0 %v1254
      %1274 = vmatprep.subr.mxu0 0.0
      %1275 = vmatpush1.msra.mxu0 %v1255
      %1276 = vmatprep.subr.mxu0 0.0
      %1277 = vmatpush1.msra.mxu0 %v1256
      %1278 = vmatprep.subr.mxu0 0.0
      %1279 = vmatpush1.msra.mxu0 %v1257
      %1280 = vmatprep.subr.mxu0 0.0
      %1281 = vmatpush1.msra.mxu0 %v1258
      %1282 = vmatprep.subr.mxu0 0.0
      %1283 = vmatpush1.msra.mxu0 %v1259
      %1284 = vmatprep.subr.mxu0 0.0
      %1285 = vmatpush1.msra.mxu0 %v1260
      %1286 = vmatprep.subr.mxu0 0.0
      %1287 = vmatpush1.msra.mxu0 %v1261
      %1288 = vmatprep.subr.mxu0 0.0
      %1289 = vmatpush1.msra.mxu0 %v1262
      %1290 = vmatprep.subr.mxu0 0.0
      %1291 = vmatpush1.msra.mxu0 %v1263
      %1292 = vmatprep.subr.mxu0 0.0
      %1293 = vmatpush1.msra.mxu0 %v1264
      %1294 = vmatprep.subr.mxu0 0.0
      %1295 = vmatpush1.msra.mxu0 %v1265
      %1296 = vmatprep.subr.mxu0 0.0
      %1297 = vmatpush1.msra.mxu0 %v1268
      %1298 = vmatprep.subr.mxu0 0.0
      %1299 = vmatpush1.msra.mxu0 0.0
      %1300 = vmatprep.subr.mxu0 0.0
      %1301 = vmatpush1.msra.mxu0 0.0
      %1302 = vmatprep.subr.mxu0 0.0
      %1303 = vmatpush1.msra.mxu0 0.0
      %1304 = vmatprep.subr.mxu0 0.0
      %1305 = vmatpush1.msra.mxu0 0.0
      %1306 = vmatprep.subr.mxu0 0.0
      %1307 = vmatpush1.msra.mxu0 0.0
      %1308 = vmatprep.subr.mxu0 0.0
      %1309 = vmatpush1.msra.mxu0 0.0
      %1310 = vmatprep.subr.mxu0 0.0
      %1311 = vmatpush1.msra.mxu0 0.0
      %1312 = vmatprep.subr.mxu0 0.0
      %1313 = vmatpush1.msra.mxu0 0.0
      %1314 = vmatprep.subr.mxu0 0.0
      %1315 = vmatpush1.msra.mxu0 0.0
      %1316 = vmatprep.subr.mxu0 0.0
      %1317 = vmatpush1.msra.mxu0 0.0
      %1318 = vmatprep.subr.mxu0 0.0
      %1319 = vmatpush1.msra.mxu0 0.0
      %1320 = vmatprep.subr.mxu0 0.0
      %1321 = vmatpush1.msra.mxu0 0.0
      %1322 = vmatprep.subr.mxu0 0.0
      %1323 = vmatpush1.msra.mxu0 0.0
      %1324 = vmatprep.subr.mxu0 0.0
      %1325 = vmatpush1.msra.mxu0 0.0
      %1326 = vmatprep.subr.mxu0 0.0
      %1327 = vmatpush1.msra.mxu0 0.0
      %1328 = vmatprep.subr.mxu0 0.0
      %1329 = vmatpush1.msra.mxu0 0.0
      %1330 = vmatprep.subr.mxu0 0.0
      %1331 = vmatpush1.msra.mxu0 0.0
      %1332 = vmatprep.subr.mxu0 0.0
      %1333 = vmatpush1.msra.mxu0 0.0
      %1334 = vmatprep.mubr.f32.mxu0 0.0
      %1335 = vmatmul.mubr.f32.gmra.mrb[0].mxu0 %v1176
      %v1336 = vpop.f32.mrb[0].mxu0
      %v1337 = vadd.f32 %v1173, %v1336
      %v1338 = vpop.f32.mrb[0].mxu0
      %1339 = vdwg.mxu0
      %s1340 = scalar_lea.vmem %s316, 8
      %1341 = vst [vmem:[%s1340] sm:$0xff] %v1337
      %v1342 = vld [vmem:[#allocation2 + $0x48] sm:$0xff]
      %v1343 = vld [vmem:[#allocation2 + $0x50] sm:$0xff]
      %v1344 = vld [vmem:[#allocation2 + $0x58] sm:$0xff]
      %v1345 = vld [vmem:[#allocation2 + $0x60] sm:$0xff]
      %v1346 = vld [vmem:[#allocation2 + $0x68] sm:$0xff]
      %v1347 = vld [vmem:[#allocation2 + $0x70] sm:$0xff]
      %v1348 = vld [vmem:[#allocation2 + $0x78] sm:$0xff]
      %v1349 = vld [vmem:[#allocation2 + $0x80] sm:$0xff]
      %v1350 = vld [vmem:[#allocation2 + $0x88] sm:$0xff]
      %v1351 = vld [vmem:[#allocation2 + $0x90] sm:$0xff]
      %v1352 = vld [vmem:[#allocation2 + $0x98] sm:$0xff]
      %v1353 = vld [vmem:[#allocation2 + $0xa0] sm:$0xff]
      %v1354 = vld [vmem:[#allocation2 + $0xa8] sm:$0xff]
      %v1355 = vld [vmem:[#allocation2 + $0xb0] sm:$0xf]
      %v1357 = vsel %vm1178, %v1355, 0
      %1359 = vmatprep.subr.mxu0 0.0
      %1360 = vmatpush1.msra.mxu0 %v1342
      %1361 = vmatprep.subr.mxu0 0.0
      %1362 = vmatpush1.msra.mxu0 %v1343
      %1363 = vmatprep.subr.mxu0 0.0
      %1364 = vmatpush1.msra.mxu0 %v1344
      %1365 = vmatprep.subr.mxu0 0.0
      %1366 = vmatpush1.msra.mxu0 %v1345
      %1367 = vmatprep.subr.mxu0 0.0
      %1368 = vmatpush1.msra.mxu0 %v1346
      %1369 = vmatprep.subr.mxu0 0.0
      %1370 = vmatpush1.msra.mxu0 %v1347
      %1371 = vmatprep.subr.mxu0 0.0
      %1372 = vmatpush1.msra.mxu0 %v1348
      %1373 = vmatprep.subr.mxu0 0.0
      %1374 = vmatpush1.msra.mxu0 %v1349
      %1375 = vmatprep.subr.mxu0 0.0
      %1376 = vmatpush1.msra.mxu0 %v1350
      %1377 = vmatprep.subr.mxu0 0.0
      %1378 = vmatpush1.msra.mxu0 %v1351
      %1379 = vmatprep.subr.mxu0 0.0
      %1380 = vmatpush1.msra.mxu0 %v1352
      %1381 = vmatprep.subr.mxu0 0.0
      %1382 = vmatpush1.msra.mxu0 %v1353
      %1383 = vmatprep.subr.mxu0 0.0
      %1384 = vmatpush1.msra.mxu0 %v1354
      %1385 = vmatprep.subr.mxu0 0.0
      %1386 = vmatpush1.msra.mxu0 %v1357
      %1387 = vmatprep.subr.mxu0 0.0
      %1388 = vmatpush1.msra.mxu0 0.0
      %1389 = vmatprep.subr.mxu0 0.0
      %1390 = vmatpush1.msra.mxu0 0.0
      %1391 = vmatprep.subr.mxu0 0.0
      %1392 = vmatpush1.msra.mxu0 0.0
      %1393 = vmatprep.subr.mxu0 0.0
      %1394 = vmatpush1.msra.mxu0 0.0
      %1395 = vmatprep.subr.mxu0 0.0
      %1396 = vmatpush1.msra.mxu0 0.0
      %1397 = vmatprep.subr.mxu0 0.0
      %1398 = vmatpush1.msra.mxu0 0.0
      %1399 = vmatprep.subr.mxu0 0.0
      %1400 = vmatpush1.msra.mxu0 0.0
      %1401 = vmatprep.subr.mxu0 0.0
      %1402 = vmatpush1.msra.mxu0 0.0
      %1403 = vmatprep.subr.mxu0 0.0
      %1404 = vmatpush1.msra.mxu0 0.0
      %1405 = vmatprep.subr.mxu0 0.0
      %1406 = vmatpush1.msra.mxu0 0.0
      %1407 = vmatprep.subr.mxu0 0.0
      %1408 = vmatpush1.msra.mxu0 0.0
      %1409 = vmatprep.subr.mxu0 0.0
      %1410 = vmatpush1.msra.mxu0 0.0
      %1411 = vmatprep.subr.mxu0 0.0
      %1412 = vmatpush1.msra.mxu0 0.0
      %1413 = vmatprep.subr.mxu0 0.0
      %1414 = vmatpush1.msra.mxu0 0.0
      %1415 = vmatprep.subr.mxu0 0.0
      %1416 = vmatpush1.msra.mxu0 0.0
      %1417 = vmatprep.subr.mxu0 0.0
      %1418 = vmatpush1.msra.mxu0 0.0
      %1419 = vmatprep.subr.mxu0 0.0
      %1420 = vmatpush1.msra.mxu0 0.0
      %1421 = vmatprep.subr.mxu0 0.0
      %1422 = vmatpush1.msra.mxu0 0.0
      %1423 = vmatprep.mubr.f32.mxu0 0.0
      %1424 = vmatmul.mubr.f32.gmra.mrb[0].mxu0 %v1176
      %v1425 = vpop.f32.mrb[0].mxu0
      %v1426 = vadd.f32 %v1173, %v1425
      %v1427 = vpop.f32.mrb[0].mxu0
      %1428 = vdwg.mxu0
      %s1429 = scalar_lea.vmem %s316, 16
      %1430 = vst [vmem:[%s1429] sm:$0xff] %v1426
      %v1431 = vld [vmem:[#allocation2 + $0x6c] sm:$0xff]
      %v1432 = vld [vmem:[#allocation2 + $0x74] sm:$0xff]
      %v1433 = vld [vmem:[#allocation2 + $0x7c] sm:$0xff]
      %v1434 = vld [vmem:[#allocation2 + $0x84] sm:$0xff]
      %v1435 = vld [vmem:[#allocation2 + $0x8c] sm:$0xff]
      %v1436 = vld [vmem:[#allocation2 + $0x94] sm:$0xff]
      %v1437 = vld [vmem:[#allocation2 + $0x9c] sm:$0xff]
      %v1438 = vld [vmem:[#allocation2 + $0xa4] sm:$0xff]
      %v1439 = vld [vmem:[#allocation2 + $0xac] sm:$0xff]
      %v1440 = vld [vmem:[#allocation2 + $0xb4] sm:$0xff]
      %v1441 = vld [vmem:[#allocation2 + $0xbc] sm:$0xff]
      %v1442 = vld [vmem:[#allocation2 + $0xc4] sm:$0xff]
      %v1443 = vld [vmem:[#allocation2 + $0xcc] sm:$0xff]
      %v1444 = vld [vmem:[#allocation2 + $0xd4] sm:$0xf]
      %v1446 = vsel %vm1178, %v1444, 0
      %1448 = vmatprep.subr.mxu0 0.0
      %1449 = vmatpush1.msra.mxu0 %v1431
      %1450 = vmatprep.subr.mxu0 0.0
      %1451 = vmatpush1.msra.mxu0 %v1432
      %1452 = vmatprep.subr.mxu0 0.0
      %1453 = vmatpush1.msra.mxu0 %v1433
      %1454 = vmatprep.subr.mxu0 0.0
      %1455 = vmatpush1.msra.mxu0 %v1434
      %1456 = vmatprep.subr.mxu0 0.0
      %1457 = vmatpush1.msra.mxu0 %v1435
      %1458 = vmatprep.subr.mxu0 0.0
      %1459 = vmatpush1.msra.mxu0 %v1436
      %1460 = vmatprep.subr.mxu0 0.0
      %1461 = vmatpush1.msra.mxu0 %v1437
      %1462 = vmatprep.subr.mxu0 0.0
      %1463 = vmatpush1.msra.mxu0 %v1438
      %1464 = vmatprep.subr.mxu0 0.0
      %1465 = vmatpush1.msra.mxu0 %v1439
      %1466 = vmatprep.subr.mxu0 0.0
      %1467 = vmatpush1.msra.mxu0 %v1440
      %1468 = vmatprep.subr.mxu0 0.0
      %1469 = vmatpush1.msra.mxu0 %v1441
      %1470 = vmatprep.subr.mxu0 0.0
      %1471 = vmatpush1.msra.mxu0 %v1442
      %1472 = vmatprep.subr.mxu0 0.0
      %1473 = vmatpush1.msra.mxu0 %v1443
      %1474 = vmatprep.subr.mxu0 0.0
      %1475 = vmatpush1.msra.mxu0 %v1446
      %1476 = vmatprep.subr.mxu0 0.0
      %1477 = vmatpush1.msra.mxu0 0.0
      %1478 = vmatprep.subr.mxu0 0.0
      %1479 = vmatpush1.msra.mxu0 0.0
      %1480 = vmatprep.subr.mxu0 0.0
      %1481 = vmatpush1.msra.mxu0 0.0
      %1482 = vmatprep.subr.mxu0 0.0
      %1483 = vmatpush1.msra.mxu0 0.0
      %1484 = vmatprep.subr.mxu0 0.0
      %1485 = vmatpush1.msra.mxu0 0.0
      %1486 = vmatprep.subr.mxu0 0.0
      %1487 = vmatpush1.msra.mxu0 0.0
      %1488 = vmatprep.subr.mxu0 0.0
      %1489 = vmatpush1.msra.mxu0 0.0
      %1490 = vmatprep.subr.mxu0 0.0
      %1491 = vmatpush1.msra.mxu0 0.0
      %1492 = vmatprep.subr.mxu0 0.0
      %1493 = vmatpush1.msra.mxu0 0.0
      %1494 = vmatprep.subr.mxu0 0.0
      %1495 = vmatpush1.msra.mxu0 0.0
      %1496 = vmatprep.subr.mxu0 0.0
      %1497 = vmatpush1.msra.mxu0 0.0
      %1498 = vmatprep.subr.mxu0 0.0
      %1499 = vmatpush1.msra.mxu0 0.0
      %1500 = vmatprep.subr.mxu0 0.0
      %1501 = vmatpush1.msra.mxu0 0.0
      %1502 = vmatprep.subr.mxu0 0.0
      %1503 = vmatpush1.msra.mxu0 0.0
      %1504 = vmatprep.subr.mxu0 0.0
      %1505 = vmatpush1.msra.mxu0 0.0
      %1506 = vmatprep.subr.mxu0 0.0
      %1507 = vmatpush1.msra.mxu0 0.0
      %1508 = vmatprep.subr.mxu0 0.0
      %1509 = vmatpush1.msra.mxu0 0.0
      %1510 = vmatprep.subr.mxu0 0.0
      %1511 = vmatpush1.msra.mxu0 0.0
      %1512 = vmatprep.mubr.f32.mxu0 0.0
      %1513 = vmatmul.mubr.f32.gmra.mrb[0].mxu0 %v1176
      %v1514 = vpop.f32.mrb[0].mxu0
      %v1515 = vadd.f32 %v1173, %v1514
      %v1516 = vpop.f32.mrb[0].mxu0
      %1517 = vdwg.mxu0
      %s1518 = scalar_lea.vmem %s316, 24
      %1519 = vst [vmem:[%s1518] sm:$0xff] %v1515
      %v1520 = vld [vmem:[#allocation2 + $0x90] sm:$0xff]
      %v1521 = vld [vmem:[#allocation2 + $0x98] sm:$0xff]
      %v1522 = vld [vmem:[#allocation2 + $0xa0] sm:$0xff]
      %v1523 = vld [vmem:[#allocation2 + $0xa8] sm:$0xff]
      %v1524 = vld [vmem:[#allocation2 + $0xb0] sm:$0xff]
      %v1525 = vld [vmem:[#allocation2 + $0xb8] sm:$0xff]
      %v1526 = vld [vmem:[#allocation2 + $0xc0] sm:$0xff]
      %v1527 = vld [vmem:[#allocation2 + $0xc8] sm:$0xff]
      %v1528 = vld [vmem:[#allocation2 + $0xd0] sm:$0xff]
      %v1529 = vld [vmem:[#allocation2 + $0xd8] sm:$0xff]
      %v1530 = vld [vmem:[#allocation2 + $0xe0] sm:$0xff]
      %v1531 = vld [vmem:[#allocation2 + $0xe8] sm:$0xff]
      %v1532 = vld [vmem:[#allocation2 + $0xf0] sm:$0xff]
      %v1533 = vld [vmem:[#allocation2 + $0xf8] sm:$0xf]
      %v1535 = vsel %vm1178, %v1533, 0
      %1537 = vmatprep.subr.mxu0 0.0
      %1538 = vmatpush1.msra.mxu0 %v1520
      %1539 = vmatprep.subr.mxu0 0.0
      %1540 = vmatpush1.msra.mxu0 %v1521
      %1541 = vmatprep.subr.mxu0 0.0
      %1542 = vmatpush1.msra.mxu0 %v1522
      %1543 = vmatprep.subr.mxu0 0.0
      %1544 = vmatpush1.msra.mxu0 %v1523
      %1545 = vmatprep.subr.mxu0 0.0
      %1546 = vmatpush1.msra.mxu0 %v1524
      %1547 = vmatprep.subr.mxu0 0.0
      %1548 = vmatpush1.msra.mxu0 %v1525
      %1549 = vmatprep.subr.mxu0 0.0
      %1550 = vmatpush1.msra.mxu0 %v1526
      %1551 = vmatprep.subr.mxu0 0.0
      %1552 = vmatpush1.msra.mxu0 %v1527
      %1553 = vmatprep.subr.mxu0 0.0
      %1554 = vmatpush1.msra.mxu0 %v1528
      %1555 = vmatprep.subr.mxu0 0.0
      %1556 = vmatpush1.msra.mxu0 %v1529
      %1557 = vmatprep.subr.mxu0 0.0
      %1558 = vmatpush1.msra.mxu0 %v1530
      %1559 = vmatprep.subr.mxu0 0.0
      %1560 = vmatpush1.msra.mxu0 %v1531
      %1561 = vmatprep.subr.mxu0 0.0
      %1562 = vmatpush1.msra.mxu0 %v1532
      %1563 = vmatprep.subr.mxu0 0.0
      %1564 = vmatpush1.msra.mxu0 %v1535
      %1565 = vmatprep.subr.mxu0 0.0
      %1566 = vmatpush1.msra.mxu0 0.0
      %1567 = vmatprep.subr.mxu0 0.0
      %1568 = vmatpush1.msra.mxu0 0.0
      %1569 = vmatprep.subr.mxu0 0.0
      %1570 = vmatpush1.msra.mxu0 0.0
      %1571 = vmatprep.subr.mxu0 0.0
      %1572 = vmatpush1.msra.mxu0 0.0
      %1573 = vmatprep.subr.mxu0 0.0
      %1574 = vmatpush1.msra.mxu0 0.0
      %1575 = vmatprep.subr.mxu0 0.0
      %1576 = vmatpush1.msra.mxu0 0.0
      %1577 = vmatprep.subr.mxu0 0.0
      %1578 = vmatpush1.msra.mxu0 0.0
      %1579 = vmatprep.subr.mxu0 0.0
      %1580 = vmatpush1.msra.mxu0 0.0
      %1581 = vmatprep.subr.mxu0 0.0
      %1582 = vmatpush1.msra.mxu0 0.0
      %1583 = vmatprep.subr.mxu0 0.0
      %1584 = vmatpush1.msra.mxu0 0.0
      %1585 = vmatprep.subr.mxu0 0.0
      %1586 = vmatpush1.msra.mxu0 0.0
      %1587 = vmatprep.subr.mxu0 0.0
      %1588 = vmatpush1.msra.mxu0 0.0
      %1589 = vmatprep.subr.mxu0 0.0
      %1590 = vmatpush1.msra.mxu0 0.0
      %1591 = vmatprep.subr.mxu0 0.0
      %1592 = vmatpush1.msra.mxu0 0.0
      %1593 = vmatprep.subr.mxu0 0.0
      %1594 = vmatpush1.msra.mxu0 0.0
      %1595 = vmatprep.subr.mxu0 0.0
      %1596 = vmatpush1.msra.mxu0 0.0
      %1597 = vmatprep.subr.mxu0 0.0
      %1598 = vmatpush1.msra.mxu0 0.0
      %1599 = vmatprep.subr.mxu0 0.0
      %1600 = vmatpush1.msra.mxu0 0.0
      %1601 = vmatprep.mubr.f32.mxu0 0.0
      %1602 = vmatmul.mubr.f32.gmra.mrb[0].mxu0 %v1176
      %v1603 = vpop.f32.mrb[0].mxu0
      %v1604 = vadd.f32 %v1173, %v1603
      %v1605 = vpop.f32.mrb[0].mxu0
      %1606 = vdwg.mxu0
      %s1607 = scalar_lea.vmem %s316, 32
      %1608 = vst [vmem:[%s1607] sm:$0xff] %v1604
      %v1609 = vld [vmem:[#allocation2 + $0xb4] sm:$0xff]
      %v1610 = vld [vmem:[#allocation2 + $0xbc] sm:$0xff]
      %v1611 = vld [vmem:[#allocation2 + $0xc4] sm:$0xff]
      %v1612 = vld [vmem:[#allocation2 + $0xcc] sm:$0xff]
      %v1613 = vld [vmem:[#allocation2 + $0xd4] sm:$0xff]
      %v1614 = vld [vmem:[#allocation2 + $0xdc] sm:$0xff]
      %v1615 = vld [vmem:[#allocation2 + $0xe4] sm:$0xff]
      %v1616 = vld [vmem:[#allocation2 + $0xec] sm:$0xff]
      %v1617 = vld [vmem:[#allocation2 + $0xf4] sm:$0xff]
      %v1618 = vld [vmem:[#allocation2 + $0xfc] sm:$0xff]
      %v1619 = vld [vmem:[#allocation2 + $0x104] sm:$0xff]
      %v1620 = vld [vmem:[#allocation2 + $0x10c] sm:$0xff]
      %v1621 = vld [vmem:[#allocation2 + $0x114] sm:$0xff]
      %v1622 = vld [vmem:[#allocation2 + $0x11c] sm:$0xf]
      %v1624 = vsel %vm1178, %v1622, 0
      %1626 = vmatprep.subr.mxu0 0.0
      %1627 = vmatpush1.msra.mxu0 %v1609
      %1628 = vmatprep.subr.mxu0 0.0
      %1629 = vmatpush1.msra.mxu0 %v1610
      %1630 = vmatprep.subr.mxu0 0.0
      %1631 = vmatpush1.msra.mxu0 %v1611
      %1632 = vmatprep.subr.mxu0 0.0
      %1633 = vmatpush1.msra.mxu0 %v1612
      %1634 = vmatprep.subr.mxu0 0.0
      %1635 = vmatpush1.msra.mxu0 %v1613
      %1636 = vmatprep.subr.mxu0 0.0
      %1637 = vmatpush1.msra.mxu0 %v1614
      %1638 = vmatprep.subr.mxu0 0.0
      %1639 = vmatpush1.msra.mxu0 %v1615
      %1640 = vmatprep.subr.mxu0 0.0
      %1641 = vmatpush1.msra.mxu0 %v1616
      %1642 = vmatprep.subr.mxu0 0.0
      %1643 = vmatpush1.msra.mxu0 %v1617
      %1644 = vmatprep.subr.mxu0 0.0
      %1645 = vmatpush1.msra.mxu0 %v1618
      %1646 = vmatprep.subr.mxu0 0.0
      %1647 = vmatpush1.msra.mxu0 %v1619
      %1648 = vmatprep.subr.mxu0 0.0
      %1649 = vmatpush1.msra.mxu0 %v1620
      %1650 = vmatprep.subr.mxu0 0.0
      %1651 = vmatpush1.msra.mxu0 %v1621
      %1652 = vmatprep.subr.mxu0 0.0
      %1653 = vmatpush1.msra.mxu0 %v1624
      %1654 = vmatprep.subr.mxu0 0.0
      %1655 = vmatpush1.msra.mxu0 0.0
      %1656 = vmatprep.subr.mxu0 0.0
      %1657 = vmatpush1.msra.mxu0 0.0
      %1658 = vmatprep.subr.mxu0 0.0
      %1659 = vmatpush1.msra.mxu0 0.0
      %1660 = vmatprep.subr.mxu0 0.0
      %1661 = vmatpush1.msra.mxu0 0.0
      %1662 = vmatprep.subr.mxu0 0.0
      %1663 = vmatpush1.msra.mxu0 0.0
      %1664 = vmatprep.subr.mxu0 0.0
      %1665 = vmatpush1.msra.mxu0 0.0
      %1666 = vmatprep.subr.mxu0 0.0
      %1667 = vmatpush1.msra.mxu0 0.0
      %1668 = vmatprep.subr.mxu0 0.0
      %1669 = vmatpush1.msra.mxu0 0.0
      %1670 = vmatprep.subr.mxu0 0.0
      %1671 = vmatpush1.msra.mxu0 0.0
      %1672 = vmatprep.subr.mxu0 0.0
      %1673 = vmatpush1.msra.mxu0 0.0
      %1674 = vmatprep.subr.mxu0 0.0
      %1675 = vmatpush1.msra.mxu0 0.0
      %1676 = vmatprep.subr.mxu0 0.0
      %1677 = vmatpush1.msra.mxu0 0.0
      %1678 = vmatprep.subr.mxu0 0.0
      %1679 = vmatpush1.msra.mxu0 0.0
      %1680 = vmatprep.subr.mxu0 0.0
      %1681 = vmatpush1.msra.mxu0 0.0
      %1682 = vmatprep.subr.mxu0 0.0
      %1683 = vmatpush1.msra.mxu0 0.0
      %1684 = vmatprep.subr.mxu0 0.0
      %1685 = vmatpush1.msra.mxu0 0.0
      %1686 = vmatprep.subr.mxu0 0.0
      %1687 = vmatpush1.msra.mxu0 0.0
      %1688 = vmatprep.subr.mxu0 0.0
      %1689 = vmatpush1.msra.mxu0 0.0
      %1690 = vmatprep.mubr.f32.mxu0 0.0
      %1691 = vmatmul.mubr.f32.gmra.mrb[0].mxu0 %v1176
      %v1692 = vpop.f32.mrb[0].mxu0
      %v1693 = vadd.f32 %v1173, %v1692
      %v1694 = vpop.f32.mrb[0].mxu0
      %1695 = vdwg.mxu0
      %s1696 = scalar_lea.vmem %s316, 40
      %1697 = vst [vmem:[%s1696] sm:$0xff] %v1693
      %v1698 = vld [vmem:[#allocation2 + $0xd8] sm:$0xff]
      %v1699 = vld [vmem:[#allocation2 + $0xe0] sm:$0xff]
      %v1700 = vld [vmem:[#allocation2 + $0xe8] sm:$0xff]
      %v1701 = vld [vmem:[#allocation2 + $0xf0] sm:$0xff]
      %v1702 = vld [vmem:[#allocation2 + $0xf8] sm:$0xff]
      %v1703 = vld [vmem:[#allocation2 + $0x100] sm:$0xff]
      %v1704 = vld [vmem:[#allocation2 + $0x108] sm:$0xff]
      %v1705 = vld [vmem:[#allocation2 + $0x110] sm:$0xff]
      %v1706 = vld [vmem:[#allocation2 + $0x118] sm:$0xff]
      %v1707 = vld [vmem:[#allocation2 + $0x120] sm:$0xff]
      %v1708 = vld [vmem:[#allocation2 + $0x128] sm:$0xff]
      %v1709 = vld [vmem:[#allocation2 + $0x130] sm:$0xff]
      %v1710 = vld [vmem:[#allocation2 + $0x138] sm:$0xff]
      %v1711 = vld [vmem:[#allocation2 + $0x140] sm:$0xf]
      %v1713 = vsel %vm1178, %v1711, 0
      %1715 = vmatprep.subr.mxu0 0.0
      %1716 = vmatpush1.msra.mxu0 %v1698
      %1717 = vmatprep.subr.mxu0 0.0
      %1718 = vmatpush1.msra.mxu0 %v1699
      %1719 = vmatprep.subr.mxu0 0.0
      %1720 = vmatpush1.msra.mxu0 %v1700
      %1721 = vmatprep.subr.mxu0 0.0
      %1722 = vmatpush1.msra.mxu0 %v1701
      %1723 = vmatprep.subr.mxu0 0.0
      %1724 = vmatpush1.msra.mxu0 %v1702
      %1725 = vmatprep.subr.mxu0 0.0
      %1726 = vmatpush1.msra.mxu0 %v1703
      %1727 = vmatprep.subr.mxu0 0.0
      %1728 = vmatpush1.msra.mxu0 %v1704
      %1729 = vmatprep.subr.mxu0 0.0
      %1730 = vmatpush1.msra.mxu0 %v1705
      %1731 = vmatprep.subr.mxu0 0.0
      %1732 = vmatpush1.msra.mxu0 %v1706
      %1733 = vmatprep.subr.mxu0 0.0
      %1734 = vmatpush1.msra.mxu0 %v1707
      %1735 = vmatprep.subr.mxu0 0.0
      %1736 = vmatpush1.msra.mxu0 %v1708
      %1737 = vmatprep.subr.mxu0 0.0
      %1738 = vmatpush1.msra.mxu0 %v1709
      %1739 = vmatprep.subr.mxu0 0.0
      %1740 = vmatpush1.msra.mxu0 %v1710
      %1741 = vmatprep.subr.mxu0 0.0
      %1742 = vmatpush1.msra.mxu0 %v1713
      %1743 = vmatprep.subr.mxu0 0.0
      %1744 = vmatpush1.msra.mxu0 0.0
      %1745 = vmatprep.subr.mxu0 0.0
      %1746 = vmatpush1.msra.mxu0 0.0
      %1747 = vmatprep.subr.mxu0 0.0
      %1748 = vmatpush1.msra.mxu0 0.0
      %1749 = vmatprep.subr.mxu0 0.0
      %1750 = vmatpush1.msra.mxu0 0.0
      %1751 = vmatprep.subr.mxu0 0.0
      %1752 = vmatpush1.msra.mxu0 0.0
      %1753 = vmatprep.subr.mxu0 0.0
      %1754 = vmatpush1.msra.mxu0 0.0
      %1755 = vmatprep.subr.mxu0 0.0
      %1756 = vmatpush1.msra.mxu0 0.0
      %1757 = vmatprep.subr.mxu0 0.0
      %1758 = vmatpush1.msra.mxu0 0.0
      %1759 = vmatprep.subr.mxu0 0.0
      %1760 = vmatpush1.msra.mxu0 0.0
      %1761 = vmatprep.subr.mxu0 0.0
      %1762 = vmatpush1.msra.mxu0 0.0
      %1763 = vmatprep.subr.mxu0 0.0
      %1764 = vmatpush1.msra.mxu0 0.0
      %1765 = vmatprep.subr.mxu0 0.0
      %1766 = vmatpush1.msra.mxu0 0.0
      %1767 = vmatprep.subr.mxu0 0.0
      %1768 = vmatpush1.msra.mxu0 0.0
      %1769 = vmatprep.subr.mxu0 0.0
      %1770 = vmatpush1.msra.mxu0 0.0
      %1771 = vmatprep.subr.mxu0 0.0
      %1772 = vmatpush1.msra.mxu0 0.0
      %1773 = vmatprep.subr.mxu0 0.0
      %1774 = vmatpush1.msra.mxu0 0.0
      %1775 = vmatprep.subr.mxu0 0.0
      %1776 = vmatpush1.msra.mxu0 0.0
      %1777 = vmatprep.subr.mxu0 0.0
      %1778 = vmatpush1.msra.mxu0 0.0
      %1779 = vmatprep.mubr.f32.mxu0 0.0
      %1780 = vmatmul.mubr.f32.gmra.mrb[0].mxu0 %v1176
      %v1781 = vpop.f32.mrb[0].mxu0
      %v1782 = vadd.f32 %v1173, %v1781
      %v1783 = vpop.f32.mrb[0].mxu0
      %1784 = vdwg.mxu0
      %s1785 = scalar_lea.vmem %s316, 48
      %1786 = vst [vmem:[%s1785] sm:$0xff] %v1782
      %v1787 = vld [vmem:[#allocation2 + $0xfc] sm:$0xff]
      %v1788 = vld [vmem:[#allocation2 + $0x104] sm:$0xff]
      %v1789 = vld [vmem:[#allocation2 + $0x10c] sm:$0xff]
      %v1790 = vld [vmem:[#allocation2 + $0x114] sm:$0xff]
      %v1791 = vld [vmem:[#allocation2 + $0x11c] sm:$0xff]
      %v1792 = vld [vmem:[#allocation2 + $0x124] sm:$0xff]
      %v1793 = vld [vmem:[#allocation2 + $0x12c] sm:$0xff]
      %v1794 = vld [vmem:[#allocation2 + $0x134] sm:$0xff]
      %v1795 = vld [vmem:[#allocation2 + $0x13c] sm:$0xff]
      %v1796 = vld [vmem:[#allocation2 + $0x144] sm:$0xff]
      %v1797 = vld [vmem:[#allocation2 + $0x14c] sm:$0xff]
      %v1798 = vld [vmem:[#allocation2 + $0x154] sm:$0xff]
      %v1799 = vld [vmem:[#allocation2 + $0x15c] sm:$0xff]
      %v1800 = vld [vmem:[#allocation2 + $0x164] sm:$0xf]
      %v1802 = vsel %vm1178, %v1800, 0
      %1804 = vmatprep.subr.mxu0 0.0
      %1805 = vmatpush1.msra.mxu0 %v1787
      %1806 = vmatprep.subr.mxu0 0.0
      %1807 = vmatpush1.msra.mxu0 %v1788
      %1808 = vmatprep.subr.mxu0 0.0
      %1809 = vmatpush1.msra.mxu0 %v1789
      %1810 = vmatprep.subr.mxu0 0.0
      %1811 = vmatpush1.msra.mxu0 %v1790
      %1812 = vmatprep.subr.mxu0 0.0
      %1813 = vmatpush1.msra.mxu0 %v1791
      %1814 = vmatprep.subr.mxu0 0.0
      %1815 = vmatpush1.msra.mxu0 %v1792
      %1816 = vmatprep.subr.mxu0 0.0
      %1817 = vmatpush1.msra.mxu0 %v1793
      %1818 = vmatprep.subr.mxu0 0.0
      %1819 = vmatpush1.msra.mxu0 %v1794
      %1820 = vmatprep.subr.mxu0 0.0
      %1821 = vmatpush1.msra.mxu0 %v1795
      %1822 = vmatprep.subr.mxu0 0.0
      %1823 = vmatpush1.msra.mxu0 %v1796
      %1824 = vmatprep.subr.mxu0 0.0
      %1825 = vmatpush1.msra.mxu0 %v1797
      %1826 = vmatprep.subr.mxu0 0.0
      %1827 = vmatpush1.msra.mxu0 %v1798
      %1828 = vmatprep.subr.mxu0 0.0
      %1829 = vmatpush1.msra.mxu0 %v1799
      %1830 = vmatprep.subr.mxu0 0.0
      %1831 = vmatpush1.msra.mxu0 %v1802
      %1832 = vmatprep.subr.mxu0 0.0
      %1833 = vmatpush1.msra.mxu0 0.0
      %1834 = vmatprep.subr.mxu0 0.0
      %1835 = vmatpush1.msra.mxu0 0.0
      %1836 = vmatprep.subr.mxu0 0.0
      %1837 = vmatpush1.msra.mxu0 0.0
      %1838 = vmatprep.subr.mxu0 0.0
      %1839 = vmatpush1.msra.mxu0 0.0
      %1840 = vmatprep.subr.mxu0 0.0
      %1841 = vmatpush1.msra.mxu0 0.0
      %1842 = vmatprep.subr.mxu0 0.0
      %1843 = vmatpush1.msra.mxu0 0.0
      %1844 = vmatprep.subr.mxu0 0.0
      %1845 = vmatpush1.msra.mxu0 0.0
      %1846 = vmatprep.subr.mxu0 0.0
      %1847 = vmatpush1.msra.mxu0 0.0
      %1848 = vmatprep.subr.mxu0 0.0
      %1849 = vmatpush1.msra.mxu0 0.0
      %1850 = vmatprep.subr.mxu0 0.0
      %1851 = vmatpush1.msra.mxu0 0.0
      %1852 = vmatprep.subr.mxu0 0.0
      %1853 = vmatpush1.msra.mxu0 0.0
      %1854 = vmatprep.subr.mxu0 0.0
      %1855 = vmatpush1.msra.mxu0 0.0
      %1856 = vmatprep.subr.mxu0 0.0
      %1857 = vmatpush1.msra.mxu0 0.0
      %1858 = vmatprep.subr.mxu0 0.0
      %1859 = vmatpush1.msra.mxu0 0.0
      %1860 = vmatprep.subr.mxu0 0.0
      %1861 = vmatpush1.msra.mxu0 0.0
      %1862 = vmatprep.subr.mxu0 0.0
      %1863 = vmatpush1.msra.mxu0 0.0
      %1864 = vmatprep.subr.mxu0 0.0
      %1865 = vmatpush1.msra.mxu0 0.0
      %1866 = vmatprep.subr.mxu0 0.0
      %1867 = vmatpush1.msra.mxu0 0.0
      %1868 = vmatprep.mubr.f32.mxu0 0.0
      %1869 = vmatmul.mubr.f32.gmra.mrb[0].mxu0 %v1176
      %v1870 = vpop.f32.mrb[0].mxu0
      %v1871 = vadd.f32 %v1173, %v1870
      %v1872 = vpop.f32.mrb[0].mxu0
      %1873 = vdwg.mxu0
      %s1874 = scalar_lea.vmem %s316, 56
      %1875 = vst [vmem:[%s1874] sm:$0xff] %v1871
      %s1876 = smul.u32 8, %s20
      %p1877 = scmp.lt.s32.totalorder %s19, 1
      %s1878 = scalar_select %p1877, %s19, 1
      %p1879 = scmp.lt.s32.totalorder %s1876, 7
      %s1880 = scalar_select %p1879, %s1876, 7
      %s1881 = smul.addr %s1878, 8
      %s1882 = sadd.s32 %s1880, %s1881
      %s1883 = smul.addr %s1882, 8
      %s1884 = scalar_lea.vmem %s4, %s1883
      // Predicated region
      $region37: #{reflect_conv3d_forward.1} parent=35 // pred_check
        %p1885 = pneg %p149
      $region38: #{reflect_conv3d_forward.1} parent=35 // pred_check_branch
        %1887 = sbr.rel (%p1885) target = $region40
      $region39: #{reflect_conv3d_forward.1} parent=35 // pred_region
        %s1888 = smul.u32 8, %s20
      $region40: #{reflect_conv3d_forward.1} parent=35 // pred_fallthru
        _
    $region36: #{reflect_conv3d_forward.1} parent=5 // pred_fallthru
      _
    %p1889 = scmp.le.s32.totalorder 2, %s10
    // Predicated region
    $region41: #{reflect_conv3d_forward.1} parent=5 // pred_check
      %p1890 = pneg %p1889
    $region42: #{reflect_conv3d_forward.1} parent=5 // pred_check_branch
      %1892 = sbr.rel (%p1890) target = $region44
    $region43: #{reflect_conv3d_forward.1} parent=5 // pred_region
      %s1893 = ssub.s32 %s10, 2
      // Predicated region
      $region45: #{reflect_conv3d_forward.1} parent=43 // pred_check
        %p1894 = pneg %p155
      $region46: #{reflect_conv3d_forward.1} parent=43 // pred_check_branch
        %1896 = sbr.rel (%p1894) target = $region48
      $region47: #{reflect_conv3d_forward.1} parent=43 // pred_region
        %s1897 = smul.u32 8, %s22
        %p1898 = scmp.lt.s32.totalorder %s21, 1
        %s1899 = scalar_select %p1898, %s21, 1
        %p1900 = scmp.lt.s32.totalorder %s1897, 7
        %s1901 = scalar_select %p1900, %s1897, 7
        %s1902 = smul.addr %s1899, 8
        %s1903 = sadd.s32 %s1901, %s1902
        %s1904 = smul.addr %s1903, 8
        %s1905 = scalar_lea.vmem %s4, %s1904
      $region48: #{reflect_conv3d_forward.1} parent=43 // pred_fallthru
        _
    $region44: #{reflect_conv3d_forward.1} parent=5 // pred_fallthru
      _
  $region6: #{reflect_conv3d_forward.1} parent=0 // loop_footer
    %s14 = sadd.s32 1, %s10
  $region7: #{reflect_conv3d_forward.1} parent=0 // loop_footer_branch
    %9 = sbr.rel target = $region3
  $region8: #{reflect_conv3d_forward.1} parent=0 // loop_exit
    _

</llo_original>
